<compile_context>
chip_gen: v7x
topology: tpu7x:2x2x1
jax: 0.10.0
libtpu: 0.0.40
codegen_flags: <defaults>
</compile_context>

<pallas_src>
import math

import jax
import jax.numpy as jnp
import numpy as np
from jax.experimental import pallas as pl
from jax.experimental.pallas import tpu as pltpu  # noqa: F401  (TPU backend)


# ----------------------------- Pallas kernels -----------------------------


def conv_matmul_relu_kernel(p_ref, w_ref, b_ref, o_ref):
    # p_ref: (B*OH*OW, C*KH*KW) bf16   w_ref: (C*KH*KW, OC) bf16
    # b_ref: (1, OC) f32               o_ref: (B*OH*OW, OC) bf16
    acc = jnp.dot(p_ref[...], w_ref[...], preferred_element_type=jnp.float32)
    o_ref[...] = jnp.maximum(acc + b_ref[...], 0.0).astype(o_ref.dtype)


def mlp_kernel(flat_ref, mod_ref, w1_ref, b1_ref, w2a_ref, w2b_ref, b2_ref,
               w3_ref, b3_ref, out_ref):
    # flat: (B, P*OC) bf16 lane-dense (P*OC = 36*128)   w1: (P*OC, 64) bf16
    # mod: (B, 6) f32   w2a: (64, 64)   w2b: (6, 64)   w3: (64, A)   all f32
    h1 = jnp.dot(flat_ref[...], w1_ref[...], preferred_element_type=jnp.float32)
    h1 = jnp.maximum(h1 + b1_ref[...], 0.0)
    # torch.cat((h1, mod), -1) @ W2  ==  h1 @ W2[:64] + mod @ W2[64:]
    h2 = (jnp.dot(h1, w2a_ref[...], preferred_element_type=jnp.float32)
          + jnp.dot(mod_ref[...], w2b_ref[...], preferred_element_type=jnp.float32)
          + b2_ref[...])
    h2 = jnp.maximum(h2, 0.0)
    out_ref[...] = (jnp.dot(h2, w3_ref[...], preferred_element_type=jnp.float32)
                    + b3_ref[...])


# ------------------------- parameter preparation ---------------------------


def prepare_params(params):
    """One-time host-side preprocessing of DQNModel_3 parameters."""
    conv_w, conv_b, w1, b1, w2, b2, w3, b3 = params
    OC, C, KH, KW = conv_w.shape
    CK = C * KH * KW
    hid = w1.shape[1]
    P = w1.shape[0] // OC                       # OH * OW

    # Conv as matmul: column order (c, kh, kw) matches the feature order of
    # lax.conv_general_dilated_patches.  Stored bf16 (single-pass MXU).
    w_conv = jnp.asarray(conv_w).reshape(OC, CK).T.astype(jnp.bfloat16)  # (CK, OC)
    b_conv = jnp.asarray(conv_b).reshape(1, OC)                          # f32 bias

    # nn.Flatten on the NCHW conv output is (oc, p)-ordered; the conv matmul's
    # natural flatten is (p, oc)-ordered.  Permute w1's rows ONCE so the runtime
    # hand-off is a free reshape (no transpose).  Keep w1 in bf16.
    w1_perm = (jnp.asarray(w1).reshape(OC, P, hid)
               .transpose(1, 0, 2).reshape(P * OC, hid)
               .astype(jnp.bfloat16))

    return (w_conv, b_conv,
            w1_perm, jnp.asarray(b1).reshape(1, hid),
            jnp.asarray(w2)[:hid], jnp.asarray(w2)[hid:],
            jnp.asarray(b2).reshape(1, hid),
            jnp.asarray(w3), jnp.asarray(b3).reshape(1, -1))


# ------------------------------- forward -----------------------------------


@jax.jit
def dqn3_forward(x_nchw, x_mod, prep):
    w_conv, b_conv, w1_perm, b1, w2a, w2b, b2, w3, b3 = prep
    B, C, H, W = x_nchw.shape
    CK, OC = w_conv.shape
    KH = KW = int(round(math.sqrt(CK // C)))    # square kernel (5 in the module)
    OH, OW = H - KH + 1, W - KW + 1
    P = OH * OW

    # im2col as ONE fused XLA op: (B, OH, OW, C*KH*KW), feature order (c,kh,kw).
    # The bf16 cast fuses into the same XLA op and halves the HBM round trip.
    patches = jax.lax.conv_general_dilated_patches(
        x_nchw, filter_shape=(KH, KW), window_strides=(1, 1), padding="VALID",
        dimension_numbers=("NCHW", "OIHW", "NHWC")).astype(jnp.bfloat16)
    patches = patches.reshape(B * P, CK)                     # free reshape

    # conv1 + bias + ReLU as a single whole-batch bf16 matmul on the MXU.
    conv_out = pl.pallas_call(
        conv_matmul_relu_kernel,
        out_shape=jax.ShapeDtypeStruct((B * P, OC), jnp.bfloat16),
    )(patches, w_conv, b_conv)

    # (B*P, OC) -> (B, P*OC): free row-major reshape; w1 rows were pre-permuted
    # to this (p, oc) flatten order.  P*OC = 4608 is a multiple of 128 (lane-dense).
    flat = conv_out.reshape(B, P * OC)

    num_actions = w3.shape[1]
    # dense1 -> ReLU -> cat(dense2) -> ReLU -> output_layer, fused in one kernel.
    out = pl.pallas_call(
        mlp_kernel,
        out_shape=jax.ShapeDtypeStruct((B, num_actions), jnp.float32),
    )(flat, x_mod, w1_perm, b1, w2a, w2b, b2, w3, b3)
    return out


# --------------------------- pure-JAX reference ----------------------------


def reference_forward(x_nchw, x_mod, params):
    conv_w, conv_b, w1, b1, w2, b2, w3, b3 = params
    y = jax.lax.conv_general_dilated(
        x_nchw, conv_w, window_strides=(1, 1), padding="VALID",
        dimension_numbers=("NCHW", "OIHW", "NCHW"))
    y = jax.nn.relu(y + conv_b[None, :, None, None])
    f = y.reshape(y.shape[0], -1)
    h1 = jax.nn.relu(f @ w1 + b1)
    cat = jnp.concatenate([h1, x_mod], axis=-1)
    h2 = jax.nn.relu(cat @ w2 + b2)
    return h2 @ w3 + b3


# --------------------------------- main ------------------------------------


if __name__ == "__main__":
    B = 2
    input_shape = (4, 16, 16)          # (C, H, W) as in the PyTorch module
    num_actions = 4
    mod_dim = 6                        # dense2 expects 64 + 6 = 70 inputs
    C, H, W = input_shape
    conv_feat = 32 * (H - 4) * (W - 4)

    key = jax.random.PRNGKey(0)
    ks = jax.random.split(key, 10)

    # Deterministic synthetic parameters (shapes match DQNModel_3.__init__).
    conv_w = 0.05 * jax.random.normal(ks[0], (32, C, 5, 5), jnp.float32)
    conv_b = 0.05 * jax.random.normal(ks[1], (32,), jnp.float32)
    w1 = 0.02 * jax.random.normal(ks[2], (conv_feat, 64), jnp.float32)
    b1 = 0.02 * jax.random.normal(ks[3], (64,), jnp.float32)
    w2 = 0.05 * jax.random.normal(ks[4], (70, 64), jnp.float32)
    b2 = 0.05 * jax.random.normal(ks[5], (64,), jnp.float32)
    w3 = 0.05 * jax.random.normal(ks[6], (64, num_actions), jnp.float32)
    b3 = 0.05 * jax.random.normal(ks[7], (num_actions,), jnp.float32)
    params = (conv_w, conv_b, w1, b1, w2, b2, w3, b3)

    x = jax.random.normal(ks[8], (B, C, H, W), jnp.float32)      # NCHW
    x_mod = jax.random.normal(ks[9], (B, mod_dim), jnp.float32)

    prep = prepare_params(params)          # one-time weight reshape/permute/cast

    out = dqn3_forward(x, x_mod, prep)
    out = jax.block_until_ready(out)

    ref = jax.block_until_ready(reference_forward(x, x_mod, params))

    assert out.shape == (B, num_actions)
    np.testing.assert_allclose(np.asarray(out), np.asarray(ref),
                               rtol=2e-2, atol=2e-2)
    print("KERNEL_OK")
</pallas_src>

<mosaic_0001>
module attributes {stable_mosaic.version = 11 : i64} {
  func.func @conv_matmul_relu_kernel(%arg0: memref<288x100xbf16, #tpu.memory_space<vmem>>, %arg1: memref<100x32xbf16, #tpu.memory_space<vmem>>, %arg2: memref<1x32xf32, #tpu.memory_space<vmem>>, %arg3: memref<288x32xbf16, #tpu.memory_space<vmem>>) attributes {dimension_semantics = [], scalar_prefetch = 0 : i64, scratch_operands = 0 : i64, tpu.core_type = #tpu.core_type<tc>} {
    %c0 = arith.constant 0 : index
    %c0_0 = arith.constant 0 : index
    %0 = vector.load %arg0[%c0, %c0_0] : memref<288x100xbf16, #tpu.memory_space<vmem>>, vector<288x100xbf16>
    %c0_1 = arith.constant 0 : index
    %c0_2 = arith.constant 0 : index
    %1 = vector.load %arg1[%c0_1, %c0_2] : memref<100x32xbf16, #tpu.memory_space<vmem>>, vector<100x32xbf16>
    %cst = arith.constant dense<0.000000e+00> : vector<288x32xf32>
    %2 = tpu.matmul %0, %1, %cst {dimension_numbers = #tpu.dot_dimension_numbers<[1], [0], [0], [1], [0, 0, 1, 1], [], []>} : vector<288x100xbf16>, vector<100x32xbf16>, vector<288x32xf32> -> vector<288x32xf32>
    %c0_3 = arith.constant 0 : index
    %c0_4 = arith.constant 0 : index
    %3 = vector.load %arg2[%c0_3, %c0_4] : memref<1x32xf32, #tpu.memory_space<vmem>>, vector<1x32xf32>
    %4 = vector.broadcast %3 : vector<1x32xf32> to vector<288x32xf32>
    %5 = arith.addf %2, %4 : vector<288x32xf32>
    %cst_5 = arith.constant 0.000000e+00 : f32
    %6 = vector.broadcast %cst_5 : f32 to vector<288x32xf32>
    %7 = arith.maximumf %5, %6 : vector<288x32xf32>
    %8 = arith.truncf %7 : vector<288x32xf32> to vector<288x32xbf16>
    %c0_6 = arith.constant 0 : index
    %c0_7 = arith.constant 0 : index
    %9 = vector.load %arg3[%c0_6, %c0_7] : memref<288x32xbf16, #tpu.memory_space<vmem>>, vector<288x32xbf16>
    tpu.vector_store %arg3[%c0_6, %c0_7], %8 {strides = array<i32>} : memref<288x32xbf16, #tpu.memory_space<vmem>>, vector<288x32xbf16>,
    return
  }
}

module attributes {stable_mosaic.version = 11 : i64} {
  func.func @mlp_kernel(%arg0: memref<2x4608xbf16, #tpu.memory_space<vmem>>, %arg1: memref<2x6xf32, #tpu.memory_space<vmem>>, %arg2: memref<4608x64xbf16, #tpu.memory_space<vmem>>, %arg3: memref<1x64xf32, #tpu.memory_space<vmem>>, %arg4: memref<64x64xf32, #tpu.memory_space<vmem>>, %arg5: memref<6x64xf32, #tpu.memory_space<vmem>>, %arg6: memref<1x64xf32, #tpu.memory_space<vmem>>, %arg7: memref<64x4xf32, #tpu.memory_space<vmem>>, %arg8: memref<1x4xf32, #tpu.memory_space<vmem>>, %arg9: memref<2x4xf32, #tpu.memory_space<vmem>>) attributes {dimension_semantics = [], scalar_prefetch = 0 : i64, scratch_operands = 0 : i64, tpu.core_type = #tpu.core_type<tc>} {
    %c0 = arith.constant 0 : index
    %c0_0 = arith.constant 0 : index
    %0 = vector.load %arg0[%c0, %c0_0] : memref<2x4608xbf16, #tpu.memory_space<vmem>>, vector<2x4608xbf16>
    %c0_1 = arith.constant 0 : index
    %c0_2 = arith.constant 0 : index
    %1 = vector.load %arg2[%c0_1, %c0_2] : memref<4608x64xbf16, #tpu.memory_space<vmem>>, vector<4608x64xbf16>
    %cst = arith.constant dense<0.000000e+00> : vector<2x64xf32>
    %2 = tpu.matmul %0, %1, %cst {dimension_numbers = #tpu.dot_dimension_numbers<[1], [0], [0], [1], [0, 0, 1, 1], [], []>} : vector<2x4608xbf16>, vector<4608x64xbf16>, vector<2x64xf32> -> vector<2x64xf32>
    %c0_3 = arith.constant 0 : index
    %c0_4 = arith.constant 0 : index
    %3 = vector.load %arg3[%c0_3, %c0_4] : memref<1x64xf32, #tpu.memory_space<vmem>>, vector<1x64xf32>
    %4 = vector.broadcast %3 : vector<1x64xf32> to vector<2x64xf32>
    %5 = arith.addf %2, %4 : vector<2x64xf32>
    %cst_5 = arith.constant 0.000000e+00 : f32
    %6 = vector.broadcast %cst_5 : f32 to vector<2x64xf32>
    %7 = arith.maximumf %5, %6 : vector<2x64xf32>
    %c0_6 = arith.constant 0 : index
    %c0_7 = arith.constant 0 : index
    %8 = vector.load %arg4[%c0_6, %c0_7] : memref<64x64xf32, #tpu.memory_space<vmem>>, vector<64x64xf32>
    %cst_8 = arith.constant dense<0.000000e+00> : vector<2x64xf32>
    %9 = tpu.matmul %7, %8, %cst_8 {dimension_numbers = #tpu.dot_dimension_numbers<[1], [0], [0], [1], [0, 0, 1, 1], [], []>} : vector<2x64xf32>, vector<64x64xf32>, vector<2x64xf32> -> vector<2x64xf32>
    %c0_9 = arith.constant 0 : index
    %c0_10 = arith.constant 0 : index
    %10 = vector.load %arg1[%c0_9, %c0_10] : memref<2x6xf32, #tpu.memory_space<vmem>>, vector<2x6xf32>
    %c0_11 = arith.constant 0 : index
    %c0_12 = arith.constant 0 : index
    %11 = vector.load %arg5[%c0_11, %c0_12] : memref<6x64xf32, #tpu.memory_space<vmem>>, vector<6x64xf32>
    %cst_13 = arith.constant dense<0.000000e+00> : vector<2x64xf32>
    %12 = tpu.matmul %10, %11, %cst_13 {dimension_numbers = #tpu.dot_dimension_numbers<[1], [0], [0], [1], [0, 0, 1, 1], [], []>} : vector<2x6xf32>, vector<6x64xf32>, vector<2x64xf32> -> vector<2x64xf32>
    %13 = arith.addf %9, %12 : vector<2x64xf32>
    %c0_14 = arith.constant 0 : index
    %c0_15 = arith.constant 0 : index
    %14 = vector.load %arg6[%c0_14, %c0_15] : memref<1x64xf32, #tpu.memory_space<vmem>>, vector<1x64xf32>
    %15 = vector.broadcast %14 : vector<1x64xf32> to vector<2x64xf32>
    %16 = arith.addf %13, %15 : vector<2x64xf32>
    %cst_16 = arith.constant 0.000000e+00 : f32
    %17 = vector.broadcast %cst_16 : f32 to vector<2x64xf32>
    %18 = arith.maximumf %16, %17 : vector<2x64xf32>
    %c0_17 = arith.constant 0 : index
    %c0_18 = arith.constant 0 : index
    %19 = vector.load %arg7[%c0_17, %c0_18] : memref<64x4xf32, #tpu.memory_space<vmem>>, vector<64x4xf32>
    %cst_19 = arith.constant dense<0.000000e+00> : vector<2x4xf32>
    %20 = tpu.matmul %18, %19, %cst_19 {dimension_numbers = #tpu.dot_dimension_numbers<[1], [0], [0], [1], [0, 0, 1, 1], [], []>} : vector<2x64xf32>, vector<64x4xf32>, vector<2x4xf32> -> vector<2x4xf32>
    %c0_20 = arith.constant 0 : index
    %c0_21 = arith.constant 0 : index
    %21 = vector.load %arg8[%c0_20, %c0_21] : memref<1x4xf32, #tpu.memory_space<vmem>>, vector<1x4xf32>
    %22 = vector.broadcast %21 : vector<1x4xf32> to vector<2x4xf32>
    %23 = arith.addf %20, %22 : vector<2x4xf32>
    %c0_22 = arith.constant 0 : index
    %c0_23 = arith.constant 0 : index
    %24 = vector.load %arg9[%c0_22, %c0_23] : memref<2x4xf32, #tpu.memory_space<vmem>>, vector<2x4xf32>
    tpu.vector_store %arg9[%c0_22, %c0_23], %23 {strides = array<i32>} : memref<2x4xf32, #tpu.memory_space<vmem>>, vector<2x4xf32>,
    return
  }
}

</mosaic_0001>

<llo_original>
// kernel: dqn3_forward.2
$region0: #{dqn3_forward.2}
  #allocation0 [shape = 'u32[]', space=smem, size = 0x4, offset = 0x4, fixed_abs, tag = 'smem constant byte address 0x4 - core index']
  #allocation1 [shape = 'u32[144,128]{1,0:T(1,128)}', space=vmem, size = 0x12000, scoped, tag = 'internal scratch']
  %s0 = inlined_call_operand.vmem [shape: bf16[288,100], index: 0, kind: input, shape index: {}]
  %s1 = inlined_call_operand.vmem [shape: bf16[100,32], index: 1, kind: input, shape index: {}]
  %s2 = inlined_call_operand.vmem [shape: f32[1,32], index: 2, kind: input, shape index: {}]
  %s3 = inlined_call_operand.vmem [shape: bf16[288,32], index: 3, kind: output, shape index: {}]
  %s4 = sld [smem:[#allocation0]]
  $region22: #{dqn3_forward.2} parent=0
    _
  %s6 = ssub.s32 1, %s4
  %s7 = scalar_select 0, %s6, %s4
  // Predicated region
  $region2: #{dqn3_forward.2} parent=0 // pred_check
    _
  $region3: #{dqn3_forward.2} parent=0 // pred_check_branch
    %9 = sbr.rel (0) target = $region5
  $region4: #{dqn3_forward.2} parent=0 // pred_region
    _
  $region5: #{dqn3_forward.2} parent=0 // pred_fallthru
    _
  // Predicated region
  $region6: #{dqn3_forward.2} parent=0 // pred_check
    _
  $region7: #{dqn3_forward.2} parent=0 // pred_check_branch
    %11 = sbr.rel (0) target = $region9
  $region8: #{dqn3_forward.2} parent=0 // pred_region
    _
  $region9: #{dqn3_forward.2} parent=0 // pred_fallthru
    _
  // Predicated region
  $region10: #{dqn3_forward.2} parent=0 // pred_check
    _
  $region11: #{dqn3_forward.2} parent=0 // pred_check_branch
    %13 = sbr.rel (0) target = $region13
  $region12: #{dqn3_forward.2} parent=0 // pred_region
    _
  $region13: #{dqn3_forward.2} parent=0 // pred_fallthru
    _
  %v15 = vld [vmem:[%s0] sm:$0xf]
  %v16 = vld [vmem:[%s0 + $0x4] sm:$0xf]
  %v17 = vld [vmem:[%s0 + $0x8] sm:$0xf]
  %v18 = vld [vmem:[%s0 + $0xc] sm:$0xf]
  %v19 = vld [vmem:[%s0 + $0x10] sm:$0xf]
  %v20 = vld [vmem:[%s0 + $0x14] sm:$0xf]
  %v21 = vld [vmem:[%s0 + $0x18] sm:$0xf]
  %v22 = vld [vmem:[%s0 + $0x1c] sm:$0xf]
  %v23 = vld [vmem:[%s0 + $0x20] sm:$0xf]
  %v24 = vld [vmem:[%s0 + $0x24] sm:$0xf]
  %v25 = vld [vmem:[%s0 + $0x28] sm:$0xf]
  %v26 = vld [vmem:[%s0 + $0x2c] sm:$0xf]
  %v27 = vld [vmem:[%s0 + $0x30] sm:$0xf]
  %v28 = vld [vmem:[%s0 + $0x34] sm:$0xf]
  %v29 = vld [vmem:[%s0 + $0x38] sm:$0xf]
  %v30 = vld [vmem:[%s0 + $0x3c] sm:$0xf]
  %v31 = vld [vmem:[%s0 + $0x40] sm:$0xf]
  %v32 = vld [vmem:[%s0 + $0x44] sm:$0xf]
  %v33 = vld [vmem:[%s0 + $0x48] sm:$0xf]
  %v34 = vld [vmem:[%s0 + $0x4c] sm:$0xf]
  %v35 = vld [vmem:[%s0 + $0x50] sm:$0xf]
  %v36 = vld [vmem:[%s0 + $0x54] sm:$0xf]
  %v37 = vld [vmem:[%s0 + $0x58] sm:$0xf]
  %v38 = vld [vmem:[%s0 + $0x5c] sm:$0xf]
  %v39 = vld [vmem:[%s0 + $0x60] sm:$0xf]
  %v40 = vld [vmem:[%s0 + $0x64] sm:$0xf]
  %v41 = vld [vmem:[%s0 + $0x68] sm:$0xf]
  %v42 = vld [vmem:[%s0 + $0x6c] sm:$0xf]
  %v43 = vld [vmem:[%s0 + $0x70] sm:$0xf]
  %v44 = vld [vmem:[%s0 + $0x74] sm:$0xf]
  %v45 = vld [vmem:[%s0 + $0x78] sm:$0xf]
  %v46 = vld [vmem:[%s0 + $0x7c] sm:$0xf]
  %v47 = vld [vmem:[%s0 + $0x80] sm:$0xf]
  %v48 = vld [vmem:[%s0 + $0x84] sm:$0xf]
  %v49 = vld [vmem:[%s0 + $0x88] sm:$0xf]
  %v50 = vld [vmem:[%s0 + $0x8c] sm:$0xf]
  %v51 = vld [vmem:[%s1] sm:$0xf]
  %v52 = vld [vmem:[%s1 + $0x4] sm:$0xf]
  %v53 = vld [vmem:[%s1 + $0x8] sm:$0xf]
  %v54 = vld [vmem:[%s1 + $0xc] sm:$0xf]
  %v55 = vld [vmem:[%s1 + $0x10] sm:$0xf]
  %v56 = vld [vmem:[%s1 + $0x14] sm:$0xf]
  %v57 = vld [vmem:[%s1 + $0x18] sm:$0xf]
  %v58 = vld [vmem:[%s1 + $0x1c] sm:$0xf]
  %v59 = vld [vmem:[%s1 + $0x20] sm:$0xf]
  %v60 = vld [vmem:[%s1 + $0x24] sm:$0xf]
  %v61 = vld [vmem:[%s1 + $0x28] sm:$0xf]
  %v62 = vld [vmem:[%s1 + $0x2c] sm:$0xf]
  %v63 = vld [vmem:[%s1 + $0x30] sm:$0x3]
  %v64 = vld [vmem:[%s2] sm:$0x1]
  %v66 = vlaneseq
  %v67 = vshrl.u32 %v66, 7
  %v68 = vsub.s32 0, %v67
  %v69 = vrot.slane %v64, %v68
  %v107 = vunpack.c.l.b16 %v15
  %v108 = vunpack.c.l.b16 %v16
  %v109 = vunpack.c.l.b16 %v17
  %v110 = vunpack.c.l.b16 %v18
  %v111 = vunpack.c.l.b16 %v19
  %v112 = vunpack.c.l.b16 %v20
  %v113 = vunpack.c.l.b16 %v21
  %v114 = vunpack.c.l.b16 %v22
  %v115 = vunpack.c.l.b16 %v23
  %v116 = vunpack.c.l.b16 %v24
  %v117 = vunpack.c.l.b16 %v25
  %v118 = vunpack.c.l.b16 %v26
  %v119 = vunpack.c.l.b16 %v27
  %v120 = vunpack.c.l.b16 %v28
  %v121 = vunpack.c.l.b16 %v29
  %v122 = vunpack.c.l.b16 %v30
  %v123 = vunpack.c.l.b16 %v31
  %v124 = vunpack.c.l.b16 %v32
  %v125 = vunpack.c.l.b16 %v33
  %v126 = vunpack.c.l.b16 %v34
  %v127 = vunpack.c.l.b16 %v35
  %v128 = vunpack.c.l.b16 %v36
  %v129 = vunpack.c.l.b16 %v37
  %v130 = vunpack.c.l.b16 %v38
  %v131 = vunpack.c.l.b16 %v39
  %v132 = vunpack.c.l.b16 %v40
  %v133 = vunpack.c.l.b16 %v41
  %v134 = vunpack.c.l.b16 %v42
  %v135 = vunpack.c.l.b16 %v43
  %v136 = vunpack.c.l.b16 %v44
  %v137 = vunpack.c.l.b16 %v45
  %v138 = vunpack.c.l.b16 %v46
  %v139 = vunpack.c.l.b16 %v47
  %v140 = vunpack.c.l.b16 %v48
  %v141 = vunpack.c.l.b16 %v49
  %v142 = vunpack.c.l.b16 %v50
  %v143 = vpack.c.b16 %v108, %v107
  %v144 = vpack.c.b16 %v110, %v109
  %v145 = vpack.c.b16 %v112, %v111
  %v146 = vpack.c.b16 %v114, %v113
  %v147 = vpack.c.b16 %v116, %v115
  %v148 = vpack.c.b16 %v118, %v117
  %v149 = vpack.c.b16 %v120, %v119
  %v150 = vpack.c.b16 %v122, %v121
  %v151 = vpack.c.b16 %v124, %v123
  %v152 = vpack.c.b16 %v126, %v125
  %v153 = vpack.c.b16 %v128, %v127
  %v154 = vpack.c.b16 %v130, %v129
  %v155 = vpack.c.b16 %v132, %v131
  %v156 = vpack.c.b16 %v134, %v133
  %v157 = vpack.c.b16 %v136, %v135
  %v158 = vpack.c.b16 %v138, %v137
  %v159 = vpack.c.b16 %v140, %v139
  %v160 = vpack.c.b16 %v142, %v141
  %v174 = vunpack.c.l.b16 %v51
  %v175 = vunpack.c.l.b16 %v52
  %v176 = vunpack.c.l.b16 %v53
  %v177 = vunpack.c.l.b16 %v54
  %v178 = vunpack.c.l.b16 %v55
  %v179 = vunpack.c.l.b16 %v56
  %v180 = vunpack.c.l.b16 %v57
  %v181 = vunpack.c.l.b16 %v58
  %v182 = vunpack.c.l.b16 %v59
  %v183 = vunpack.c.l.b16 %v60
  %v184 = vunpack.c.l.b16 %v61
  %v185 = vunpack.c.l.b16 %v62
  %v186 = vunpack.c.l.b16 %v63
  %v187 = vpack.c.b16 %v175, %v174
  %v188 = vpack.c.b16 %v177, %v176
  %v189 = vpack.c.b16 %v179, %v178
  %v190 = vpack.c.b16 %v181, %v180
  %v191 = vpack.c.b16 %v183, %v182
  %v192 = vpack.c.b16 %v185, %v184
  %v193 = vpack.c.b16 %v186, %v186
  %vm200 = vcmask 818176
  %v202 = vsel %vm200, %v143, 0
  %v205 = vsel %vm200, %v144, 0
  %v208 = vsel %vm200, %v145, 0
  %v211 = vsel %vm200, %v146, 0
  %v214 = vsel %vm200, %v147, 0
  %v217 = vsel %vm200, %v148, 0
  %v220 = vsel %vm200, %v149, 0
  %v223 = vsel %vm200, %v150, 0
  %v226 = vsel %vm200, %v151, 0
  %v229 = vsel %vm200, %v152, 0
  %v232 = vsel %vm200, %v153, 0
  %v235 = vsel %vm200, %v154, 0
  %v238 = vsel %vm200, %v155, 0
  %v241 = vsel %vm200, %v156, 0
  %v244 = vsel %vm200, %v157, 0
  %v247 = vsel %vm200, %v158, 0
  %v250 = vsel %vm200, %v159, 0
  %v253 = vsel %vm200, %v160, 0
  %vm255 = vcmask 1041408
  %v257 = vsel %vm255, %v193, 0
  %259 = vmatprep.subr.bf16.mxu0 0
  %260 = vmatpush1.bf16.msra.mxu0 %v187
  %261 = vmatprep.subr.bf16.mxu0 0
  %262 = vmatpush1.bf16.msra.mxu0 %v188
  %263 = vmatprep.subr.bf16.mxu0 0
  %264 = vmatpush1.bf16.msra.mxu0 %v189
  %265 = vmatprep.subr.bf16.mxu0 0
  %266 = vmatpush1.bf16.msra.mxu0 %v190
  %267 = vmatprep.subr.bf16.mxu0 0
  %268 = vmatpush1.bf16.msra.mxu0 %v191
  %269 = vmatprep.subr.bf16.mxu0 0
  %270 = vmatpush1.bf16.msra.mxu0 %v192
  %271 = vmatprep.subr.bf16.mxu0 0
  %272 = vmatpush1.bf16.msra.mxu0 %v257
  %273 = vmatprep.subr.bf16.mxu0 0
  %274 = vmatpush1.bf16.msra.mxu0 0
  %275 = vmatprep.subr.bf16.mxu0 0
  %276 = vmatpush1.bf16.msra.mxu0 0
  %277 = vmatprep.subr.bf16.mxu0 0
  %278 = vmatpush1.bf16.msra.mxu0 0
  %279 = vmatprep.subr.bf16.mxu0 0
  %280 = vmatpush1.bf16.msra.mxu0 0
  %281 = vmatprep.subr.bf16.mxu0 0
  %282 = vmatpush1.bf16.msra.mxu0 0
  %283 = vmatprep.subr.bf16.mxu0 0
  %284 = vmatpush1.bf16.msra.mxu0 0
  %285 = vmatprep.subr.bf16.mxu0 0
  %286 = vmatpush1.bf16.msra.mxu0 0
  %287 = vmatprep.subr.bf16.mxu0 0
  %288 = vmatpush1.bf16.msra.mxu0 0
  %289 = vmatprep.subr.bf16.mxu0 0
  %290 = vmatpush1.bf16.msra.mxu0 0
  %291 = vmatprep.mubr.bf16.mxu0 0
  %292 = vmatmul.mubr.bf16.gmra.mrb[0].mxu0 %v202
  %v293 = vpop.f32.mrb[0].mxu0
  %v294 = vadd.f32 %v69, %v293
  %v295 = vpop.f32.mrb[0].mxu0
  %v296 = vpop.f32.mrb[0].mxu0
  %v297 = vadd.f32 %v69, %v296
  %v298 = vpop.f32.mrb[0].mxu0
  %299 = vmatprep.mubr.bf16.mxu0 0
  %300 = vmatmul.mubr.bf16.gmra.mrb[0].mxu0 %v205
  %v301 = vpop.f32.mrb[0].mxu0
  %v302 = vadd.f32 %v69, %v301
  %v303 = vpop.f32.mrb[0].mxu0
  %v304 = vpop.f32.mrb[0].mxu0
  %v305 = vadd.f32 %v69, %v304
  %v306 = vpop.f32.mrb[0].mxu0
  %307 = vmatprep.mubr.bf16.mxu0 0
  %308 = vmatmul.mubr.bf16.gmra.mrb[0].mxu0 %v208
  %v309 = vpop.f32.mrb[0].mxu0
  %v310 = vadd.f32 %v69, %v309
  %v311 = vpop.f32.mrb[0].mxu0
  %v312 = vpop.f32.mrb[0].mxu0
  %v313 = vadd.f32 %v69, %v312
  %v314 = vpop.f32.mrb[0].mxu0
  %315 = vmatprep.mubr.bf16.mxu0 0
  %316 = vmatmul.mubr.bf16.gmra.mrb[0].mxu0 %v211
  %v317 = vpop.f32.mrb[0].mxu0
  %v318 = vadd.f32 %v69, %v317
  %v319 = vpop.f32.mrb[0].mxu0
  %v320 = vpop.f32.mrb[0].mxu0
  %v321 = vadd.f32 %v69, %v320
  %v322 = vpop.f32.mrb[0].mxu0
  %323 = vmatprep.mubr.bf16.mxu0 0
  %324 = vmatmul.mubr.bf16.gmra.mrb[0].mxu0 %v214
  %v325 = vpop.f32.mrb[0].mxu0
  %v326 = vadd.f32 %v69, %v325
  %v327 = vpop.f32.mrb[0].mxu0
  %v328 = vpop.f32.mrb[0].mxu0
  %v329 = vadd.f32 %v69, %v328
  %v330 = vpop.f32.mrb[0].mxu0
  %331 = vmatprep.mubr.bf16.mxu0 0
  %332 = vmatmul.mubr.bf16.gmra.mrb[0].mxu0 %v217
  %v333 = vpop.f32.mrb[0].mxu0
  %v334 = vadd.f32 %v69, %v333
  %v335 = vpop.f32.mrb[0].mxu0
  %v336 = vpop.f32.mrb[0].mxu0
  %v337 = vadd.f32 %v69, %v336
  %v338 = vpop.f32.mrb[0].mxu0
  %339 = vmatprep.mubr.bf16.mxu0 0
  %340 = vmatmul.mubr.bf16.gmra.mrb[0].mxu0 %v220
  %v341 = vpop.f32.mrb[0].mxu0
  %v342 = vadd.f32 %v69, %v341
  %v343 = vpop.f32.mrb[0].mxu0
  %v344 = vpop.f32.mrb[0].mxu0
  %v345 = vadd.f32 %v69, %v344
  %v346 = vpop.f32.mrb[0].mxu0
  %347 = vmatprep.mubr.bf16.mxu0 0
  %348 = vmatmul.mubr.bf16.gmra.mrb[0].mxu0 %v223
  %v349 = vpop.f32.mrb[0].mxu0
  %v350 = vadd.f32 %v69, %v349
  %v351 = vpop.f32.mrb[0].mxu0
  %v352 = vpop.f32.mrb[0].mxu0
  %v353 = vadd.f32 %v69, %v352
  %v354 = vpop.f32.mrb[0].mxu0
  %355 = vmatprep.mubr.bf16.mxu0 0
  %356 = vmatmul.mubr.bf16.gmra.mrb[0].mxu0 %v226
  %v357 = vpop.f32.mrb[0].mxu0
  %v358 = vadd.f32 %v69, %v357
  %v359 = vpop.f32.mrb[0].mxu0
  %v360 = vpop.f32.mrb[0].mxu0
  %v361 = vadd.f32 %v69, %v360
  %v362 = vpop.f32.mrb[0].mxu0
  %363 = vmatprep.mubr.bf16.mxu0 0
  %364 = vmatmul.mubr.bf16.gmra.mrb[0].mxu0 %v229
  %v365 = vpop.f32.mrb[0].mxu0
  %v366 = vadd.f32 %v69, %v365
  %v367 = vpop.f32.mrb[0].mxu0
  %v368 = vpop.f32.mrb[0].mxu0
  %v369 = vadd.f32 %v69, %v368
  %v370 = vpop.f32.mrb[0].mxu0
  %371 = vmatprep.mubr.bf16.mxu0 0
  %372 = vmatmul.mubr.bf16.gmra.mrb[0].mxu0 %v232
  %v373 = vpop.f32.mrb[0].mxu0
  %v374 = vadd.f32 %v69, %v373
  %v375 = vpop.f32.mrb[0].mxu0
  %v376 = vpop.f32.mrb[0].mxu0
  %v377 = vadd.f32 %v69, %v376
  %v378 = vpop.f32.mrb[0].mxu0
  %379 = vmatprep.mubr.bf16.mxu0 0
  %380 = vmatmul.mubr.bf16.gmra.mrb[0].mxu0 %v235
  %v381 = vpop.f32.mrb[0].mxu0
  %v382 = vadd.f32 %v69, %v381
  %v383 = vpop.f32.mrb[0].mxu0
  %v384 = vpop.f32.mrb[0].mxu0
  %v385 = vadd.f32 %v69, %v384
  %v386 = vpop.f32.mrb[0].mxu0
  %387 = vmatprep.mubr.bf16.mxu0 0
  %388 = vmatmul.mubr.bf16.gmra.mrb[0].mxu0 %v238
  %v389 = vpop.f32.mrb[0].mxu0
  %v390 = vadd.f32 %v69, %v389
  %v391 = vpop.f32.mrb[0].mxu0
  %v392 = vpop.f32.mrb[0].mxu0
  %v393 = vadd.f32 %v69, %v392
  %v394 = vpop.f32.mrb[0].mxu0
  %395 = vmatprep.mubr.bf16.mxu0 0
  %396 = vmatmul.mubr.bf16.gmra.mrb[0].mxu0 %v241
  %v397 = vpop.f32.mrb[0].mxu0
  %v398 = vadd.f32 %v69, %v397
  %v399 = vpop.f32.mrb[0].mxu0
  %v400 = vpop.f32.mrb[0].mxu0
  %v401 = vadd.f32 %v69, %v400
  %v402 = vpop.f32.mrb[0].mxu0
  %403 = vmatprep.mubr.bf16.mxu0 0
  %404 = vmatmul.mubr.bf16.gmra.mrb[0].mxu0 %v244
  %v405 = vpop.f32.mrb[0].mxu0
  %v406 = vadd.f32 %v69, %v405
  %v407 = vpop.f32.mrb[0].mxu0
  %v408 = vpop.f32.mrb[0].mxu0
  %v409 = vadd.f32 %v69, %v408
  %v410 = vpop.f32.mrb[0].mxu0
  %411 = vmatprep.mubr.bf16.mxu0 0
  %412 = vmatmul.mubr.bf16.gmra.mrb[0].mxu0 %v247
  %v413 = vpop.f32.mrb[0].mxu0
  %v414 = vadd.f32 %v69, %v413
  %v415 = vpop.f32.mrb[0].mxu0
  %v416 = vpop.f32.mrb[0].mxu0
  %v417 = vadd.f32 %v69, %v416
  %v418 = vpop.f32.mrb[0].mxu0
  %419 = vmatprep.mubr.bf16.mxu0 0
  %420 = vmatmul.mubr.bf16.gmra.mrb[0].mxu0 %v250
  %v421 = vpop.f32.mrb[0].mxu0
  %v422 = vadd.f32 %v69, %v421
  %v423 = vpop.f32.mrb[0].mxu0
  %v424 = vpop.f32.mrb[0].mxu0
  %v425 = vadd.f32 %v69, %v424
  %v426 = vpop.f32.mrb[0].mxu0
  %427 = vmatprep.mubr.bf16.mxu0 0
  %428 = vmatmul.mubr.bf16.gmra.mrb[0].mxu0 %v253
  %v429 = vpop.f32.mrb[0].mxu0
  %v430 = vadd.f32 %v69, %v429
  %v431 = vpop.f32.mrb[0].mxu0
  %v432 = vpop.f32.mrb[0].mxu0
  %v433 = vadd.f32 %v69, %v432
  %v434 = vpop.f32.mrb[0].mxu0
  %435 = vdwg.mxu0
  %v436 = vmax.f32 %v294, 0.0
  %v437 = vmax.f32 %v297, 0.0
  %v438 = vmax.f32 %v302, 0.0
  %v439 = vmax.f32 %v305, 0.0
  %v440 = vmax.f32 %v310, 0.0
  %v441 = vmax.f32 %v313, 0.0
  %v442 = vmax.f32 %v318, 0.0
  %v443 = vmax.f32 %v321, 0.0
  %v444 = vmax.f32 %v326, 0.0
  %v445 = vmax.f32 %v329, 0.0
  %v446 = vmax.f32 %v334, 0.0
  %v447 = vmax.f32 %v337, 0.0
  %v448 = vmax.f32 %v342, 0.0
  %v449 = vmax.f32 %v345, 0.0
  %v450 = vmax.f32 %v350, 0.0
  %v451 = vmax.f32 %v353, 0.0
  %v452 = vmax.f32 %v358, 0.0
  %v453 = vmax.f32 %v361, 0.0
  %v454 = vmax.f32 %v366, 0.0
  %v455 = vmax.f32 %v369, 0.0
  %v456 = vmax.f32 %v374, 0.0
  %v457 = vmax.f32 %v377, 0.0
  %v458 = vmax.f32 %v382, 0.0
  %v459 = vmax.f32 %v385, 0.0
  %v460 = vmax.f32 %v390, 0.0
  %v461 = vmax.f32 %v393, 0.0
  %v462 = vmax.f32 %v398, 0.0
  %v463 = vmax.f32 %v401, 0.0
  %v464 = vmax.f32 %v406, 0.0
  %v465 = vmax.f32 %v409, 0.0
  %v466 = vmax.f32 %v414, 0.0
  %v467 = vmax.f32 %v417, 0.0
  %v468 = vmax.f32 %v422, 0.0
  %v469 = vmax.f32 %v425, 0.0
  %v470 = vmax.f32 %v430, 0.0
  %v471 = vmax.f32 %v433, 0.0
  %v472 = vpack.c.bf16 %v437, %v436
  %v473 = vpack.c.bf16 %v439, %v438
  %v474 = vpack.c.bf16 %v441, %v440
  %v475 = vpack.c.bf16 %v443, %v442
  %v476 = vpack.c.bf16 %v445, %v444
  %v477 = vpack.c.bf16 %v447, %v446
  %v478 = vpack.c.bf16 %v449, %v448
  %v479 = vpack.c.bf16 %v451, %v450
  %v480 = vpack.c.bf16 %v453, %v452
  %v481 = vpack.c.bf16 %v455, %v454
  %v482 = vpack.c.bf16 %v457, %v456
  %v483 = vpack.c.bf16 %v459, %v458
  %v484 = vpack.c.bf16 %v461, %v460
  %v485 = vpack.c.bf16 %v463, %v462
  %v486 = vpack.c.bf16 %v465, %v464
  %v487 = vpack.c.bf16 %v467, %v466
  %v488 = vpack.c.bf16 %v469, %v468
  %v489 = vpack.c.bf16 %v471, %v470
  %v508 = vunpack.c.l.b16 %v472
  %v509 = vunpack.c.h.b16 %v472
  %v510 = vunpack.c.l.b16 %v473
  %v511 = vunpack.c.h.b16 %v473
  %v512 = vunpack.c.l.b16 %v474
  %v513 = vunpack.c.h.b16 %v474
  %v514 = vunpack.c.l.b16 %v475
  %v515 = vunpack.c.h.b16 %v475
  %v516 = vunpack.c.l.b16 %v476
  %v517 = vunpack.c.h.b16 %v476
  %v518 = vunpack.c.l.b16 %v477
  %v519 = vunpack.c.h.b16 %v477
  %v520 = vunpack.c.l.b16 %v478
  %v521 = vunpack.c.h.b16 %v478
  %v522 = vunpack.c.l.b16 %v479
  %v523 = vunpack.c.h.b16 %v479
  %v524 = vunpack.c.l.b16 %v480
  %v525 = vunpack.c.h.b16 %v480
  %v526 = vunpack.c.l.b16 %v481
  %v527 = vunpack.c.h.b16 %v481
  %v528 = vunpack.c.l.b16 %v482
  %v529 = vunpack.c.h.b16 %v482
  %v530 = vunpack.c.l.b16 %v483
  %v531 = vunpack.c.h.b16 %v483
  %v532 = vunpack.c.l.b16 %v484
  %v533 = vunpack.c.h.b16 %v484
  %v534 = vunpack.c.l.b16 %v485
  %v535 = vunpack.c.h.b16 %v485
  %v536 = vunpack.c.l.b16 %v486
  %v537 = vunpack.c.h.b16 %v486
  %v538 = vunpack.c.l.b16 %v487
  %v539 = vunpack.c.h.b16 %v487
  %v540 = vunpack.c.l.b16 %v488
  %v541 = vunpack.c.h.b16 %v488
  %v542 = vunpack.c.l.b16 %v489
  %v543 = vunpack.c.h.b16 %v489
  %v544 = vpack.c.b16 %v508, %v508
  %v545 = vpack.c.b16 %v509, %v509
  %v546 = vpack.c.b16 %v510, %v510
  %v547 = vpack.c.b16 %v511, %v511
  %v548 = vpack.c.b16 %v512, %v512
  %v549 = vpack.c.b16 %v513, %v513
  %v550 = vpack.c.b16 %v514, %v514
  %v551 = vpack.c.b16 %v515, %v515
  %v552 = vpack.c.b16 %v516, %v516
  %v553 = vpack.c.b16 %v517, %v517
  %v554 = vpack.c.b16 %v518, %v518
  %v555 = vpack.c.b16 %v519, %v519
  %v556 = vpack.c.b16 %v520, %v520
  %v557 = vpack.c.b16 %v521, %v521
  %v558 = vpack.c.b16 %v522, %v522
  %v559 = vpack.c.b16 %v523, %v523
  %v560 = vpack.c.b16 %v524, %v524
  %v561 = vpack.c.b16 %v525, %v525
  %v562 = vpack.c.b16 %v526, %v526
  %v563 = vpack.c.b16 %v527, %v527
  %v564 = vpack.c.b16 %v528, %v528
  %v565 = vpack.c.b16 %v529, %v529
  %v566 = vpack.c.b16 %v530, %v530
  %v567 = vpack.c.b16 %v531, %v531
  %v568 = vpack.c.b16 %v532, %v532
  %v569 = vpack.c.b16 %v533, %v533
  %v570 = vpack.c.b16 %v534, %v534
  %v571 = vpack.c.b16 %v535, %v535
  %v572 = vpack.c.b16 %v536, %v536
  %v573 = vpack.c.b16 %v537, %v537
  %v574 = vpack.c.b16 %v538, %v538
  %v575 = vpack.c.b16 %v539, %v539
  %v576 = vpack.c.b16 %v540, %v540
  %v577 = vpack.c.b16 %v541, %v541
  %v578 = vpack.c.b16 %v542, %v542
  %v579 = vpack.c.b16 %v543, %v543
  %vm616 = vcmask 257024
  %617 = vst.msk [vmem:[%s3] sm:$0xf] %vm616, %v544
  %618 = vst.msk [vmem:[%s3 + $0x4] sm:$0xf] %vm616, %v545
  %619 = vst.msk [vmem:[%s3 + $0x8] sm:$0xf] %vm616, %v546
  %620 = vst.msk [vmem:[%s3 + $0xc] sm:$0xf] %vm616, %v547
  %621 = vst.msk [vmem:[%s3 + $0x10] sm:$0xf] %vm616, %v548
  %622 = vst.msk [vmem:[%s3 + $0x14] sm:$0xf] %vm616, %v549
  %623 = vst.msk [vmem:[%s3 + $0x18] sm:$0xf] %vm616, %v550
  %624 = vst.msk [vmem:[%s3 + $0x1c] sm:$0xf] %vm616, %v551
  %625 = vst.msk [vmem:[%s3 + $0x20] sm:$0xf] %vm616, %v552
  %626 = vst.msk [vmem:[%s3 + $0x24] sm:$0xf] %vm616, %v553
  %627 = vst.msk [vmem:[%s3 + $0x28] sm:$0xf] %vm616, %v554
  %628 = vst.msk [vmem:[%s3 + $0x2c] sm:$0xf] %vm616, %v555
  %629 = vst.msk [vmem:[%s3 + $0x30] sm:$0xf] %vm616, %v556
  %630 = vst.msk [vmem:[%s3 + $0x34] sm:$0xf] %vm616, %v557
  %631 = vst.msk [vmem:[%s3 + $0x38] sm:$0xf] %vm616, %v558
  %632 = vst.msk [vmem:[%s3 + $0x3c] sm:$0xf] %vm616, %v559
  %633 = vst.msk [vmem:[%s3 + $0x40] sm:$0xf] %vm616, %v560
  %634 = vst.msk [vmem:[%s3 + $0x44] sm:$0xf] %vm616, %v561
  %635 = vst.msk [vmem:[%s3 + $0x48] sm:$0xf] %vm616, %v562
  %636 = vst.msk [vmem:[%s3 + $0x4c] sm:$0xf] %vm616, %v563
  %637 = vst.msk [vmem:[%s3 + $0x50] sm:$0xf] %vm616, %v564
  %638 = vst.msk [vmem:[%s3 + $0x54] sm:$0xf] %vm616, %v565
  %639 = vst.msk [vmem:[%s3 + $0x58] sm:$0xf] %vm616, %v566
  %640 = vst.msk [vmem:[%s3 + $0x5c] sm:$0xf] %vm616, %v567
  %641 = vst.msk [vmem:[%s3 + $0x60] sm:$0xf] %vm616, %v568
  %642 = vst.msk [vmem:[%s3 + $0x64] sm:$0xf] %vm616, %v569
  %643 = vst.msk [vmem:[%s3 + $0x68] sm:$0xf] %vm616, %v570
  %644 = vst.msk [vmem:[%s3 + $0x6c] sm:$0xf] %vm616, %v571
  %645 = vst.msk [vmem:[%s3 + $0x70] sm:$0xf] %vm616, %v572
  %646 = vst.msk [vmem:[%s3 + $0x74] sm:$0xf] %vm616, %v573
  %647 = vst.msk [vmem:[%s3 + $0x78] sm:$0xf] %vm616, %v574
  %648 = vst.msk [vmem:[%s3 + $0x7c] sm:$0xf] %vm616, %v575
  %649 = vst.msk [vmem:[%s3 + $0x80] sm:$0xf] %vm616, %v576
  %650 = vst.msk [vmem:[%s3 + $0x84] sm:$0xf] %vm616, %v577
  %651 = vst.msk [vmem:[%s3 + $0x88] sm:$0xf] %vm616, %v578
  %652 = vst.msk [vmem:[%s3 + $0x8c] sm:$0xf] %vm616, %v579
  // Predicated region
  $region14: #{dqn3_forward.2} parent=0 // pred_check
    _
  $region15: #{dqn3_forward.2} parent=0 // pred_check_branch
    %654 = sbr.rel (0) target = $region17
  $region16: #{dqn3_forward.2} parent=0 // pred_region
    _
  $region17: #{dqn3_forward.2} parent=0 // pred_fallthru
    _
  // Predicated region
  $region18: #{dqn3_forward.2} parent=0 // pred_check
    _
  $region19: #{dqn3_forward.2} parent=0 // pred_check_branch
    %656 = sbr.rel (0) target = $region21
  $region20: #{dqn3_forward.2} parent=0 // pred_region
    _
  $region21: #{dqn3_forward.2} parent=0 // pred_fallthru
    _

// kernel: dqn3_forward.3
$region0: #{dqn3_forward.3}
  #allocation0 [shape = 'u32[]', space=smem, size = 0x4, offset = 0x4, fixed_abs, tag = 'smem constant byte address 0x4 - core index']
  #allocation1 [shape = 'u32[144,128]{1,0:T(1,128)}', space=vmem, size = 0x12000, scoped, tag = 'internal scratch']
  %s0 = inlined_call_operand.vmem [shape: bf16[2,4608], index: 0, kind: input, shape index: {}]
  %s1 = inlined_call_operand.vmem [shape: f32[2,6], index: 1, kind: input, shape index: {}]
  %s2 = inlined_call_operand.vmem [shape: bf16[4608,64], index: 2, kind: input, shape index: {}]
  %s3 = inlined_call_operand.vmem [shape: f32[1,64], index: 3, kind: input, shape index: {}]
  %s4 = inlined_call_operand.vmem [shape: f32[64,64], index: 4, kind: input, shape index: {}]
  %s5 = inlined_call_operand.vmem [shape: f32[6,64], index: 5, kind: input, shape index: {}]
  %s6 = inlined_call_operand.vmem [shape: f32[1,64], index: 6, kind: input, shape index: {}]
  %s7 = inlined_call_operand.vmem [shape: f32[64,4], index: 7, kind: input, shape index: {}]
  %s8 = inlined_call_operand.vmem [shape: f32[1,4], index: 8, kind: input, shape index: {}]
  %s9 = inlined_call_operand.hbm [shape: f32[2,4], index: 9, kind: output, shape index: {}]
  %s10 = sld [smem:[#allocation0]]
  $region46: #{dqn3_forward.3} parent=0
    _
  %s12 = ssub.s32 1, %s10
  %s13 = scalar_select 0, %s12, %s10
  $region1: #{dqn3_forward.3} parent=0
    #allocation2 [shape = 'u8[1024]{0}', space=vmem, size = 0x400, scoped, tag = 'output window, operand 0, single buffered']
    #allocation3 [shape = 's32[1]{0}', space=sflag, size = 0x4, scoped, tag = 'scoped memory for dqn3_forward.3']
    %14 = vsyncpa [#allocation3], 0
    // Predicated region
    $region2: #{dqn3_forward.3} parent=1 // pred_check
      _
    $region3: #{dqn3_forward.3} parent=1 // pred_check_branch
      %16 = sbr.rel (0) target = $region5
    $region4: #{dqn3_forward.3} parent=1 // pred_region
      _
    $region5: #{dqn3_forward.3} parent=1 // pred_fallthru
      _
    // Predicated region
    $region6: #{dqn3_forward.3} parent=1 // pred_check
      _
    $region7: #{dqn3_forward.3} parent=1 // pred_check_branch
      %18 = sbr.rel (0) target = $region9
    $region8: #{dqn3_forward.3} parent=1 // pred_region
      _
    $region9: #{dqn3_forward.3} parent=1 // pred_fallthru
      _
    // Predicated region
    $region10: #{dqn3_forward.3} parent=1 // pred_check
      _
    $region11: #{dqn3_forward.3} parent=1 // pred_check_branch
      %20 = sbr.rel (0) target = $region13
    $region12: #{dqn3_forward.3} parent=1 // pred_region
      _
    $region13: #{dqn3_forward.3} parent=1 // pred_fallthru
      _
    // Predicated region
    $region14: #{dqn3_forward.3} parent=1 // pred_check
      _
    $region15: #{dqn3_forward.3} parent=1 // pred_check_branch
      %22 = sbr.rel (0) target = $region17
    $region16: #{dqn3_forward.3} parent=1 // pred_region
      _
    $region17: #{dqn3_forward.3} parent=1 // pred_fallthru
      _
    // Predicated region
    $region18: #{dqn3_forward.3} parent=1 // pred_check
      _
    $region19: #{dqn3_forward.3} parent=1 // pred_check_branch
      %24 = sbr.rel (0) target = $region21
    $region20: #{dqn3_forward.3} parent=1 // pred_region
      _
    $region21: #{dqn3_forward.3} parent=1 // pred_fallthru
      _
    // Predicated region
    $region22: #{dqn3_forward.3} parent=1 // pred_check
      _
    $region23: #{dqn3_forward.3} parent=1 // pred_check_branch
      %26 = sbr.rel (0) target = $region25
    $region24: #{dqn3_forward.3} parent=1 // pred_region
      _
    $region25: #{dqn3_forward.3} parent=1 // pred_fallthru
      _
    // Predicated region
    $region26: #{dqn3_forward.3} parent=1 // pred_check
      _
    $region27: #{dqn3_forward.3} parent=1 // pred_check_branch
      %28 = sbr.rel (0) target = $region29
    $region28: #{dqn3_forward.3} parent=1 // pred_region
      _
    $region29: #{dqn3_forward.3} parent=1 // pred_fallthru
      _
    // Predicated region
    $region30: #{dqn3_forward.3} parent=1 // pred_check
      _
    $region31: #{dqn3_forward.3} parent=1 // pred_check_branch
      %30 = sbr.rel (0) target = $region33
    $region32: #{dqn3_forward.3} parent=1 // pred_region
      _
    $region33: #{dqn3_forward.3} parent=1 // pred_fallthru
      _
    // Predicated region
    $region34: #{dqn3_forward.3} parent=1 // pred_check
      _
    $region35: #{dqn3_forward.3} parent=1 // pred_check_branch
      %32 = sbr.rel (0) target = $region37
    $region36: #{dqn3_forward.3} parent=1 // pred_region
      _
    $region37: #{dqn3_forward.3} parent=1 // pred_fallthru
      _
    %v34 = vld [vmem:[%s0] sm:$0xff]
    %v35 = vld [vmem:[%s0 + $0x8] sm:$0xff]
    %v36 = vld [vmem:[%s0 + $0x10] sm:$0xff]
    %v37 = vld [vmem:[%s0 + $0x18] sm:$0xff]
    %v38 = vld [vmem:[%s0 + $0x20] sm:$0xf]
    %v39 = vld [vmem:[%s2] sm:$0xf]
    %v40 = vld [vmem:[%s2 + $0x4] sm:$0xf]
    %v41 = vld [vmem:[%s2 + $0x8] sm:$0xf]
    %v42 = vld [vmem:[%s2 + $0xc] sm:$0xf]
    %v43 = vld [vmem:[%s2 + $0x10] sm:$0xf]
    %v44 = vld [vmem:[%s2 + $0x14] sm:$0xf]
    %v45 = vld [vmem:[%s2 + $0x18] sm:$0xf]
    %v46 = vld [vmem:[%s2 + $0x1c] sm:$0xf]
    %v47 = vld [vmem:[%s2 + $0x20] sm:$0xf]
    %v48 = vld [vmem:[%s2 + $0x24] sm:$0xf]
    %v49 = vld [vmem:[%s2 + $0x28] sm:$0xf]
    %v50 = vld [vmem:[%s2 + $0x2c] sm:$0xf]
    %v51 = vld [vmem:[%s2 + $0x30] sm:$0xf]
    %v52 = vld [vmem:[%s2 + $0x34] sm:$0xf]
    %v53 = vld [vmem:[%s2 + $0x38] sm:$0xf]
    %v54 = vld [vmem:[%s2 + $0x3c] sm:$0xf]
    %v55 = vld [vmem:[%s2 + $0x40] sm:$0xf]
    %v56 = vld [vmem:[%s2 + $0x44] sm:$0xf]
    %v57 = vld [vmem:[%s2 + $0x48] sm:$0xf]
    %v58 = vld [vmem:[%s2 + $0x4c] sm:$0xf]
    %v59 = vld [vmem:[%s2 + $0x50] sm:$0xf]
    %v60 = vld [vmem:[%s2 + $0x54] sm:$0xf]
    %v61 = vld [vmem:[%s2 + $0x58] sm:$0xf]
    %v62 = vld [vmem:[%s2 + $0x5c] sm:$0xf]
    %v63 = vld [vmem:[%s2 + $0x60] sm:$0xf]
    %v64 = vld [vmem:[%s2 + $0x64] sm:$0xf]
    %v65 = vld [vmem:[%s2 + $0x68] sm:$0xf]
    %v66 = vld [vmem:[%s2 + $0x6c] sm:$0xf]
    %v67 = vld [vmem:[%s2 + $0x70] sm:$0xf]
    %v68 = vld [vmem:[%s2 + $0x74] sm:$0xf]
    %v69 = vld [vmem:[%s2 + $0x78] sm:$0xf]
    %v70 = vld [vmem:[%s2 + $0x7c] sm:$0xf]
    %v71 = vld [vmem:[%s2 + $0x80] sm:$0xf]
    %v72 = vld [vmem:[%s2 + $0x84] sm:$0xf]
    %v73 = vld [vmem:[%s2 + $0x88] sm:$0xf]
    %v74 = vld [vmem:[%s2 + $0x8c] sm:$0xf]
    %v75 = vld [vmem:[%s2 + $0x90] sm:$0xf]
    %v76 = vld [vmem:[%s2 + $0x94] sm:$0xf]
    %v77 = vld [vmem:[%s2 + $0x98] sm:$0xf]
    %v78 = vld [vmem:[%s2 + $0x9c] sm:$0xf]
    %v79 = vld [vmem:[%s2 + $0xa0] sm:$0xf]
    %v80 = vld [vmem:[%s2 + $0xa4] sm:$0xf]
    %v81 = vld [vmem:[%s2 + $0xa8] sm:$0xf]
    %v82 = vld [vmem:[%s2 + $0xac] sm:$0xf]
    %v83 = vld [vmem:[%s2 + $0xb0] sm:$0xf]
    %v84 = vld [vmem:[%s2 + $0xb4] sm:$0xf]
    %v85 = vld [vmem:[%s2 + $0xb8] sm:$0xf]
    %v86 = vld [vmem:[%s2 + $0xbc] sm:$0xf]
    %v87 = vld [vmem:[%s2 + $0xc0] sm:$0xf]
    %v88 = vld [vmem:[%s2 + $0xc4] sm:$0xf]
    %v89 = vld [vmem:[%s2 + $0xc8] sm:$0xf]
    %v90 = vld [vmem:[%s2 + $0xcc] sm:$0xf]
    %v91 = vld [vmem:[%s2 + $0xd0] sm:$0xf]
    %v92 = vld [vmem:[%s2 + $0xd4] sm:$0xf]
    %v93 = vld [vmem:[%s2 + $0xd8] sm:$0xf]
    %v94 = vld [vmem:[%s2 + $0xdc] sm:$0xf]
    %v95 = vld [vmem:[%s2 + $0xe0] sm:$0xf]
    %v96 = vld [vmem:[%s2 + $0xe4] sm:$0xf]
    %v97 = vld [vmem:[%s2 + $0xe8] sm:$0xf]
    %v98 = vld [vmem:[%s2 + $0xec] sm:$0xf]
    %v99 = vld [vmem:[%s2 + $0xf0] sm:$0xf]
    %v100 = vld [vmem:[%s2 + $0xf4] sm:$0xf]
    %v101 = vld [vmem:[%s2 + $0xf8] sm:$0xf]
    %v102 = vld [vmem:[%s2 + $0xfc] sm:$0xf]
    %v103 = vld [vmem:[%s2 + $0x100] sm:$0xf]
    %v104 = vld [vmem:[%s2 + $0x104] sm:$0xf]
    %v105 = vld [vmem:[%s2 + $0x108] sm:$0xf]
    %v106 = vld [vmem:[%s2 + $0x10c] sm:$0xf]
    %v107 = vld [vmem:[%s2 + $0x110] sm:$0xf]
    %v108 = vld [vmem:[%s2 + $0x114] sm:$0xf]
    %v109 = vld [vmem:[%s2 + $0x118] sm:$0xf]
    %v110 = vld [vmem:[%s2 + $0x11c] sm:$0xf]
    %v111 = vld [vmem:[%s2 + $0x120] sm:$0xf]
    %v112 = vld [vmem:[%s2 + $0x124] sm:$0xf]
    %v113 = vld [vmem:[%s2 + $0x128] sm:$0xf]
    %v114 = vld [vmem:[%s2 + $0x12c] sm:$0xf]
    %v115 = vld [vmem:[%s2 + $0x130] sm:$0xf]
    %v116 = vld [vmem:[%s2 + $0x134] sm:$0xf]
    %v117 = vld [vmem:[%s2 + $0x138] sm:$0xf]
    %v118 = vld [vmem:[%s2 + $0x13c] sm:$0xf]
    %v119 = vld [vmem:[%s2 + $0x140] sm:$0xf]
    %v120 = vld [vmem:[%s2 + $0x144] sm:$0xf]
    %v121 = vld [vmem:[%s2 + $0x148] sm:$0xf]
    %v122 = vld [vmem:[%s2 + $0x14c] sm:$0xf]
    %v123 = vld [vmem:[%s2 + $0x150] sm:$0xf]
    %v124 = vld [vmem:[%s2 + $0x154] sm:$0xf]
    %v125 = vld [vmem:[%s2 + $0x158] sm:$0xf]
    %v126 = vld [vmem:[%s2 + $0x15c] sm:$0xf]
    %v127 = vld [vmem:[%s2 + $0x160] sm:$0xf]
    %v128 = vld [vmem:[%s2 + $0x164] sm:$0xf]
    %v129 = vld [vmem:[%s2 + $0x168] sm:$0xf]
    %v130 = vld [vmem:[%s2 + $0x16c] sm:$0xf]
    %v131 = vld [vmem:[%s2 + $0x170] sm:$0xf]
    %v132 = vld [vmem:[%s2 + $0x174] sm:$0xf]
    %v133 = vld [vmem:[%s2 + $0x178] sm:$0xf]
    %v134 = vld [vmem:[%s2 + $0x17c] sm:$0xf]
    %v135 = vld [vmem:[%s2 + $0x180] sm:$0xf]
    %v136 = vld [vmem:[%s2 + $0x184] sm:$0xf]
    %v137 = vld [vmem:[%s2 + $0x188] sm:$0xf]
    %v138 = vld [vmem:[%s2 + $0x18c] sm:$0xf]
    %v139 = vld [vmem:[%s2 + $0x190] sm:$0xf]
    %v140 = vld [vmem:[%s2 + $0x194] sm:$0xf]
    %v141 = vld [vmem:[%s2 + $0x198] sm:$0xf]
    %v142 = vld [vmem:[%s2 + $0x19c] sm:$0xf]
    %v143 = vld [vmem:[%s2 + $0x1a0] sm:$0xf]
    %v144 = vld [vmem:[%s2 + $0x1a4] sm:$0xf]
    %v145 = vld [vmem:[%s2 + $0x1a8] sm:$0xf]
    %v146 = vld [vmem:[%s2 + $0x1ac] sm:$0xf]
    %v147 = vld [vmem:[%s2 + $0x1b0] sm:$0xf]
    %v148 = vld [vmem:[%s2 + $0x1b4] sm:$0xf]
    %v149 = vld [vmem:[%s2 + $0x1b8] sm:$0xf]
    %v150 = vld [vmem:[%s2 + $0x1bc] sm:$0xf]
    %v151 = vld [vmem:[%s2 + $0x1c0] sm:$0xf]
    %v152 = vld [vmem:[%s2 + $0x1c4] sm:$0xf]
    %v153 = vld [vmem:[%s2 + $0x1c8] sm:$0xf]
    %v154 = vld [vmem:[%s2 + $0x1cc] sm:$0xf]
    %v155 = vld [vmem:[%s2 + $0x1d0] sm:$0xf]
    %v156 = vld [vmem:[%s2 + $0x1d4] sm:$0xf]
    %v157 = vld [vmem:[%s2 + $0x1d8] sm:$0xf]
    %v158 = vld [vmem:[%s2 + $0x1dc] sm:$0xf]
    %v159 = vld [vmem:[%s2 + $0x1e0] sm:$0xf]
    %v160 = vld [vmem:[%s2 + $0x1e4] sm:$0xf]
    %v161 = vld [vmem:[%s2 + $0x1e8] sm:$0xf]
    %v162 = vld [vmem:[%s2 + $0x1ec] sm:$0xf]
    %v163 = vld [vmem:[%s2 + $0x1f0] sm:$0xf]
    %v164 = vld [vmem:[%s2 + $0x1f4] sm:$0xf]
    %v165 = vld [vmem:[%s2 + $0x1f8] sm:$0xf]
    %v166 = vld [vmem:[%s2 + $0x1fc] sm:$0xf]
    %v167 = vld [vmem:[%s2 + $0x200] sm:$0xf]
    %v168 = vld [vmem:[%s2 + $0x204] sm:$0xf]
    %v169 = vld [vmem:[%s2 + $0x208] sm:$0xf]
    %v170 = vld [vmem:[%s2 + $0x20c] sm:$0xf]
    %v171 = vld [vmem:[%s2 + $0x210] sm:$0xf]
    %v172 = vld [vmem:[%s2 + $0x214] sm:$0xf]
    %v173 = vld [vmem:[%s2 + $0x218] sm:$0xf]
    %v174 = vld [vmem:[%s2 + $0x21c] sm:$0xf]
    %v175 = vld [vmem:[%s2 + $0x220] sm:$0xf]
    %v176 = vld [vmem:[%s2 + $0x224] sm:$0xf]
    %v177 = vld [vmem:[%s2 + $0x228] sm:$0xf]
    %v178 = vld [vmem:[%s2 + $0x22c] sm:$0xf]
    %v179 = vld [vmem:[%s2 + $0x230] sm:$0xf]
    %v180 = vld [vmem:[%s2 + $0x234] sm:$0xf]
    %v181 = vld [vmem:[%s2 + $0x238] sm:$0xf]
    %v182 = vld [vmem:[%s2 + $0x23c] sm:$0xf]
    %v183 = vld [vmem:[%s2 + $0x240] sm:$0xf]
    %v184 = vld [vmem:[%s2 + $0x244] sm:$0xf]
    %v185 = vld [vmem:[%s2 + $0x248] sm:$0xf]
    %v186 = vld [vmem:[%s2 + $0x24c] sm:$0xf]
    %v187 = vld [vmem:[%s2 + $0x250] sm:$0xf]
    %v188 = vld [vmem:[%s2 + $0x254] sm:$0xf]
    %v189 = vld [vmem:[%s2 + $0x258] sm:$0xf]
    %v190 = vld [vmem:[%s2 + $0x25c] sm:$0xf]
    %v191 = vld [vmem:[%s2 + $0x260] sm:$0xf]
    %v192 = vld [vmem:[%s2 + $0x264] sm:$0xf]
    %v193 = vld [vmem:[%s2 + $0x268] sm:$0xf]
    %v194 = vld [vmem:[%s2 + $0x26c] sm:$0xf]
    %v195 = vld [vmem:[%s2 + $0x270] sm:$0xf]
    %v196 = vld [vmem:[%s2 + $0x274] sm:$0xf]
    %v197 = vld [vmem:[%s2 + $0x278] sm:$0xf]
    %v198 = vld [vmem:[%s2 + $0x27c] sm:$0xf]
    %v199 = vld [vmem:[%s2 + $0x280] sm:$0xf]
    %v200 = vld [vmem:[%s2 + $0x284] sm:$0xf]
    %v201 = vld [vmem:[%s2 + $0x288] sm:$0xf]
    %v202 = vld [vmem:[%s2 + $0x28c] sm:$0xf]
    %v203 = vld [vmem:[%s2 + $0x290] sm:$0xf]
    %v204 = vld [vmem:[%s2 + $0x294] sm:$0xf]
    %v205 = vld [vmem:[%s2 + $0x298] sm:$0xf]
    %v206 = vld [vmem:[%s2 + $0x29c] sm:$0xf]
    %v207 = vld [vmem:[%s2 + $0x2a0] sm:$0xf]
    %v208 = vld [vmem:[%s2 + $0x2a4] sm:$0xf]
    %v209 = vld [vmem:[%s2 + $0x2a8] sm:$0xf]
    %v210 = vld [vmem:[%s2 + $0x2ac] sm:$0xf]
    %v211 = vld [vmem:[%s2 + $0x2b0] sm:$0xf]
    %v212 = vld [vmem:[%s2 + $0x2b4] sm:$0xf]
    %v213 = vld [vmem:[%s2 + $0x2b8] sm:$0xf]
    %v214 = vld [vmem:[%s2 + $0x2bc] sm:$0xf]
    %v215 = vld [vmem:[%s2 + $0x2c0] sm:$0xf]
    %v216 = vld [vmem:[%s2 + $0x2c4] sm:$0xf]
    %v217 = vld [vmem:[%s2 + $0x2c8] sm:$0xf]
    %v218 = vld [vmem:[%s2 + $0x2cc] sm:$0xf]
    %v219 = vld [vmem:[%s2 + $0x2d0] sm:$0xf]
    %v220 = vld [vmem:[%s2 + $0x2d4] sm:$0xf]
    %v221 = vld [vmem:[%s2 + $0x2d8] sm:$0xf]
    %v222 = vld [vmem:[%s2 + $0x2dc] sm:$0xf]
    %v223 = vld [vmem:[%s2 + $0x2e0] sm:$0xf]
    %v224 = vld [vmem:[%s2 + $0x2e4] sm:$0xf]
    %v225 = vld [vmem:[%s2 + $0x2e8] sm:$0xf]
    %v226 = vld [vmem:[%s2 + $0x2ec] sm:$0xf]
    %v227 = vld [vmem:[%s2 + $0x2f0] sm:$0xf]
    %v228 = vld [vmem:[%s2 + $0x2f4] sm:$0xf]
    %v229 = vld [vmem:[%s2 + $0x2f8] sm:$0xf]
    %v230 = vld [vmem:[%s2 + $0x2fc] sm:$0xf]
    %v231 = vld [vmem:[%s2 + $0x300] sm:$0xf]
    %v232 = vld [vmem:[%s2 + $0x304] sm:$0xf]
    %v233 = vld [vmem:[%s2 + $0x308] sm:$0xf]
    %v234 = vld [vmem:[%s2 + $0x30c] sm:$0xf]
    %v235 = vld [vmem:[%s2 + $0x310] sm:$0xf]
    %v236 = vld [vmem:[%s2 + $0x314] sm:$0xf]
    %v237 = vld [vmem:[%s2 + $0x318] sm:$0xf]
    %v238 = vld [vmem:[%s2 + $0x31c] sm:$0xf]
    %v239 = vld [vmem:[%s2 + $0x320] sm:$0xf]
    %v240 = vld [vmem:[%s2 + $0x324] sm:$0xf]
    %v241 = vld [vmem:[%s2 + $0x328] sm:$0xf]
    %v242 = vld [vmem:[%s2 + $0x32c] sm:$0xf]
    %v243 = vld [vmem:[%s2 + $0x330] sm:$0xf]
    %v244 = vld [vmem:[%s2 + $0x334] sm:$0xf]
    %v245 = vld [vmem:[%s2 + $0x338] sm:$0xf]
    %v246 = vld [vmem:[%s2 + $0x33c] sm:$0xf]
    %v247 = vld [vmem:[%s2 + $0x340] sm:$0xf]
    %v248 = vld [vmem:[%s2 + $0x344] sm:$0xf]
    %v249 = vld [vmem:[%s2 + $0x348] sm:$0xf]
    %v250 = vld [vmem:[%s2 + $0x34c] sm:$0xf]
    %v251 = vld [vmem:[%s2 + $0x350] sm:$0xf]
    %v252 = vld [vmem:[%s2 + $0x354] sm:$0xf]
    %v253 = vld [vmem:[%s2 + $0x358] sm:$0xf]
    %v254 = vld [vmem:[%s2 + $0x35c] sm:$0xf]
    %v255 = vld [vmem:[%s2 + $0x360] sm:$0xf]
    %v256 = vld [vmem:[%s2 + $0x364] sm:$0xf]
    %v257 = vld [vmem:[%s2 + $0x368] sm:$0xf]
    %v258 = vld [vmem:[%s2 + $0x36c] sm:$0xf]
    %v259 = vld [vmem:[%s2 + $0x370] sm:$0xf]
    %v260 = vld [vmem:[%s2 + $0x374] sm:$0xf]
    %v261 = vld [vmem:[%s2 + $0x378] sm:$0xf]
    %v262 = vld [vmem:[%s2 + $0x37c] sm:$0xf]
    %v263 = vld [vmem:[%s2 + $0x380] sm:$0xf]
    %v264 = vld [vmem:[%s2 + $0x384] sm:$0xf]
    %v265 = vld [vmem:[%s2 + $0x388] sm:$0xf]
    %v266 = vld [vmem:[%s2 + $0x38c] sm:$0xf]
    %v267 = vld [vmem:[%s2 + $0x390] sm:$0xf]
    %v268 = vld [vmem:[%s2 + $0x394] sm:$0xf]
    %v269 = vld [vmem:[%s2 + $0x398] sm:$0xf]
    %v270 = vld [vmem:[%s2 + $0x39c] sm:$0xf]
    %v271 = vld [vmem:[%s2 + $0x3a0] sm:$0xf]
    %v272 = vld [vmem:[%s2 + $0x3a4] sm:$0xf]
    %v273 = vld [vmem:[%s2 + $0x3a8] sm:$0xf]
    %v274 = vld [vmem:[%s2 + $0x3ac] sm:$0xf]
    %v275 = vld [vmem:[%s2 + $0x3b0] sm:$0xf]
    %v276 = vld [vmem:[%s2 + $0x3b4] sm:$0xf]
    %v277 = vld [vmem:[%s2 + $0x3b8] sm:$0xf]
    %v278 = vld [vmem:[%s2 + $0x3bc] sm:$0xf]
    %v279 = vld [vmem:[%s2 + $0x3c0] sm:$0xf]
    %v280 = vld [vmem:[%s2 + $0x3c4] sm:$0xf]
    %v281 = vld [vmem:[%s2 + $0x3c8] sm:$0xf]
    %v282 = vld [vmem:[%s2 + $0x3cc] sm:$0xf]
    %v283 = vld [vmem:[%s2 + $0x3d0] sm:$0xf]
    %v284 = vld [vmem:[%s2 + $0x3d4] sm:$0xf]
    %v285 = vld [vmem:[%s2 + $0x3d8] sm:$0xf]
    %v286 = vld [vmem:[%s2 + $0x3dc] sm:$0xf]
    %v287 = vld [vmem:[%s2 + $0x3e0] sm:$0xf]
    %v288 = vld [vmem:[%s2 + $0x3e4] sm:$0xf]
    %v289 = vld [vmem:[%s2 + $0x3e8] sm:$0xf]
    %v290 = vld [vmem:[%s2 + $0x3ec] sm:$0xf]
    %v291 = vld [vmem:[%s2 + $0x3f0] sm:$0xf]
    %v292 = vld [vmem:[%s2 + $0x3f4] sm:$0xf]
    %v293 = vld [vmem:[%s2 + $0x3f8] sm:$0xf]
    %v294 = vld [vmem:[%s2 + $0x3fc] sm:$0xf]
    %v295 = vld [vmem:[%s2 + $0x400] sm:$0xf]
    %v296 = vld [vmem:[%s2 + $0x404] sm:$0xf]
    %v297 = vld [vmem:[%s2 + $0x408] sm:$0xf]
    %v298 = vld [vmem:[%s2 + $0x40c] sm:$0xf]
    %v299 = vld [vmem:[%s2 + $0x410] sm:$0xf]
    %v300 = vld [vmem:[%s2 + $0x414] sm:$0xf]
    %v301 = vld [vmem:[%s2 + $0x418] sm:$0xf]
    %v302 = vld [vmem:[%s2 + $0x41c] sm:$0xf]
    %v303 = vld [vmem:[%s2 + $0x420] sm:$0xf]
    %v304 = vld [vmem:[%s2 + $0x424] sm:$0xf]
    %v305 = vld [vmem:[%s2 + $0x428] sm:$0xf]
    %v306 = vld [vmem:[%s2 + $0x42c] sm:$0xf]
    %v307 = vld [vmem:[%s2 + $0x430] sm:$0xf]
    %v308 = vld [vmem:[%s2 + $0x434] sm:$0xf]
    %v309 = vld [vmem:[%s2 + $0x438] sm:$0xf]
    %v310 = vld [vmem:[%s2 + $0x43c] sm:$0xf]
    %v311 = vld [vmem:[%s2 + $0x440] sm:$0xf]
    %v312 = vld [vmem:[%s2 + $0x444] sm:$0xf]
    %v313 = vld [vmem:[%s2 + $0x448] sm:$0xf]
    %v314 = vld [vmem:[%s2 + $0x44c] sm:$0xf]
    %v315 = vld [vmem:[%s2 + $0x450] sm:$0xf]
    %v316 = vld [vmem:[%s2 + $0x454] sm:$0xf]
    %v317 = vld [vmem:[%s2 + $0x458] sm:$0xf]
    %v318 = vld [vmem:[%s2 + $0x45c] sm:$0xf]
    %v319 = vld [vmem:[%s2 + $0x460] sm:$0xf]
    %v320 = vld [vmem:[%s2 + $0x464] sm:$0xf]
    %v321 = vld [vmem:[%s2 + $0x468] sm:$0xf]
    %v322 = vld [vmem:[%s2 + $0x46c] sm:$0xf]
    %v323 = vld [vmem:[%s2 + $0x470] sm:$0xf]
    %v324 = vld [vmem:[%s2 + $0x474] sm:$0xf]
    %v325 = vld [vmem:[%s2 + $0x478] sm:$0xf]
    %v326 = vld [vmem:[%s2 + $0x47c] sm:$0xf]
    %v327 = vld [vmem:[%s2 + $0x480] sm:$0xf]
    %v328 = vld [vmem:[%s2 + $0x484] sm:$0xf]
    %v329 = vld [vmem:[%s2 + $0x488] sm:$0xf]
    %v330 = vld [vmem:[%s2 + $0x48c] sm:$0xf]
    %v331 = vld [vmem:[%s2 + $0x490] sm:$0xf]
    %v332 = vld [vmem:[%s2 + $0x494] sm:$0xf]
    %v333 = vld [vmem:[%s2 + $0x498] sm:$0xf]
    %v334 = vld [vmem:[%s2 + $0x49c] sm:$0xf]
    %v335 = vld [vmem:[%s2 + $0x4a0] sm:$0xf]
    %v336 = vld [vmem:[%s2 + $0x4a4] sm:$0xf]
    %v337 = vld [vmem:[%s2 + $0x4a8] sm:$0xf]
    %v338 = vld [vmem:[%s2 + $0x4ac] sm:$0xf]
    %v339 = vld [vmem:[%s2 + $0x4b0] sm:$0xf]
    %v340 = vld [vmem:[%s2 + $0x4b4] sm:$0xf]
    %v341 = vld [vmem:[%s2 + $0x4b8] sm:$0xf]
    %v342 = vld [vmem:[%s2 + $0x4bc] sm:$0xf]
    %v343 = vld [vmem:[%s2 + $0x4c0] sm:$0xf]
    %v344 = vld [vmem:[%s2 + $0x4c4] sm:$0xf]
    %v345 = vld [vmem:[%s2 + $0x4c8] sm:$0xf]
    %v346 = vld [vmem:[%s2 + $0x4cc] sm:$0xf]
    %v347 = vld [vmem:[%s2 + $0x4d0] sm:$0xf]
    %v348 = vld [vmem:[%s2 + $0x4d4] sm:$0xf]
    %v349 = vld [vmem:[%s2 + $0x4d8] sm:$0xf]
    %v350 = vld [vmem:[%s2 + $0x4dc] sm:$0xf]
    %v351 = vld [vmem:[%s2 + $0x4e0] sm:$0xf]
    %v352 = vld [vmem:[%s2 + $0x4e4] sm:$0xf]
    %v353 = vld [vmem:[%s2 + $0x4e8] sm:$0xf]
    %v354 = vld [vmem:[%s2 + $0x4ec] sm:$0xf]
    %v355 = vld [vmem:[%s2 + $0x4f0] sm:$0xf]
    %v356 = vld [vmem:[%s2 + $0x4f4] sm:$0xf]
    %v357 = vld [vmem:[%s2 + $0x4f8] sm:$0xf]
    %v358 = vld [vmem:[%s2 + $0x4fc] sm:$0xf]
    %v359 = vld [vmem:[%s2 + $0x500] sm:$0xf]
    %v360 = vld [vmem:[%s2 + $0x504] sm:$0xf]
    %v361 = vld [vmem:[%s2 + $0x508] sm:$0xf]
    %v362 = vld [vmem:[%s2 + $0x50c] sm:$0xf]
    %v363 = vld [vmem:[%s2 + $0x510] sm:$0xf]
    %v364 = vld [vmem:[%s2 + $0x514] sm:$0xf]
    %v365 = vld [vmem:[%s2 + $0x518] sm:$0xf]
    %v366 = vld [vmem:[%s2 + $0x51c] sm:$0xf]
    %v367 = vld [vmem:[%s2 + $0x520] sm:$0xf]
    %v368 = vld [vmem:[%s2 + $0x524] sm:$0xf]
    %v369 = vld [vmem:[%s2 + $0x528] sm:$0xf]
    %v370 = vld [vmem:[%s2 + $0x52c] sm:$0xf]
    %v371 = vld [vmem:[%s2 + $0x530] sm:$0xf]
    %v372 = vld [vmem:[%s2 + $0x534] sm:$0xf]
    %v373 = vld [vmem:[%s2 + $0x538] sm:$0xf]
    %v374 = vld [vmem:[%s2 + $0x53c] sm:$0xf]
    %v375 = vld [vmem:[%s2 + $0x540] sm:$0xf]
    %v376 = vld [vmem:[%s2 + $0x544] sm:$0xf]
    %v377 = vld [vmem:[%s2 + $0x548] sm:$0xf]
    %v378 = vld [vmem:[%s2 + $0x54c] sm:$0xf]
    %v379 = vld [vmem:[%s2 + $0x550] sm:$0xf]
    %v380 = vld [vmem:[%s2 + $0x554] sm:$0xf]
    %v381 = vld [vmem:[%s2 + $0x558] sm:$0xf]
    %v382 = vld [vmem:[%s2 + $0x55c] sm:$0xf]
    %v383 = vld [vmem:[%s2 + $0x560] sm:$0xf]
    %v384 = vld [vmem:[%s2 + $0x564] sm:$0xf]
    %v385 = vld [vmem:[%s2 + $0x568] sm:$0xf]
    %v386 = vld [vmem:[%s2 + $0x56c] sm:$0xf]
    %v387 = vld [vmem:[%s2 + $0x570] sm:$0xf]
    %v388 = vld [vmem:[%s2 + $0x574] sm:$0xf]
    %v389 = vld [vmem:[%s2 + $0x578] sm:$0xf]
    %v390 = vld [vmem:[%s2 + $0x57c] sm:$0xf]
    %v391 = vld [vmem:[%s2 + $0x580] sm:$0xf]
    %v392 = vld [vmem:[%s2 + $0x584] sm:$0xf]
    %v393 = vld [vmem:[%s2 + $0x588] sm:$0xf]
    %v394 = vld [vmem:[%s2 + $0x58c] sm:$0xf]
    %v395 = vld [vmem:[%s2 + $0x590] sm:$0xf]
    %v396 = vld [vmem:[%s2 + $0x594] sm:$0xf]
    %v397 = vld [vmem:[%s2 + $0x598] sm:$0xf]
    %v398 = vld [vmem:[%s2 + $0x59c] sm:$0xf]
    %v399 = vld [vmem:[%s2 + $0x5a0] sm:$0xf]
    %v400 = vld [vmem:[%s2 + $0x5a4] sm:$0xf]
    %v401 = vld [vmem:[%s2 + $0x5a8] sm:$0xf]
    %v402 = vld [vmem:[%s2 + $0x5ac] sm:$0xf]
    %v403 = vld [vmem:[%s2 + $0x5b0] sm:$0xf]
    %v404 = vld [vmem:[%s2 + $0x5b4] sm:$0xf]
    %v405 = vld [vmem:[%s2 + $0x5b8] sm:$0xf]
    %v406 = vld [vmem:[%s2 + $0x5bc] sm:$0xf]
    %v407 = vld [vmem:[%s2 + $0x5c0] sm:$0xf]
    %v408 = vld [vmem:[%s2 + $0x5c4] sm:$0xf]
    %v409 = vld [vmem:[%s2 + $0x5c8] sm:$0xf]
    %v410 = vld [vmem:[%s2 + $0x5cc] sm:$0xf]
    %v411 = vld [vmem:[%s2 + $0x5d0] sm:$0xf]
    %v412 = vld [vmem:[%s2 + $0x5d4] sm:$0xf]
    %v413 = vld [vmem:[%s2 + $0x5d8] sm:$0xf]
    %v414 = vld [vmem:[%s2 + $0x5dc] sm:$0xf]
    %v415 = vld [vmem:[%s2 + $0x5e0] sm:$0xf]
    %v416 = vld [vmem:[%s2 + $0x5e4] sm:$0xf]
    %v417 = vld [vmem:[%s2 + $0x5e8] sm:$0xf]
    %v418 = vld [vmem:[%s2 + $0x5ec] sm:$0xf]
    %v419 = vld [vmem:[%s2 + $0x5f0] sm:$0xf]
    %v420 = vld [vmem:[%s2 + $0x5f4] sm:$0xf]
    %v421 = vld [vmem:[%s2 + $0x5f8] sm:$0xf]
    %v422 = vld [vmem:[%s2 + $0x5fc] sm:$0xf]
    %v423 = vld [vmem:[%s2 + $0x600] sm:$0xf]
    %v424 = vld [vmem:[%s2 + $0x604] sm:$0xf]
    %v425 = vld [vmem:[%s2 + $0x608] sm:$0xf]
    %v426 = vld [vmem:[%s2 + $0x60c] sm:$0xf]
    %v427 = vld [vmem:[%s2 + $0x610] sm:$0xf]
    %v428 = vld [vmem:[%s2 + $0x614] sm:$0xf]
    %v429 = vld [vmem:[%s2 + $0x618] sm:$0xf]
    %v430 = vld [vmem:[%s2 + $0x61c] sm:$0xf]
    %v431 = vld [vmem:[%s2 + $0x620] sm:$0xf]
    %v432 = vld [vmem:[%s2 + $0x624] sm:$0xf]
    %v433 = vld [vmem:[%s2 + $0x628] sm:$0xf]
    %v434 = vld [vmem:[%s2 + $0x62c] sm:$0xf]
    %v435 = vld [vmem:[%s2 + $0x630] sm:$0xf]
    %v436 = vld [vmem:[%s2 + $0x634] sm:$0xf]
    %v437 = vld [vmem:[%s2 + $0x638] sm:$0xf]
    %v438 = vld [vmem:[%s2 + $0x63c] sm:$0xf]
    %v439 = vld [vmem:[%s2 + $0x640] sm:$0xf]
    %v440 = vld [vmem:[%s2 + $0x644] sm:$0xf]
    %v441 = vld [vmem:[%s2 + $0x648] sm:$0xf]
    %v442 = vld [vmem:[%s2 + $0x64c] sm:$0xf]
    %v443 = vld [vmem:[%s2 + $0x650] sm:$0xf]
    %v444 = vld [vmem:[%s2 + $0x654] sm:$0xf]
    %v445 = vld [vmem:[%s2 + $0x658] sm:$0xf]
    %v446 = vld [vmem:[%s2 + $0x65c] sm:$0xf]
    %v447 = vld [vmem:[%s2 + $0x660] sm:$0xf]
    %v448 = vld [vmem:[%s2 + $0x664] sm:$0xf]
    %v449 = vld [vmem:[%s2 + $0x668] sm:$0xf]
    %v450 = vld [vmem:[%s2 + $0x66c] sm:$0xf]
    %v451 = vld [vmem:[%s2 + $0x670] sm:$0xf]
    %v452 = vld [vmem:[%s2 + $0x674] sm:$0xf]
    %v453 = vld [vmem:[%s2 + $0x678] sm:$0xf]
    %v454 = vld [vmem:[%s2 + $0x67c] sm:$0xf]
    %v455 = vld [vmem:[%s2 + $0x680] sm:$0xf]
    %v456 = vld [vmem:[%s2 + $0x684] sm:$0xf]
    %v457 = vld [vmem:[%s2 + $0x688] sm:$0xf]
    %v458 = vld [vmem:[%s2 + $0x68c] sm:$0xf]
    %v459 = vld [vmem:[%s2 + $0x690] sm:$0xf]
    %v460 = vld [vmem:[%s2 + $0x694] sm:$0xf]
    %v461 = vld [vmem:[%s2 + $0x698] sm:$0xf]
    %v462 = vld [vmem:[%s2 + $0x69c] sm:$0xf]
    %v463 = vld [vmem:[%s2 + $0x6a0] sm:$0xf]
    %v464 = vld [vmem:[%s2 + $0x6a4] sm:$0xf]
    %v465 = vld [vmem:[%s2 + $0x6a8] sm:$0xf]
    %v466 = vld [vmem:[%s2 + $0x6ac] sm:$0xf]
    %v467 = vld [vmem:[%s2 + $0x6b0] sm:$0xf]
    %v468 = vld [vmem:[%s2 + $0x6b4] sm:$0xf]
    %v469 = vld [vmem:[%s2 + $0x6b8] sm:$0xf]
    %v470 = vld [vmem:[%s2 + $0x6bc] sm:$0xf]
    %v471 = vld [vmem:[%s2 + $0x6c0] sm:$0xf]
    %v472 = vld [vmem:[%s2 + $0x6c4] sm:$0xf]
    %v473 = vld [vmem:[%s2 + $0x6c8] sm:$0xf]
    %v474 = vld [vmem:[%s2 + $0x6cc] sm:$0xf]
    %v475 = vld [vmem:[%s2 + $0x6d0] sm:$0xf]
    %v476 = vld [vmem:[%s2 + $0x6d4] sm:$0xf]
    %v477 = vld [vmem:[%s2 + $0x6d8] sm:$0xf]
    %v478 = vld [vmem:[%s2 + $0x6dc] sm:$0xf]
    %v479 = vld [vmem:[%s2 + $0x6e0] sm:$0xf]
    %v480 = vld [vmem:[%s2 + $0x6e4] sm:$0xf]
    %v481 = vld [vmem:[%s2 + $0x6e8] sm:$0xf]
    %v482 = vld [vmem:[%s2 + $0x6ec] sm:$0xf]
    %v483 = vld [vmem:[%s2 + $0x6f0] sm:$0xf]
    %v484 = vld [vmem:[%s2 + $0x6f4] sm:$0xf]
    %v485 = vld [vmem:[%s2 + $0x6f8] sm:$0xf]
    %v486 = vld [vmem:[%s2 + $0x6fc] sm:$0xf]
    %v487 = vld [vmem:[%s2 + $0x700] sm:$0xf]
    %v488 = vld [vmem:[%s2 + $0x704] sm:$0xf]
    %v489 = vld [vmem:[%s2 + $0x708] sm:$0xf]
    %v490 = vld [vmem:[%s2 + $0x70c] sm:$0xf]
    %v491 = vld [vmem:[%s2 + $0x710] sm:$0xf]
    %v492 = vld [vmem:[%s2 + $0x714] sm:$0xf]
    %v493 = vld [vmem:[%s2 + $0x718] sm:$0xf]
    %v494 = vld [vmem:[%s2 + $0x71c] sm:$0xf]
    %v495 = vld [vmem:[%s2 + $0x720] sm:$0xf]
    %v496 = vld [vmem:[%s2 + $0x724] sm:$0xf]
    %v497 = vld [vmem:[%s2 + $0x728] sm:$0xf]
    %v498 = vld [vmem:[%s2 + $0x72c] sm:$0xf]
    %v499 = vld [vmem:[%s2 + $0x730] sm:$0xf]
    %v500 = vld [vmem:[%s2 + $0x734] sm:$0xf]
    %v501 = vld [vmem:[%s2 + $0x738] sm:$0xf]
    %v502 = vld [vmem:[%s2 + $0x73c] sm:$0xf]
    %v503 = vld [vmem:[%s2 + $0x740] sm:$0xf]
    %v504 = vld [vmem:[%s2 + $0x744] sm:$0xf]
    %v505 = vld [vmem:[%s2 + $0x748] sm:$0xf]
    %v506 = vld [vmem:[%s2 + $0x74c] sm:$0xf]
    %v507 = vld [vmem:[%s2 + $0x750] sm:$0xf]
    %v508 = vld [vmem:[%s2 + $0x754] sm:$0xf]
    %v509 = vld [vmem:[%s2 + $0x758] sm:$0xf]
    %v510 = vld [vmem:[%s2 + $0x75c] sm:$0xf]
    %v511 = vld [vmem:[%s2 + $0x760] sm:$0xf]
    %v512 = vld [vmem:[%s2 + $0x764] sm:$0xf]
    %v513 = vld [vmem:[%s2 + $0x768] sm:$0xf]
    %v514 = vld [vmem:[%s2 + $0x76c] sm:$0xf]
    %v515 = vld [vmem:[%s2 + $0x770] sm:$0xf]
    %v516 = vld [vmem:[%s2 + $0x774] sm:$0xf]
    %v517 = vld [vmem:[%s2 + $0x778] sm:$0xf]
    %v518 = vld [vmem:[%s2 + $0x77c] sm:$0xf]
    %v519 = vld [vmem:[%s2 + $0x780] sm:$0xf]
    %v520 = vld [vmem:[%s2 + $0x784] sm:$0xf]
    %v521 = vld [vmem:[%s2 + $0x788] sm:$0xf]
    %v522 = vld [vmem:[%s2 + $0x78c] sm:$0xf]
    %v523 = vld [vmem:[%s2 + $0x790] sm:$0xf]
    %v524 = vld [vmem:[%s2 + $0x794] sm:$0xf]
    %v525 = vld [vmem:[%s2 + $0x798] sm:$0xf]
    %v526 = vld [vmem:[%s2 + $0x79c] sm:$0xf]
    %v527 = vld [vmem:[%s2 + $0x7a0] sm:$0xf]
    %v528 = vld [vmem:[%s2 + $0x7a4] sm:$0xf]
    %v529 = vld [vmem:[%s2 + $0x7a8] sm:$0xf]
    %v530 = vld [vmem:[%s2 + $0x7ac] sm:$0xf]
    %v531 = vld [vmem:[%s2 + $0x7b0] sm:$0xf]
    %v532 = vld [vmem:[%s2 + $0x7b4] sm:$0xf]
    %v533 = vld [vmem:[%s2 + $0x7b8] sm:$0xf]
    %v534 = vld [vmem:[%s2 + $0x7bc] sm:$0xf]
    %v535 = vld [vmem:[%s2 + $0x7c0] sm:$0xf]
    %v536 = vld [vmem:[%s2 + $0x7c4] sm:$0xf]
    %v537 = vld [vmem:[%s2 + $0x7c8] sm:$0xf]
    %v538 = vld [vmem:[%s2 + $0x7cc] sm:$0xf]
    %v539 = vld [vmem:[%s2 + $0x7d0] sm:$0xf]
    %v540 = vld [vmem:[%s2 + $0x7d4] sm:$0xf]
    %v541 = vld [vmem:[%s2 + $0x7d8] sm:$0xf]
    %v542 = vld [vmem:[%s2 + $0x7dc] sm:$0xf]
    %v543 = vld [vmem:[%s2 + $0x7e0] sm:$0xf]
    %v544 = vld [vmem:[%s2 + $0x7e4] sm:$0xf]
    %v545 = vld [vmem:[%s2 + $0x7e8] sm:$0xf]
    %v546 = vld [vmem:[%s2 + $0x7ec] sm:$0xf]
    %v547 = vld [vmem:[%s2 + $0x7f0] sm:$0xf]
    %v548 = vld [vmem:[%s2 + $0x7f4] sm:$0xf]
    %v549 = vld [vmem:[%s2 + $0x7f8] sm:$0xf]
    %v550 = vld [vmem:[%s2 + $0x7fc] sm:$0xf]
    %v551 = vld [vmem:[%s2 + $0x800] sm:$0xf]
    %v552 = vld [vmem:[%s2 + $0x804] sm:$0xf]
    %v553 = vld [vmem:[%s2 + $0x808] sm:$0xf]
    %v554 = vld [vmem:[%s2 + $0x80c] sm:$0xf]
    %v555 = vld [vmem:[%s2 + $0x810] sm:$0xf]
    %v556 = vld [vmem:[%s2 + $0x814] sm:$0xf]
    %v557 = vld [vmem:[%s2 + $0x818] sm:$0xf]
    %v558 = vld [vmem:[%s2 + $0x81c] sm:$0xf]
    %v559 = vld [vmem:[%s2 + $0x820] sm:$0xf]
    %v560 = vld [vmem:[%s2 + $0x824] sm:$0xf]
    %v561 = vld [vmem:[%s2 + $0x828] sm:$0xf]
    %v562 = vld [vmem:[%s2 + $0x82c] sm:$0xf]
    %v563 = vld [vmem:[%s2 + $0x830] sm:$0xf]
    %v564 = vld [vmem:[%s2 + $0x834] sm:$0xf]
    %v565 = vld [vmem:[%s2 + $0x838] sm:$0xf]
    %v566 = vld [vmem:[%s2 + $0x83c] sm:$0xf]
    %v567 = vld [vmem:[%s2 + $0x840] sm:$0xf]
    %v568 = vld [vmem:[%s2 + $0x844] sm:$0xf]
    %v569 = vld [vmem:[%s2 + $0x848] sm:$0xf]
    %v570 = vld [vmem:[%s2 + $0x84c] sm:$0xf]
    %v571 = vld [vmem:[%s2 + $0x850] sm:$0xf]
    %v572 = vld [vmem:[%s2 + $0x854] sm:$0xf]
    %v573 = vld [vmem:[%s2 + $0x858] sm:$0xf]
    %v574 = vld [vmem:[%s2 + $0x85c] sm:$0xf]
    %v575 = vld [vmem:[%s2 + $0x860] sm:$0xf]
    %v576 = vld [vmem:[%s2 + $0x864] sm:$0xf]
    %v577 = vld [vmem:[%s2 + $0x868] sm:$0xf]
    %v578 = vld [vmem:[%s2 + $0x86c] sm:$0xf]
    %v579 = vld [vmem:[%s2 + $0x870] sm:$0xf]
    %v580 = vld [vmem:[%s2 + $0x874] sm:$0xf]
    %v581 = vld [vmem:[%s2 + $0x878] sm:$0xf]
    %v582 = vld [vmem:[%s2 + $0x87c] sm:$0xf]
    %v583 = vld [vmem:[%s2 + $0x880] sm:$0xf]
    %v584 = vld [vmem:[%s2 + $0x884] sm:$0xf]
    %v585 = vld [vmem:[%s2 + $0x888] sm:$0xf]
    %v586 = vld [vmem:[%s2 + $0x88c] sm:$0xf]
    %v587 = vld [vmem:[%s2 + $0x890] sm:$0xf]
    %v588 = vld [vmem:[%s2 + $0x894] sm:$0xf]
    %v589 = vld [vmem:[%s2 + $0x898] sm:$0xf]
    %v590 = vld [vmem:[%s2 + $0x89c] sm:$0xf]
    %v591 = vld [vmem:[%s2 + $0x8a0] sm:$0xf]
    %v592 = vld [vmem:[%s2 + $0x8a4] sm:$0xf]
    %v593 = vld [vmem:[%s2 + $0x8a8] sm:$0xf]
    %v594 = vld [vmem:[%s2 + $0x8ac] sm:$0xf]
    %v595 = vld [vmem:[%s2 + $0x8b0] sm:$0xf]
    %v596 = vld [vmem:[%s2 + $0x8b4] sm:$0xf]
    %v597 = vld [vmem:[%s2 + $0x8b8] sm:$0xf]
    %v598 = vld [vmem:[%s2 + $0x8bc] sm:$0xf]
    %v599 = vld [vmem:[%s2 + $0x8c0] sm:$0xf]
    %v600 = vld [vmem:[%s2 + $0x8c4] sm:$0xf]
    %v601 = vld [vmem:[%s2 + $0x8c8] sm:$0xf]
    %v602 = vld [vmem:[%s2 + $0x8cc] sm:$0xf]
    %v603 = vld [vmem:[%s2 + $0x8d0] sm:$0xf]
    %v604 = vld [vmem:[%s2 + $0x8d4] sm:$0xf]
    %v605 = vld [vmem:[%s2 + $0x8d8] sm:$0xf]
    %v606 = vld [vmem:[%s2 + $0x8dc] sm:$0xf]
    %v607 = vld [vmem:[%s2 + $0x8e0] sm:$0xf]
    %v608 = vld [vmem:[%s2 + $0x8e4] sm:$0xf]
    %v609 = vld [vmem:[%s2 + $0x8e8] sm:$0xf]
    %v610 = vld [vmem:[%s2 + $0x8ec] sm:$0xf]
    %v611 = vld [vmem:[%s2 + $0x8f0] sm:$0xf]
    %v612 = vld [vmem:[%s2 + $0x8f4] sm:$0xf]
    %v613 = vld [vmem:[%s2 + $0x8f8] sm:$0xf]
    %v614 = vld [vmem:[%s2 + $0x8fc] sm:$0xf]
    %v615 = vld [vmem:[%s3] sm:$0x1]
    %v617 = vlaneseq
    %v618 = vshrl.u32 %v617, 7
    %v619 = vsub.s32 0, %v618
    %v620 = vrot.slane %v615, %v619
    %v627 = vcombine.high %v34, %v34
    %v629 = vunpack.c.l.s4 1966171168
    %v630 = vunpack.c.0.s8 %v629
    %v631 = vlaneseq
    %v632 = vshrl.u32 %v631, 7
    %v633 = vsub.s32 %v630, %v632
    %v634 = vrot.slane %v34, %v633
    %v636 = vunpack.c.l.s4 1966171168
    %v637 = vunpack.c.0.s8 %v636
    %v638 = vlaneseq
    %v639 = vshrl.u32 %v638, 7
    %v640 = vsub.s32 %v637, %v639
    %v641 = vrot.slane %v627, %v640
    %v642 = vcombine.high %v634, %v634
    %v643 = vcombine.high %v641, %v641
    %v645 = vunpack.c.l.s4 1966171168
    %v646 = vunpack.c.0.s8 %v645
    %v647 = vlaneseq
    %v648 = vshrl.u32 %v647, 7
    %v649 = vsub.s32 %v646, %v648
    %v650 = vrot.slane %v634, %v649
    %v652 = vunpack.c.l.s4 1966171168
    %v653 = vunpack.c.0.s8 %v652
    %v654 = vlaneseq
    %v655 = vshrl.u32 %v654, 7
    %v656 = vsub.s32 %v653, %v655
    %v657 = vrot.slane %v641, %v656
    %v659 = vunpack.c.l.s4 1966171168
    %v660 = vunpack.c.0.s8 %v659
    %v661 = vlaneseq
    %v662 = vshrl.u32 %v661, 7
    %v663 = vsub.s32 %v660, %v662
    %v664 = vrot.slane %v642, %v663
    %v666 = vunpack.c.l.s4 1966171168
    %v667 = vunpack.c.0.s8 %v666
    %v668 = vlaneseq
    %v669 = vshrl.u32 %v668, 7
    %v670 = vsub.s32 %v667, %v669
    %v671 = vrot.slane %v643, %v670
    %v672 = vcombine.high %v650, %v650
    %v673 = vcombine.high %v657, %v657
    %v674 = vcombine.high %v664, %v664
    %v675 = vcombine.high %v671, %v671
    %v676 = vcombine.high %v35, %v35
    %v678 = vunpack.c.l.s4 1966171168
    %v679 = vunpack.c.0.s8 %v678
    %v680 = vlaneseq
    %v681 = vshrl.u32 %v680, 7
    %v682 = vsub.s32 %v679, %v681
    %v683 = vrot.slane %v35, %v682
    %v685 = vunpack.c.l.s4 1966171168
    %v686 = vunpack.c.0.s8 %v685
    %v687 = vlaneseq
    %v688 = vshrl.u32 %v687, 7
    %v689 = vsub.s32 %v686, %v688
    %v690 = vrot.slane %v676, %v689
    %v691 = vcombine.high %v683, %v683
    %v692 = vcombine.high %v690, %v690
    %v694 = vunpack.c.l.s4 1966171168
    %v695 = vunpack.c.0.s8 %v694
    %v696 = vlaneseq
    %v697 = vshrl.u32 %v696, 7
    %v698 = vsub.s32 %v695, %v697
    %v699 = vrot.slane %v683, %v698
    %v701 = vunpack.c.l.s4 1966171168
    %v702 = vunpack.c.0.s8 %v701
    %v703 = vlaneseq
    %v704 = vshrl.u32 %v703, 7
    %v705 = vsub.s32 %v702, %v704
    %v706 = vrot.slane %v690, %v705
    %v708 = vunpack.c.l.s4 1966171168
    %v709 = vunpack.c.0.s8 %v708
    %v710 = vlaneseq
    %v711 = vshrl.u32 %v710, 7
    %v712 = vsub.s32 %v709, %v711
    %v713 = vrot.slane %v691, %v712
    %v715 = vunpack.c.l.s4 1966171168
    %v716 = vunpack.c.0.s8 %v715
    %v717 = vlaneseq
    %v718 = vshrl.u32 %v717, 7
    %v719 = vsub.s32 %v716, %v718
    %v720 = vrot.slane %v692, %v719
    %v721 = vcombine.high %v699, %v699
    %v722 = vcombine.high %v706, %v706
    %v723 = vcombine.high %v713, %v713
    %v724 = vcombine.high %v720, %v720
    %v725 = vcombine.high %v36, %v36
    %v727 = vunpack.c.l.s4 1966171168
    %v728 = vunpack.c.0.s8 %v727
    %v729 = vlaneseq
    %v730 = vshrl.u32 %v729, 7
    %v731 = vsub.s32 %v728, %v730
    %v732 = vrot.slane %v36, %v731
    %v734 = vunpack.c.l.s4 1966171168
    %v735 = vunpack.c.0.s8 %v734
    %v736 = vlaneseq
    %v737 = vshrl.u32 %v736, 7
    %v738 = vsub.s32 %v735, %v737
    %v739 = vrot.slane %v725, %v738
    %v740 = vcombine.high %v732, %v732
    %v741 = vcombine.high %v739, %v739
    %v743 = vunpack.c.l.s4 1966171168
    %v744 = vunpack.c.0.s8 %v743
    %v745 = vlaneseq
    %v746 = vshrl.u32 %v745, 7
    %v747 = vsub.s32 %v744, %v746
    %v748 = vrot.slane %v732, %v747
    %v750 = vunpack.c.l.s4 1966171168
    %v751 = vunpack.c.0.s8 %v750
    %v752 = vlaneseq
    %v753 = vshrl.u32 %v752, 7
    %v754 = vsub.s32 %v751, %v753
    %v755 = vrot.slane %v739, %v754
    %v757 = vunpack.c.l.s4 1966171168
    %v758 = vunpack.c.0.s8 %v757
    %v759 = vlaneseq
    %v760 = vshrl.u32 %v759, 7
    %v761 = vsub.s32 %v758, %v760
    %v762 = vrot.slane %v740, %v761
    %v764 = vunpack.c.l.s4 1966171168
    %v765 = vunpack.c.0.s8 %v764
    %v766 = vlaneseq
    %v767 = vshrl.u32 %v766, 7
    %v768 = vsub.s32 %v765, %v767
    %v769 = vrot.slane %v741, %v768
    %v770 = vcombine.high %v748, %v748
    %v771 = vcombine.high %v755, %v755
    %v772 = vcombine.high %v762, %v762
    %v773 = vcombine.high %v769, %v769
    %v774 = vcombine.high %v37, %v37
    %v776 = vunpack.c.l.s4 1966171168
    %v777 = vunpack.c.0.s8 %v776
    %v778 = vlaneseq
    %v779 = vshrl.u32 %v778, 7
    %v780 = vsub.s32 %v777, %v779
    %v781 = vrot.slane %v37, %v780
    %v783 = vunpack.c.l.s4 1966171168
    %v784 = vunpack.c.0.s8 %v783
    %v785 = vlaneseq
    %v786 = vshrl.u32 %v785, 7
    %v787 = vsub.s32 %v784, %v786
    %v788 = vrot.slane %v774, %v787
    %v789 = vcombine.high %v781, %v781
    %v790 = vcombine.high %v788, %v788
    %v792 = vunpack.c.l.s4 1966171168
    %v793 = vunpack.c.0.s8 %v792
    %v794 = vlaneseq
    %v795 = vshrl.u32 %v794, 7
    %v796 = vsub.s32 %v793, %v795
    %v797 = vrot.slane %v781, %v796
    %v799 = vunpack.c.l.s4 1966171168
    %v800 = vunpack.c.0.s8 %v799
    %v801 = vlaneseq
    %v802 = vshrl.u32 %v801, 7
    %v803 = vsub.s32 %v800, %v802
    %v804 = vrot.slane %v788, %v803
    %v806 = vunpack.c.l.s4 1966171168
    %v807 = vunpack.c.0.s8 %v806
    %v808 = vlaneseq
    %v809 = vshrl.u32 %v808, 7
    %v810 = vsub.s32 %v807, %v809
    %v811 = vrot.slane %v789, %v810
    %v813 = vunpack.c.l.s4 1966171168
    %v814 = vunpack.c.0.s8 %v813
    %v815 = vlaneseq
    %v816 = vshrl.u32 %v815, 7
    %v817 = vsub.s32 %v814, %v816
    %v818 = vrot.slane %v790, %v817
    %v819 = vcombine.high %v797, %v797
    %v820 = vcombine.high %v804, %v804
    %v821 = vcombine.high %v811, %v811
    %v822 = vcombine.high %v818, %v818
    %v824 = vunpack.c.l.s4 1966171168
    %v825 = vunpack.c.0.s8 %v824
    %v826 = vlaneseq
    %v827 = vshrl.u32 %v826, 7
    %v828 = vsub.s32 %v825, %v827
    %v829 = vrot.slane %v38, %v828
    %v830 = vcombine.high %v829, %v829
    %v832 = vunpack.c.l.s4 1966171168
    %v833 = vunpack.c.0.s8 %v832
    %v834 = vlaneseq
    %v835 = vshrl.u32 %v834, 7
    %v836 = vsub.s32 %v833, %v835
    %v837 = vrot.slane %v829, %v836
    %v839 = vunpack.c.l.s4 1966171168
    %v840 = vunpack.c.0.s8 %v839
    %v841 = vlaneseq
    %v842 = vshrl.u32 %v841, 7
    %v843 = vsub.s32 %v840, %v842
    %v844 = vrot.slane %v830, %v843
    %v845 = vcombine.high %v837, %v837
    %v846 = vcombine.high %v844, %v844
    %v1459 = vunpack.c.l.b16 %v39
    %v1460 = vunpack.c.l.b16 %v40
    %v1461 = vunpack.c.l.b16 %v41
    %v1462 = vunpack.c.l.b16 %v42
    %v1463 = vunpack.c.l.b16 %v43
    %v1464 = vunpack.c.l.b16 %v44
    %v1465 = vunpack.c.l.b16 %v45
    %v1466 = vunpack.c.l.b16 %v46
    %v1467 = vunpack.c.l.b16 %v47
    %v1468 = vunpack.c.l.b16 %v48
    %v1469 = vunpack.c.l.b16 %v49
    %v1470 = vunpack.c.l.b16 %v50
    %v1471 = vunpack.c.l.b16 %v51
    %v1472 = vunpack.c.l.b16 %v52
    %v1473 = vunpack.c.l.b16 %v53
    %v1474 = vunpack.c.l.b16 %v54
    %v1475 = vunpack.c.l.b16 %v55
    %v1476 = vunpack.c.l.b16 %v56
    %v1477 = vunpack.c.l.b16 %v57
    %v1478 = vunpack.c.l.b16 %v58
    %v1479 = vunpack.c.l.b16 %v59
    %v1480 = vunpack.c.l.b16 %v60
    %v1481 = vunpack.c.l.b16 %v61
    %v1482 = vunpack.c.l.b16 %v62
    %v1483 = vunpack.c.l.b16 %v63
    %v1484 = vunpack.c.l.b16 %v64
    %v1485 = vunpack.c.l.b16 %v65
    %v1486 = vunpack.c.l.b16 %v66
    %v1487 = vunpack.c.l.b16 %v67
    %v1488 = vunpack.c.l.b16 %v68
    %v1489 = vunpack.c.l.b16 %v69
    %v1490 = vunpack.c.l.b16 %v70
    %v1491 = vunpack.c.l.b16 %v71
    %v1492 = vunpack.c.l.b16 %v72
    %v1493 = vunpack.c.l.b16 %v73
    %v1494 = vunpack.c.l.b16 %v74
    %v1495 = vunpack.c.l.b16 %v75
    %v1496 = vunpack.c.l.b16 %v76
    %v1497 = vunpack.c.l.b16 %v77
    %v1498 = vunpack.c.l.b16 %v78
    %v1499 = vunpack.c.l.b16 %v79
    %v1500 = vunpack.c.l.b16 %v80
    %v1501 = vunpack.c.l.b16 %v81
    %v1502 = vunpack.c.l.b16 %v82
    %v1503 = vunpack.c.l.b16 %v83
    %v1504 = vunpack.c.l.b16 %v84
    %v1505 = vunpack.c.l.b16 %v85
    %v1506 = vunpack.c.l.b16 %v86
    %v1507 = vunpack.c.l.b16 %v87
    %v1508 = vunpack.c.l.b16 %v88
    %v1509 = vunpack.c.l.b16 %v89
    %v1510 = vunpack.c.l.b16 %v90
    %v1511 = vunpack.c.l.b16 %v91
    %v1512 = vunpack.c.l.b16 %v92
    %v1513 = vunpack.c.l.b16 %v93
    %v1514 = vunpack.c.l.b16 %v94
    %v1515 = vunpack.c.l.b16 %v95
    %v1516 = vunpack.c.l.b16 %v96
    %v1517 = vunpack.c.l.b16 %v97
    %v1518 = vunpack.c.l.b16 %v98
    %v1519 = vunpack.c.l.b16 %v99
    %v1520 = vunpack.c.l.b16 %v100
    %v1521 = vunpack.c.l.b16 %v101
    %v1522 = vunpack.c.l.b16 %v102
    %v1523 = vunpack.c.l.b16 %v103
    %v1524 = vunpack.c.l.b16 %v104
    %v1525 = vunpack.c.l.b16 %v105
    %v1526 = vunpack.c.l.b16 %v106
    %v1527 = vunpack.c.l.b16 %v107
    %v1528 = vunpack.c.l.b16 %v108
    %v1529 = vunpack.c.l.b16 %v109
    %v1530 = vunpack.c.l.b16 %v110
    %v1531 = vunpack.c.l.b16 %v111
    %v1532 = vunpack.c.l.b16 %v112
    %v1533 = vunpack.c.l.b16 %v113
    %v1534 = vunpack.c.l.b16 %v114
    %v1535 = vunpack.c.l.b16 %v115
    %v1536 = vunpack.c.l.b16 %v116
    %v1537 = vunpack.c.l.b16 %v117
    %v1538 = vunpack.c.l.b16 %v118
    %v1539 = vunpack.c.l.b16 %v119
    %v1540 = vunpack.c.l.b16 %v120
    %v1541 = vunpack.c.l.b16 %v121
    %v1542 = vunpack.c.l.b16 %v122
    %v1543 = vunpack.c.l.b16 %v123
    %v1544 = vunpack.c.l.b16 %v124
    %v1545 = vunpack.c.l.b16 %v125
    %v1546 = vunpack.c.l.b16 %v126
    %v1547 = vunpack.c.l.b16 %v127
    %v1548 = vunpack.c.l.b16 %v128
    %v1549 = vunpack.c.l.b16 %v129
    %v1550 = vunpack.c.l.b16 %v130
    %v1551 = vunpack.c.l.b16 %v131
    %v1552 = vunpack.c.l.b16 %v132
    %v1553 = vunpack.c.l.b16 %v133
    %v1554 = vunpack.c.l.b16 %v134
    %v1555 = vunpack.c.l.b16 %v135
    %v1556 = vunpack.c.l.b16 %v136
    %v1557 = vunpack.c.l.b16 %v137
    %v1558 = vunpack.c.l.b16 %v138
    %v1559 = vunpack.c.l.b16 %v139
    %v1560 = vunpack.c.l.b16 %v140
    %v1561 = vunpack.c.l.b16 %v141
    %v1562 = vunpack.c.l.b16 %v142
    %v1563 = vunpack.c.l.b16 %v143
    %v1564 = vunpack.c.l.b16 %v144
    %v1565 = vunpack.c.l.b16 %v145
    %v1566 = vunpack.c.l.b16 %v146
    %v1567 = vunpack.c.l.b16 %v147
    %v1568 = vunpack.c.l.b16 %v148
    %v1569 = vunpack.c.l.b16 %v149
    %v1570 = vunpack.c.l.b16 %v150
    %v1571 = vunpack.c.l.b16 %v151
    %v1572 = vunpack.c.l.b16 %v152
    %v1573 = vunpack.c.l.b16 %v153
    %v1574 = vunpack.c.l.b16 %v154
    %v1575 = vunpack.c.l.b16 %v155
    %v1576 = vunpack.c.l.b16 %v156
    %v1577 = vunpack.c.l.b16 %v157
    %v1578 = vunpack.c.l.b16 %v158
    %v1579 = vunpack.c.l.b16 %v159
    %v1580 = vunpack.c.l.b16 %v160
    %v1581 = vunpack.c.l.b16 %v161
    %v1582 = vunpack.c.l.b16 %v162
    %v1583 = vunpack.c.l.b16 %v163
    %v1584 = vunpack.c.l.b16 %v164
    %v1585 = vunpack.c.l.b16 %v165
    %v1586 = vunpack.c.l.b16 %v166
    %v1587 = vunpack.c.l.b16 %v167
    %v1588 = vunpack.c.l.b16 %v168
    %v1589 = vunpack.c.l.b16 %v169
    %v1590 = vunpack.c.l.b16 %v170
    %v1591 = vunpack.c.l.b16 %v171
    %v1592 = vunpack.c.l.b16 %v172
    %v1593 = vunpack.c.l.b16 %v173
    %v1594 = vunpack.c.l.b16 %v174
    %v1595 = vunpack.c.l.b16 %v175
    %v1596 = vunpack.c.l.b16 %v176
    %v1597 = vunpack.c.l.b16 %v177
    %v1598 = vunpack.c.l.b16 %v178
    %v1599 = vunpack.c.l.b16 %v179
    %v1600 = vunpack.c.l.b16 %v180
    %v1601 = vunpack.c.l.b16 %v181
    %v1602 = vunpack.c.l.b16 %v182
    %v1603 = vunpack.c.l.b16 %v183
    %v1604 = vunpack.c.l.b16 %v184
    %v1605 = vunpack.c.l.b16 %v185
    %v1606 = vunpack.c.l.b16 %v186
    %v1607 = vunpack.c.l.b16 %v187
    %v1608 = vunpack.c.l.b16 %v188
    %v1609 = vunpack.c.l.b16 %v189
    %v1610 = vunpack.c.l.b16 %v190
    %v1611 = vunpack.c.l.b16 %v191
    %v1612 = vunpack.c.l.b16 %v192
    %v1613 = vunpack.c.l.b16 %v193
    %v1614 = vunpack.c.l.b16 %v194
    %v1615 = vunpack.c.l.b16 %v195
    %v1616 = vunpack.c.l.b16 %v196
    %v1617 = vunpack.c.l.b16 %v197
    %v1618 = vunpack.c.l.b16 %v198
    %v1619 = vunpack.c.l.b16 %v199
    %v1620 = vunpack.c.l.b16 %v200
    %v1621 = vunpack.c.l.b16 %v201
    %v1622 = vunpack.c.l.b16 %v202
    %v1623 = vunpack.c.l.b16 %v203
    %v1624 = vunpack.c.l.b16 %v204
    %v1625 = vunpack.c.l.b16 %v205
    %v1626 = vunpack.c.l.b16 %v206
    %v1627 = vunpack.c.l.b16 %v207
    %v1628 = vunpack.c.l.b16 %v208
    %v1629 = vunpack.c.l.b16 %v209
    %v1630 = vunpack.c.l.b16 %v210
    %v1631 = vunpack.c.l.b16 %v211
    %v1632 = vunpack.c.l.b16 %v212
    %v1633 = vunpack.c.l.b16 %v213
    %v1634 = vunpack.c.l.b16 %v214
    %v1635 = vunpack.c.l.b16 %v215
    %v1636 = vunpack.c.l.b16 %v216
    %v1637 = vunpack.c.l.b16 %v217
    %v1638 = vunpack.c.l.b16 %v218
    %v1639 = vunpack.c.l.b16 %v219
    %v1640 = vunpack.c.l.b16 %v220
    %v1641 = vunpack.c.l.b16 %v221
    %v1642 = vunpack.c.l.b16 %v222
    %v1643 = vunpack.c.l.b16 %v223
    %v1644 = vunpack.c.l.b16 %v224
    %v1645 = vunpack.c.l.b16 %v225
    %v1646 = vunpack.c.l.b16 %v226
    %v1647 = vunpack.c.l.b16 %v227
    %v1648 = vunpack.c.l.b16 %v228
    %v1649 = vunpack.c.l.b16 %v229
    %v1650 = vunpack.c.l.b16 %v230
    %v1651 = vunpack.c.l.b16 %v231
    %v1652 = vunpack.c.l.b16 %v232
    %v1653 = vunpack.c.l.b16 %v233
    %v1654 = vunpack.c.l.b16 %v234
    %v1655 = vunpack.c.l.b16 %v235
    %v1656 = vunpack.c.l.b16 %v236
    %v1657 = vunpack.c.l.b16 %v237
    %v1658 = vunpack.c.l.b16 %v238
    %v1659 = vunpack.c.l.b16 %v239
    %v1660 = vunpack.c.l.b16 %v240
    %v1661 = vunpack.c.l.b16 %v241
    %v1662 = vunpack.c.l.b16 %v242
    %v1663 = vunpack.c.l.b16 %v243
    %v1664 = vunpack.c.l.b16 %v244
    %v1665 = vunpack.c.l.b16 %v245
    %v1666 = vunpack.c.l.b16 %v246
    %v1667 = vunpack.c.l.b16 %v247
    %v1668 = vunpack.c.l.b16 %v248
    %v1669 = vunpack.c.l.b16 %v249
    %v1670 = vunpack.c.l.b16 %v250
    %v1671 = vunpack.c.l.b16 %v251
    %v1672 = vunpack.c.l.b16 %v252
    %v1673 = vunpack.c.l.b16 %v253
    %v1674 = vunpack.c.l.b16 %v254
    %v1675 = vunpack.c.l.b16 %v255
    %v1676 = vunpack.c.l.b16 %v256
    %v1677 = vunpack.c.l.b16 %v257
    %v1678 = vunpack.c.l.b16 %v258
    %v1679 = vunpack.c.l.b16 %v259
    %v1680 = vunpack.c.l.b16 %v260
    %v1681 = vunpack.c.l.b16 %v261
    %v1682 = vunpack.c.l.b16 %v262
    %v1683 = vunpack.c.l.b16 %v263
    %v1684 = vunpack.c.l.b16 %v264
    %v1685 = vunpack.c.l.b16 %v265
    %v1686 = vunpack.c.l.b16 %v266
    %v1687 = vunpack.c.l.b16 %v267
    %v1688 = vunpack.c.l.b16 %v268
    %v1689 = vunpack.c.l.b16 %v269
    %v1690 = vunpack.c.l.b16 %v270
    %v1691 = vunpack.c.l.b16 %v271
    %v1692 = vunpack.c.l.b16 %v272
    %v1693 = vunpack.c.l.b16 %v273
    %v1694 = vunpack.c.l.b16 %v274
    %v1695 = vunpack.c.l.b16 %v275
    %v1696 = vunpack.c.l.b16 %v276
    %v1697 = vunpack.c.l.b16 %v277
    %v1698 = vunpack.c.l.b16 %v278
    %v1699 = vunpack.c.l.b16 %v279
    %v1700 = vunpack.c.l.b16 %v280
    %v1701 = vunpack.c.l.b16 %v281
    %v1702 = vunpack.c.l.b16 %v282
    %v1703 = vunpack.c.l.b16 %v283
    %v1704 = vunpack.c.l.b16 %v284
    %v1705 = vunpack.c.l.b16 %v285
    %v1706 = vunpack.c.l.b16 %v286
    %v1707 = vunpack.c.l.b16 %v287
    %v1708 = vunpack.c.l.b16 %v288
    %v1709 = vunpack.c.l.b16 %v289
    %v1710 = vunpack.c.l.b16 %v290
    %v1711 = vunpack.c.l.b16 %v291
    %v1712 = vunpack.c.l.b16 %v292
    %v1713 = vunpack.c.l.b16 %v293
    %v1714 = vunpack.c.l.b16 %v294
    %v1715 = vunpack.c.l.b16 %v295
    %v1716 = vunpack.c.l.b16 %v296
    %v1717 = vunpack.c.l.b16 %v297
    %v1718 = vunpack.c.l.b16 %v298
    %v1719 = vunpack.c.l.b16 %v299
    %v1720 = vunpack.c.l.b16 %v300
    %v1721 = vunpack.c.l.b16 %v301
    %v1722 = vunpack.c.l.b16 %v302
    %v1723 = vunpack.c.l.b16 %v303
    %v1724 = vunpack.c.l.b16 %v304
    %v1725 = vunpack.c.l.b16 %v305
    %v1726 = vunpack.c.l.b16 %v306
    %v1727 = vunpack.c.l.b16 %v307
    %v1728 = vunpack.c.l.b16 %v308
    %v1729 = vunpack.c.l.b16 %v309
    %v1730 = vunpack.c.l.b16 %v310
    %v1731 = vunpack.c.l.b16 %v311
    %v1732 = vunpack.c.l.b16 %v312
    %v1733 = vunpack.c.l.b16 %v313
    %v1734 = vunpack.c.l.b16 %v314
    %v1735 = vunpack.c.l.b16 %v315
    %v1736 = vunpack.c.l.b16 %v316
    %v1737 = vunpack.c.l.b16 %v317
    %v1738 = vunpack.c.l.b16 %v318
    %v1739 = vunpack.c.l.b16 %v319
    %v1740 = vunpack.c.l.b16 %v320
    %v1741 = vunpack.c.l.b16 %v321
    %v1742 = vunpack.c.l.b16 %v322
    %v1743 = vunpack.c.l.b16 %v323
    %v1744 = vunpack.c.l.b16 %v324
    %v1745 = vunpack.c.l.b16 %v325
    %v1746 = vunpack.c.l.b16 %v326
    %v1747 = vunpack.c.l.b16 %v327
    %v1748 = vunpack.c.l.b16 %v328
    %v1749 = vunpack.c.l.b16 %v329
    %v1750 = vunpack.c.l.b16 %v330
    %v1751 = vunpack.c.l.b16 %v331
    %v1752 = vunpack.c.l.b16 %v332
    %v1753 = vunpack.c.l.b16 %v333
    %v1754 = vunpack.c.l.b16 %v334
    %v1755 = vunpack.c.l.b16 %v335
    %v1756 = vunpack.c.l.b16 %v336
    %v1757 = vunpack.c.l.b16 %v337
    %v1758 = vunpack.c.l.b16 %v338
    %v1759 = vunpack.c.l.b16 %v339
    %v1760 = vunpack.c.l.b16 %v340
    %v1761 = vunpack.c.l.b16 %v341
    %v1762 = vunpack.c.l.b16 %v342
    %v1763 = vunpack.c.l.b16 %v343
    %v1764 = vunpack.c.l.b16 %v344
    %v1765 = vunpack.c.l.b16 %v345
    %v1766 = vunpack.c.l.b16 %v346
    %v1767 = vunpack.c.l.b16 %v347
    %v1768 = vunpack.c.l.b16 %v348
    %v1769 = vunpack.c.l.b16 %v349
    %v1770 = vunpack.c.l.b16 %v350
    %v1771 = vunpack.c.l.b16 %v351
    %v1772 = vunpack.c.l.b16 %v352
    %v1773 = vunpack.c.l.b16 %v353
    %v1774 = vunpack.c.l.b16 %v354
    %v1775 = vunpack.c.l.b16 %v355
    %v1776 = vunpack.c.l.b16 %v356
    %v1777 = vunpack.c.l.b16 %v357
    %v1778 = vunpack.c.l.b16 %v358
    %v1779 = vunpack.c.l.b16 %v359
    %v1780 = vunpack.c.l.b16 %v360
    %v1781 = vunpack.c.l.b16 %v361
    %v1782 = vunpack.c.l.b16 %v362
    %v1783 = vunpack.c.l.b16 %v363
    %v1784 = vunpack.c.l.b16 %v364
    %v1785 = vunpack.c.l.b16 %v365
    %v1786 = vunpack.c.l.b16 %v366
    %v1787 = vunpack.c.l.b16 %v367
    %v1788 = vunpack.c.l.b16 %v368
    %v1789 = vunpack.c.l.b16 %v369
    %v1790 = vunpack.c.l.b16 %v370
    %v1791 = vunpack.c.l.b16 %v371
    %v1792 = vunpack.c.l.b16 %v372
    %v1793 = vunpack.c.l.b16 %v373
    %v1794 = vunpack.c.l.b16 %v374
    %v1795 = vunpack.c.l.b16 %v375
    %v1796 = vunpack.c.l.b16 %v376
    %v1797 = vunpack.c.l.b16 %v377
    %v1798 = vunpack.c.l.b16 %v378
    %v1799 = vunpack.c.l.b16 %v379
    %v1800 = vunpack.c.l.b16 %v380
    %v1801 = vunpack.c.l.b16 %v381
    %v1802 = vunpack.c.l.b16 %v382
    %v1803 = vunpack.c.l.b16 %v383
    %v1804 = vunpack.c.l.b16 %v384
    %v1805 = vunpack.c.l.b16 %v385
    %v1806 = vunpack.c.l.b16 %v386
    %v1807 = vunpack.c.l.b16 %v387
    %v1808 = vunpack.c.l.b16 %v388
    %v1809 = vunpack.c.l.b16 %v389
    %v1810 = vunpack.c.l.b16 %v390
    %v1811 = vunpack.c.l.b16 %v391
    %v1812 = vunpack.c.l.b16 %v392
    %v1813 = vunpack.c.l.b16 %v393
    %v1814 = vunpack.c.l.b16 %v394
    %v1815 = vunpack.c.l.b16 %v395
    %v1816 = vunpack.c.l.b16 %v396
    %v1817 = vunpack.c.l.b16 %v397
    %v1818 = vunpack.c.l.b16 %v398
    %v1819 = vunpack.c.l.b16 %v399
    %v1820 = vunpack.c.l.b16 %v400
    %v1821 = vunpack.c.l.b16 %v401
    %v1822 = vunpack.c.l.b16 %v402
    %v1823 = vunpack.c.l.b16 %v403
    %v1824 = vunpack.c.l.b16 %v404
    %v1825 = vunpack.c.l.b16 %v405
    %v1826 = vunpack.c.l.b16 %v406
    %v1827 = vunpack.c.l.b16 %v407
    %v1828 = vunpack.c.l.b16 %v408
    %v1829 = vunpack.c.l.b16 %v409
    %v1830 = vunpack.c.l.b16 %v410
    %v1831 = vunpack.c.l.b16 %v411
    %v1832 = vunpack.c.l.b16 %v412
    %v1833 = vunpack.c.l.b16 %v413
    %v1834 = vunpack.c.l.b16 %v414
    %v1835 = vunpack.c.l.b16 %v415
    %v1836 = vunpack.c.l.b16 %v416
    %v1837 = vunpack.c.l.b16 %v417
    %v1838 = vunpack.c.l.b16 %v418
    %v1839 = vunpack.c.l.b16 %v419
    %v1840 = vunpack.c.l.b16 %v420
    %v1841 = vunpack.c.l.b16 %v421
    %v1842 = vunpack.c.l.b16 %v422
    %v1843 = vunpack.c.l.b16 %v423
    %v1844 = vunpack.c.l.b16 %v424
    %v1845 = vunpack.c.l.b16 %v425
    %v1846 = vunpack.c.l.b16 %v426
    %v1847 = vunpack.c.l.b16 %v427
    %v1848 = vunpack.c.l.b16 %v428
    %v1849 = vunpack.c.l.b16 %v429
    %v1850 = vunpack.c.l.b16 %v430
    %v1851 = vunpack.c.l.b16 %v431
    %v1852 = vunpack.c.l.b16 %v432
    %v1853 = vunpack.c.l.b16 %v433
    %v1854 = vunpack.c.l.b16 %v434
    %v1855 = vunpack.c.l.b16 %v435
    %v1856 = vunpack.c.l.b16 %v436
    %v1857 = vunpack.c.l.b16 %v437
    %v1858 = vunpack.c.l.b16 %v438
    %v1859 = vunpack.c.l.b16 %v439
    %v1860 = vunpack.c.l.b16 %v440
    %v1861 = vunpack.c.l.b16 %v441
    %v1862 = vunpack.c.l.b16 %v442
    %v1863 = vunpack.c.l.b16 %v443
    %v1864 = vunpack.c.l.b16 %v444
    %v1865 = vunpack.c.l.b16 %v445
    %v1866 = vunpack.c.l.b16 %v446
    %v1867 = vunpack.c.l.b16 %v447
    %v1868 = vunpack.c.l.b16 %v448
    %v1869 = vunpack.c.l.b16 %v449
    %v1870 = vunpack.c.l.b16 %v450
    %v1871 = vunpack.c.l.b16 %v451
    %v1872 = vunpack.c.l.b16 %v452
    %v1873 = vunpack.c.l.b16 %v453
    %v1874 = vunpack.c.l.b16 %v454
    %v1875 = vunpack.c.l.b16 %v455
    %v1876 = vunpack.c.l.b16 %v456
    %v1877 = vunpack.c.l.b16 %v457
    %v1878 = vunpack.c.l.b16 %v458
    %v1879 = vunpack.c.l.b16 %v459
    %v1880 = vunpack.c.l.b16 %v460
    %v1881 = vunpack.c.l.b16 %v461
    %v1882 = vunpack.c.l.b16 %v462
    %v1883 = vunpack.c.l.b16 %v463
    %v1884 = vunpack.c.l.b16 %v464
    %v1885 = vunpack.c.l.b16 %v465
    %v1886 = vunpack.c.l.b16 %v466
    %v1887 = vunpack.c.l.b16 %v467
    %v1888 = vunpack.c.l.b16 %v468
    %v1889 = vunpack.c.l.b16 %v469
    %v1890 = vunpack.c.l.b16 %v470
    %v1891 = vunpack.c.l.b16 %v471
    %v1892 = vunpack.c.l.b16 %v472
    %v1893 = vunpack.c.l.b16 %v473
    %v1894 = vunpack.c.l.b16 %v474
    %v1895 = vunpack.c.l.b16 %v475
    %v1896 = vunpack.c.l.b16 %v476
    %v1897 = vunpack.c.l.b16 %v477
    %v1898 = vunpack.c.l.b16 %v478
    %v1899 = vunpack.c.l.b16 %v479
    %v1900 = vunpack.c.l.b16 %v480
    %v1901 = vunpack.c.l.b16 %v481
    %v1902 = vunpack.c.l.b16 %v482
    %v1903 = vunpack.c.l.b16 %v483
    %v1904 = vunpack.c.l.b16 %v484
    %v1905 = vunpack.c.l.b16 %v485
    %v1906 = vunpack.c.l.b16 %v486
    %v1907 = vunpack.c.l.b16 %v487
    %v1908 = vunpack.c.l.b16 %v488
    %v1909 = vunpack.c.l.b16 %v489
    %v1910 = vunpack.c.l.b16 %v490
    %v1911 = vunpack.c.l.b16 %v491
    %v1912 = vunpack.c.l.b16 %v492
    %v1913 = vunpack.c.l.b16 %v493
    %v1914 = vunpack.c.l.b16 %v494
    %v1915 = vunpack.c.l.b16 %v495
    %v1916 = vunpack.c.l.b16 %v496
    %v1917 = vunpack.c.l.b16 %v497
    %v1918 = vunpack.c.l.b16 %v498
    %v1919 = vunpack.c.l.b16 %v499
    %v1920 = vunpack.c.l.b16 %v500
    %v1921 = vunpack.c.l.b16 %v501
    %v1922 = vunpack.c.l.b16 %v502
    %v1923 = vunpack.c.l.b16 %v503
    %v1924 = vunpack.c.l.b16 %v504
    %v1925 = vunpack.c.l.b16 %v505
    %v1926 = vunpack.c.l.b16 %v506
    %v1927 = vunpack.c.l.b16 %v507
    %v1928 = vunpack.c.l.b16 %v508
    %v1929 = vunpack.c.l.b16 %v509
    %v1930 = vunpack.c.l.b16 %v510
    %v1931 = vunpack.c.l.b16 %v511
    %v1932 = vunpack.c.l.b16 %v512
    %v1933 = vunpack.c.l.b16 %v513
    %v1934 = vunpack.c.l.b16 %v514
    %v1935 = vunpack.c.l.b16 %v515
    %v1936 = vunpack.c.l.b16 %v516
    %v1937 = vunpack.c.l.b16 %v517
    %v1938 = vunpack.c.l.b16 %v518
    %v1939 = vunpack.c.l.b16 %v519
    %v1940 = vunpack.c.l.b16 %v520
    %v1941 = vunpack.c.l.b16 %v521
    %v1942 = vunpack.c.l.b16 %v522
    %v1943 = vunpack.c.l.b16 %v523
    %v1944 = vunpack.c.l.b16 %v524
    %v1945 = vunpack.c.l.b16 %v525
    %v1946 = vunpack.c.l.b16 %v526
    %v1947 = vunpack.c.l.b16 %v527
    %v1948 = vunpack.c.l.b16 %v528
    %v1949 = vunpack.c.l.b16 %v529
    %v1950 = vunpack.c.l.b16 %v530
    %v1951 = vunpack.c.l.b16 %v531
    %v1952 = vunpack.c.l.b16 %v532
    %v1953 = vunpack.c.l.b16 %v533
    %v1954 = vunpack.c.l.b16 %v534
    %v1955 = vunpack.c.l.b16 %v535
    %v1956 = vunpack.c.l.b16 %v536
    %v1957 = vunpack.c.l.b16 %v537
    %v1958 = vunpack.c.l.b16 %v538
    %v1959 = vunpack.c.l.b16 %v539
    %v1960 = vunpack.c.l.b16 %v540
    %v1961 = vunpack.c.l.b16 %v541
    %v1962 = vunpack.c.l.b16 %v542
    %v1963 = vunpack.c.l.b16 %v543
    %v1964 = vunpack.c.l.b16 %v544
    %v1965 = vunpack.c.l.b16 %v545
    %v1966 = vunpack.c.l.b16 %v546
    %v1967 = vunpack.c.l.b16 %v547
    %v1968 = vunpack.c.l.b16 %v548
    %v1969 = vunpack.c.l.b16 %v549
    %v1970 = vunpack.c.l.b16 %v550
    %v1971 = vunpack.c.l.b16 %v551
    %v1972 = vunpack.c.l.b16 %v552
    %v1973 = vunpack.c.l.b16 %v553
    %v1974 = vunpack.c.l.b16 %v554
    %v1975 = vunpack.c.l.b16 %v555
    %v1976 = vunpack.c.l.b16 %v556
    %v1977 = vunpack.c.l.b16 %v557
    %v1978 = vunpack.c.l.b16 %v558
    %v1979 = vunpack.c.l.b16 %v559
    %v1980 = vunpack.c.l.b16 %v560
    %v1981 = vunpack.c.l.b16 %v561
    %v1982 = vunpack.c.l.b16 %v562
    %v1983 = vunpack.c.l.b16 %v563
    %v1984 = vunpack.c.l.b16 %v564
    %v1985 = vunpack.c.l.b16 %v565
    %v1986 = vunpack.c.l.b16 %v566
    %v1987 = vunpack.c.l.b16 %v567
    %v1988 = vunpack.c.l.b16 %v568
    %v1989 = vunpack.c.l.b16 %v569
    %v1990 = vunpack.c.l.b16 %v570
    %v1991 = vunpack.c.l.b16 %v571
    %v1992 = vunpack.c.l.b16 %v572
    %v1993 = vunpack.c.l.b16 %v573
    %v1994 = vunpack.c.l.b16 %v574
    %v1995 = vunpack.c.l.b16 %v575
    %v1996 = vunpack.c.l.b16 %v576
    %v1997 = vunpack.c.l.b16 %v577
    %v1998 = vunpack.c.l.b16 %v578
    %v1999 = vunpack.c.l.b16 %v579
    %v2000 = vunpack.c.l.b16 %v580
    %v2001 = vunpack.c.l.b16 %v581
    %v2002 = vunpack.c.l.b16 %v582
    %v2003 = vunpack.c.l.b16 %v583
    %v2004 = vunpack.c.l.b16 %v584
    %v2005 = vunpack.c.l.b16 %v585
    %v2006 = vunpack.c.l.b16 %v586
    %v2007 = vunpack.c.l.b16 %v587
    %v2008 = vunpack.c.l.b16 %v588
    %v2009 = vunpack.c.l.b16 %v589
    %v2010 = vunpack.c.l.b16 %v590
    %v2011 = vunpack.c.l.b16 %v591
    %v2012 = vunpack.c.l.b16 %v592
    %v2013 = vunpack.c.l.b16 %v593
    %v2014 = vunpack.c.l.b16 %v594
    %v2015 = vunpack.c.l.b16 %v595
    %v2016 = vunpack.c.l.b16 %v596
    %v2017 = vunpack.c.l.b16 %v597
    %v2018 = vunpack.c.l.b16 %v598
    %v2019 = vunpack.c.l.b16 %v599
    %v2020 = vunpack.c.l.b16 %v600
    %v2021 = vunpack.c.l.b16 %v601
    %v2022 = vunpack.c.l.b16 %v602
    %v2023 = vunpack.c.l.b16 %v603
    %v2024 = vunpack.c.l.b16 %v604
    %v2025 = vunpack.c.l.b16 %v605
    %v2026 = vunpack.c.l.b16 %v606
    %v2027 = vunpack.c.l.b16 %v607
    %v2028 = vunpack.c.l.b16 %v608
    %v2029 = vunpack.c.l.b16 %v609
    %v2030 = vunpack.c.l.b16 %v610
    %v2031 = vunpack.c.l.b16 %v611
    %v2032 = vunpack.c.l.b16 %v612
    %v2033 = vunpack.c.l.b16 %v613
    %v2034 = vunpack.c.l.b16 %v614
    %v2035 = vpack.c.b16 %v1460, %v1459
    %v2036 = vpack.c.b16 %v1462, %v1461
    %v2037 = vpack.c.b16 %v1464, %v1463
    %v2038 = vpack.c.b16 %v1466, %v1465
    %v2039 = vpack.c.b16 %v1468, %v1467
    %v2040 = vpack.c.b16 %v1470, %v1469
    %v2041 = vpack.c.b16 %v1472, %v1471
    %v2042 = vpack.c.b16 %v1474, %v1473
    %v2043 = vpack.c.b16 %v1476, %v1475
    %v2044 = vpack.c.b16 %v1478, %v1477
    %v2045 = vpack.c.b16 %v1480, %v1479
    %v2046 = vpack.c.b16 %v1482, %v1481
    %v2047 = vpack.c.b16 %v1484, %v1483
    %v2048 = vpack.c.b16 %v1486, %v1485
    %v2049 = vpack.c.b16 %v1488, %v1487
    %v2050 = vpack.c.b16 %v1490, %v1489
    %v2051 = vpack.c.b16 %v1492, %v1491
    %v2052 = vpack.c.b16 %v1494, %v1493
    %v2053 = vpack.c.b16 %v1496, %v1495
    %v2054 = vpack.c.b16 %v1498, %v1497
    %v2055 = vpack.c.b16 %v1500, %v1499
    %v2056 = vpack.c.b16 %v1502, %v1501
    %v2057 = vpack.c.b16 %v1504, %v1503
    %v2058 = vpack.c.b16 %v1506, %v1505
    %v2059 = vpack.c.b16 %v1508, %v1507
    %v2060 = vpack.c.b16 %v1510, %v1509
    %v2061 = vpack.c.b16 %v1512, %v1511
    %v2062 = vpack.c.b16 %v1514, %v1513
    %v2063 = vpack.c.b16 %v1516, %v1515
    %v2064 = vpack.c.b16 %v1518, %v1517
    %v2065 = vpack.c.b16 %v1520, %v1519
    %v2066 = vpack.c.b16 %v1522, %v1521
    %v2067 = vpack.c.b16 %v1524, %v1523
    %v2068 = vpack.c.b16 %v1526, %v1525
    %v2069 = vpack.c.b16 %v1528, %v1527
    %v2070 = vpack.c.b16 %v1530, %v1529
    %v2071 = vpack.c.b16 %v1532, %v1531
    %v2072 = vpack.c.b16 %v1534, %v1533
    %v2073 = vpack.c.b16 %v1536, %v1535
    %v2074 = vpack.c.b16 %v1538, %v1537
    %v2075 = vpack.c.b16 %v1540, %v1539
    %v2076 = vpack.c.b16 %v1542, %v1541
    %v2077 = vpack.c.b16 %v1544, %v1543
    %v2078 = vpack.c.b16 %v1546, %v1545
    %v2079 = vpack.c.b16 %v1548, %v1547
    %v2080 = vpack.c.b16 %v1550, %v1549
    %v2081 = vpack.c.b16 %v1552, %v1551
    %v2082 = vpack.c.b16 %v1554, %v1553
    %v2083 = vpack.c.b16 %v1556, %v1555
    %v2084 = vpack.c.b16 %v1558, %v1557
    %v2085 = vpack.c.b16 %v1560, %v1559
    %v2086 = vpack.c.b16 %v1562, %v1561
    %v2087 = vpack.c.b16 %v1564, %v1563
    %v2088 = vpack.c.b16 %v1566, %v1565
    %v2089 = vpack.c.b16 %v1568, %v1567
    %v2090 = vpack.c.b16 %v1570, %v1569
    %v2091 = vpack.c.b16 %v1572, %v1571
    %v2092 = vpack.c.b16 %v1574, %v1573
    %v2093 = vpack.c.b16 %v1576, %v1575
    %v2094 = vpack.c.b16 %v1578, %v1577
    %v2095 = vpack.c.b16 %v1580, %v1579
    %v2096 = vpack.c.b16 %v1582, %v1581
    %v2097 = vpack.c.b16 %v1584, %v1583
    %v2098 = vpack.c.b16 %v1586, %v1585
    %v2099 = vpack.c.b16 %v1588, %v1587
    %v2100 = vpack.c.b16 %v1590, %v1589
    %v2101 = vpack.c.b16 %v1592, %v1591
    %v2102 = vpack.c.b16 %v1594, %v1593
    %v2103 = vpack.c.b16 %v1596, %v1595
    %v2104 = vpack.c.b16 %v1598, %v1597
    %v2105 = vpack.c.b16 %v1600, %v1599
    %v2106 = vpack.c.b16 %v1602, %v1601
    %v2107 = vpack.c.b16 %v1604, %v1603
    %v2108 = vpack.c.b16 %v1606, %v1605
    %v2109 = vpack.c.b16 %v1608, %v1607
    %v2110 = vpack.c.b16 %v1610, %v1609
    %v2111 = vpack.c.b16 %v1612, %v1611
    %v2112 = vpack.c.b16 %v1614, %v1613
    %v2113 = vpack.c.b16 %v1616, %v1615
    %v2114 = vpack.c.b16 %v1618, %v1617
    %v2115 = vpack.c.b16 %v1620, %v1619
    %v2116 = vpack.c.b16 %v1622, %v1621
    %v2117 = vpack.c.b16 %v1624, %v1623
    %v2118 = vpack.c.b16 %v1626, %v1625
    %v2119 = vpack.c.b16 %v1628, %v1627
    %v2120 = vpack.c.b16 %v1630, %v1629
    %v2121 = vpack.c.b16 %v1632, %v1631
    %v2122 = vpack.c.b16 %v1634, %v1633
    %v2123 = vpack.c.b16 %v1636, %v1635
    %v2124 = vpack.c.b16 %v1638, %v1637
    %v2125 = vpack.c.b16 %v1640, %v1639
    %v2126 = vpack.c.b16 %v1642, %v1641
    %v2127 = vpack.c.b16 %v1644, %v1643
    %v2128 = vpack.c.b16 %v1646, %v1645
    %v2129 = vpack.c.b16 %v1648, %v1647
    %v2130 = vpack.c.b16 %v1650, %v1649
    %v2131 = vpack.c.b16 %v1652, %v1651
    %v2132 = vpack.c.b16 %v1654, %v1653
    %v2133 = vpack.c.b16 %v1656, %v1655
    %v2134 = vpack.c.b16 %v1658, %v1657
    %v2135 = vpack.c.b16 %v1660, %v1659
    %v2136 = vpack.c.b16 %v1662, %v1661
    %v2137 = vpack.c.b16 %v1664, %v1663
    %v2138 = vpack.c.b16 %v1666, %v1665
    %v2139 = vpack.c.b16 %v1668, %v1667
    %v2140 = vpack.c.b16 %v1670, %v1669
    %v2141 = vpack.c.b16 %v1672, %v1671
    %v2142 = vpack.c.b16 %v1674, %v1673
    %v2143 = vpack.c.b16 %v1676, %v1675
    %v2144 = vpack.c.b16 %v1678, %v1677
    %v2145 = vpack.c.b16 %v1680, %v1679
    %v2146 = vpack.c.b16 %v1682, %v1681
    %v2147 = vpack.c.b16 %v1684, %v1683
    %v2148 = vpack.c.b16 %v1686, %v1685
    %v2149 = vpack.c.b16 %v1688, %v1687
    %v2150 = vpack.c.b16 %v1690, %v1689
    %v2151 = vpack.c.b16 %v1692, %v1691
    %v2152 = vpack.c.b16 %v1694, %v1693
    %v2153 = vpack.c.b16 %v1696, %v1695
    %v2154 = vpack.c.b16 %v1698, %v1697
    %v2155 = vpack.c.b16 %v1700, %v1699
    %v2156 = vpack.c.b16 %v1702, %v1701
    %v2157 = vpack.c.b16 %v1704, %v1703
    %v2158 = vpack.c.b16 %v1706, %v1705
    %v2159 = vpack.c.b16 %v1708, %v1707
    %v2160 = vpack.c.b16 %v1710, %v1709
    %v2161 = vpack.c.b16 %v1712, %v1711
    %v2162 = vpack.c.b16 %v1714, %v1713
    %v2163 = vpack.c.b16 %v1716, %v1715
    %v2164 = vpack.c.b16 %v1718, %v1717
    %v2165 = vpack.c.b16 %v1720, %v1719
    %v2166 = vpack.c.b16 %v1722, %v1721
    %v2167 = vpack.c.b16 %v1724, %v1723
    %v2168 = vpack.c.b16 %v1726, %v1725
    %v2169 = vpack.c.b16 %v1728, %v1727
    %v2170 = vpack.c.b16 %v1730, %v1729
    %v2171 = vpack.c.b16 %v1732, %v1731
    %v2172 = vpack.c.b16 %v1734, %v1733
    %v2173 = vpack.c.b16 %v1736, %v1735
    %v2174 = vpack.c.b16 %v1738, %v1737
    %v2175 = vpack.c.b16 %v1740, %v1739
    %v2176 = vpack.c.b16 %v1742, %v1741
    %v2177 = vpack.c.b16 %v1744, %v1743
    %v2178 = vpack.c.b16 %v1746, %v1745
    %v2179 = vpack.c.b16 %v1748, %v1747
    %v2180 = vpack.c.b16 %v1750, %v1749
    %v2181 = vpack.c.b16 %v1752, %v1751
    %v2182 = vpack.c.b16 %v1754, %v1753
    %v2183 = vpack.c.b16 %v1756, %v1755
    %v2184 = vpack.c.b16 %v1758, %v1757
    %v2185 = vpack.c.b16 %v1760, %v1759
    %v2186 = vpack.c.b16 %v1762, %v1761
    %v2187 = vpack.c.b16 %v1764, %v1763
    %v2188 = vpack.c.b16 %v1766, %v1765
    %v2189 = vpack.c.b16 %v1768, %v1767
    %v2190 = vpack.c.b16 %v1770, %v1769
    %v2191 = vpack.c.b16 %v1772, %v1771
    %v2192 = vpack.c.b16 %v1774, %v1773
    %v2193 = vpack.c.b16 %v1776, %v1775
    %v2194 = vpack.c.b16 %v1778, %v1777
    %v2195 = vpack.c.b16 %v1780, %v1779
    %v2196 = vpack.c.b16 %v1782, %v1781
    %v2197 = vpack.c.b16 %v1784, %v1783
    %v2198 = vpack.c.b16 %v1786, %v1785
    %v2199 = vpack.c.b16 %v1788, %v1787
    %v2200 = vpack.c.b16 %v1790, %v1789
    %v2201 = vpack.c.b16 %v1792, %v1791
    %v2202 = vpack.c.b16 %v1794, %v1793
    %v2203 = vpack.c.b16 %v1796, %v1795
    %v2204 = vpack.c.b16 %v1798, %v1797
    %v2205 = vpack.c.b16 %v1800, %v1799
    %v2206 = vpack.c.b16 %v1802, %v1801
    %v2207 = vpack.c.b16 %v1804, %v1803
    %v2208 = vpack.c.b16 %v1806, %v1805
    %v2209 = vpack.c.b16 %v1808, %v1807
    %v2210 = vpack.c.b16 %v1810, %v1809
    %v2211 = vpack.c.b16 %v1812, %v1811
    %v2212 = vpack.c.b16 %v1814, %v1813
    %v2213 = vpack.c.b16 %v1816, %v1815
    %v2214 = vpack.c.b16 %v1818, %v1817
    %v2215 = vpack.c.b16 %v1820, %v1819
    %v2216 = vpack.c.b16 %v1822, %v1821
    %v2217 = vpack.c.b16 %v1824, %v1823
    %v2218 = vpack.c.b16 %v1826, %v1825
    %v2219 = vpack.c.b16 %v1828, %v1827
    %v2220 = vpack.c.b16 %v1830, %v1829
    %v2221 = vpack.c.b16 %v1832, %v1831
    %v2222 = vpack.c.b16 %v1834, %v1833
    %v2223 = vpack.c.b16 %v1836, %v1835
    %v2224 = vpack.c.b16 %v1838, %v1837
    %v2225 = vpack.c.b16 %v1840, %v1839
    %v2226 = vpack.c.b16 %v1842, %v1841
    %v2227 = vpack.c.b16 %v1844, %v1843
    %v2228 = vpack.c.b16 %v1846, %v1845
    %v2229 = vpack.c.b16 %v1848, %v1847
    %v2230 = vpack.c.b16 %v1850, %v1849
    %v2231 = vpack.c.b16 %v1852, %v1851
    %v2232 = vpack.c.b16 %v1854, %v1853
    %v2233 = vpack.c.b16 %v1856, %v1855
    %v2234 = vpack.c.b16 %v1858, %v1857
    %v2235 = vpack.c.b16 %v1860, %v1859
    %v2236 = vpack.c.b16 %v1862, %v1861
    %v2237 = vpack.c.b16 %v1864, %v1863
    %v2238 = vpack.c.b16 %v1866, %v1865
    %v2239 = vpack.c.b16 %v1868, %v1867
    %v2240 = vpack.c.b16 %v1870, %v1869
    %v2241 = vpack.c.b16 %v1872, %v1871
    %v2242 = vpack.c.b16 %v1874, %v1873
    %v2243 = vpack.c.b16 %v1876, %v1875
    %v2244 = vpack.c.b16 %v1878, %v1877
    %v2245 = vpack.c.b16 %v1880, %v1879
    %v2246 = vpack.c.b16 %v1882, %v1881
    %v2247 = vpack.c.b16 %v1884, %v1883
    %v2248 = vpack.c.b16 %v1886, %v1885
    %v2249 = vpack.c.b16 %v1888, %v1887
    %v2250 = vpack.c.b16 %v1890, %v1889
    %v2251 = vpack.c.b16 %v1892, %v1891
    %v2252 = vpack.c.b16 %v1894, %v1893
    %v2253 = vpack.c.b16 %v1896, %v1895
    %v2254 = vpack.c.b16 %v1898, %v1897
    %v2255 = vpack.c.b16 %v1900, %v1899
    %v2256 = vpack.c.b16 %v1902, %v1901
    %v2257 = vpack.c.b16 %v1904, %v1903
    %v2258 = vpack.c.b16 %v1906, %v1905
    %v2259 = vpack.c.b16 %v1908, %v1907
    %v2260 = vpack.c.b16 %v1910, %v1909
    %v2261 = vpack.c.b16 %v1912, %v1911
    %v2262 = vpack.c.b16 %v1914, %v1913
    %v2263 = vpack.c.b16 %v1916, %v1915
    %v2264 = vpack.c.b16 %v1918, %v1917
    %v2265 = vpack.c.b16 %v1920, %v1919
    %v2266 = vpack.c.b16 %v1922, %v1921
    %v2267 = vpack.c.b16 %v1924, %v1923
    %v2268 = vpack.c.b16 %v1926, %v1925
    %v2269 = vpack.c.b16 %v1928, %v1927
    %v2270 = vpack.c.b16 %v1930, %v1929
    %v2271 = vpack.c.b16 %v1932, %v1931
    %v2272 = vpack.c.b16 %v1934, %v1933
    %v2273 = vpack.c.b16 %v1936, %v1935
    %v2274 = vpack.c.b16 %v1938, %v1937
    %v2275 = vpack.c.b16 %v1940, %v1939
    %v2276 = vpack.c.b16 %v1942, %v1941
    %v2277 = vpack.c.b16 %v1944, %v1943
    %v2278 = vpack.c.b16 %v1946, %v1945
    %v2279 = vpack.c.b16 %v1948, %v1947
    %v2280 = vpack.c.b16 %v1950, %v1949
    %v2281 = vpack.c.b16 %v1952, %v1951
    %v2282 = vpack.c.b16 %v1954, %v1953
    %v2283 = vpack.c.b16 %v1956, %v1955
    %v2284 = vpack.c.b16 %v1958, %v1957
    %v2285 = vpack.c.b16 %v1960, %v1959
    %v2286 = vpack.c.b16 %v1962, %v1961
    %v2287 = vpack.c.b16 %v1964, %v1963
    %v2288 = vpack.c.b16 %v1966, %v1965
    %v2289 = vpack.c.b16 %v1968, %v1967
    %v2290 = vpack.c.b16 %v1970, %v1969
    %v2291 = vpack.c.b16 %v1972, %v1971
    %v2292 = vpack.c.b16 %v1974, %v1973
    %v2293 = vpack.c.b16 %v1976, %v1975
    %v2294 = vpack.c.b16 %v1978, %v1977
    %v2295 = vpack.c.b16 %v1980, %v1979
    %v2296 = vpack.c.b16 %v1982, %v1981
    %v2297 = vpack.c.b16 %v1984, %v1983
    %v2298 = vpack.c.b16 %v1986, %v1985
    %v2299 = vpack.c.b16 %v1988, %v1987
    %v2300 = vpack.c.b16 %v1990, %v1989
    %v2301 = vpack.c.b16 %v1992, %v1991
    %v2302 = vpack.c.b16 %v1994, %v1993
    %v2303 = vpack.c.b16 %v1996, %v1995
    %v2304 = vpack.c.b16 %v1998, %v1997
    %v2305 = vpack.c.b16 %v2000, %v1999
    %v2306 = vpack.c.b16 %v2002, %v2001
    %v2307 = vpack.c.b16 %v2004, %v2003
    %v2308 = vpack.c.b16 %v2006, %v2005
    %v2309 = vpack.c.b16 %v2008, %v2007
    %v2310 = vpack.c.b16 %v2010, %v2009
    %v2311 = vpack.c.b16 %v2012, %v2011
    %v2312 = vpack.c.b16 %v2014, %v2013
    %v2313 = vpack.c.b16 %v2016, %v2015
    %v2314 = vpack.c.b16 %v2018, %v2017
    %v2315 = vpack.c.b16 %v2020, %v2019
    %v2316 = vpack.c.b16 %v2022, %v2021
    %v2317 = vpack.c.b16 %v2024, %v2023
    %v2318 = vpack.c.b16 %v2026, %v2025
    %v2319 = vpack.c.b16 %v2028, %v2027
    %v2320 = vpack.c.b16 %v2030, %v2029
    %v2321 = vpack.c.b16 %v2032, %v2031
    %v2322 = vpack.c.b16 %v2034, %v2033
    %2611 = vmatprep.subr.bf16.mxu0 0
    %2612 = vmatpush1.bf16.msra.mxu0 %v2035
    %2613 = vmatprep.subr.bf16.mxu0 0
    %2614 = vmatpush1.bf16.msra.mxu0 %v2036
    %2615 = vmatprep.subr.bf16.mxu0 0
    %2616 = vmatpush1.bf16.msra.mxu0 %v2037
    %2617 = vmatprep.subr.bf16.mxu0 0
    %2618 = vmatpush1.bf16.msra.mxu0 %v2038
    %2619 = vmatprep.subr.bf16.mxu0 0
    %2620 = vmatpush1.bf16.msra.mxu0 %v2039
    %2621 = vmatprep.subr.bf16.mxu0 0
    %2622 = vmatpush1.bf16.msra.mxu0 %v2040
    %2623 = vmatprep.subr.bf16.mxu0 0
    %2624 = vmatpush1.bf16.msra.mxu0 %v2041
    %2625 = vmatprep.subr.bf16.mxu0 0
    %2626 = vmatpush1.bf16.msra.mxu0 %v2042
    %2627 = vmatprep.subr.bf16.mxu0 0
    %2628 = vmatpush1.bf16.msra.mxu0 %v2043
    %2629 = vmatprep.subr.bf16.mxu0 0
    %2630 = vmatpush1.bf16.msra.mxu0 %v2044
    %2631 = vmatprep.subr.bf16.mxu0 0
    %2632 = vmatpush1.bf16.msra.mxu0 %v2045
    %2633 = vmatprep.subr.bf16.mxu0 0
    %2634 = vmatpush1.bf16.msra.mxu0 %v2046
    %2635 = vmatprep.subr.bf16.mxu0 0
    %2636 = vmatpush1.bf16.msra.mxu0 %v2047
    %2637 = vmatprep.subr.bf16.mxu0 0
    %2638 = vmatpush1.bf16.msra.mxu0 %v2048
    %2639 = vmatprep.subr.bf16.mxu0 0
    %2640 = vmatpush1.bf16.msra.mxu0 %v2049
    %2641 = vmatprep.subr.bf16.mxu0 0
    %2642 = vmatpush1.bf16.msra.mxu0 %v2050
    %2643 = vmatprep.mubr.bf16.mxu0 %v664
    %2644 = vmatmul.mubr.bf16.gmra.mrb[0].mxu0 %v650
    %v2645 = vpop.f32.mrb[0].mxu0
    %v2646 = vadd.f32 %v620, %v2645
    %v2647 = vpop.f32.mrb[0].mxu0
    %v2648 = vpop.f32.mrb[0].mxu0
    %v2649 = vpop.f32.mrb[0].mxu0
    %2650 = vdwg.mxu0
    %2651 = vmatprep.subr.bf16.mxu0 0
    %2652 = vmatpush1.bf16.msra.mxu0 %v2051
    %2653 = vmatprep.subr.bf16.mxu0 0
    %2654 = vmatpush1.bf16.msra.mxu0 %v2052
    %2655 = vmatprep.subr.bf16.mxu0 0
    %2656 = vmatpush1.bf16.msra.mxu0 %v2053
    %2657 = vmatprep.subr.bf16.mxu0 0
    %2658 = vmatpush1.bf16.msra.mxu0 %v2054
    %2659 = vmatprep.subr.bf16.mxu0 0
    %2660 = vmatpush1.bf16.msra.mxu0 %v2055
    %2661 = vmatprep.subr.bf16.mxu0 0
    %2662 = vmatpush1.bf16.msra.mxu0 %v2056
    %2663 = vmatprep.subr.bf16.mxu0 0
    %2664 = vmatpush1.bf16.msra.mxu0 %v2057
    %2665 = vmatprep.subr.bf16.mxu0 0
    %2666 = vmatpush1.bf16.msra.mxu0 %v2058
    %2667 = vmatprep.subr.bf16.mxu0 0
    %2668 = vmatpush1.bf16.msra.mxu0 %v2059
    %2669 = vmatprep.subr.bf16.mxu0 0
    %2670 = vmatpush1.bf16.msra.mxu0 %v2060
    %2671 = vmatprep.subr.bf16.mxu0 0
    %2672 = vmatpush1.bf16.msra.mxu0 %v2061
    %2673 = vmatprep.subr.bf16.mxu0 0
    %2674 = vmatpush1.bf16.msra.mxu0 %v2062
    %2675 = vmatprep.subr.bf16.mxu0 0
    %2676 = vmatpush1.bf16.msra.mxu0 %v2063
    %2677 = vmatprep.subr.bf16.mxu0 0
    %2678 = vmatpush1.bf16.msra.mxu0 %v2064
    %2679 = vmatprep.subr.bf16.mxu0 0
    %2680 = vmatpush1.bf16.msra.mxu0 %v2065
    %2681 = vmatprep.subr.bf16.mxu0 0
    %2682 = vmatpush1.bf16.msra.mxu0 %v2066
    %2683 = vmatprep.mubr.bf16.mxu0 %v674
    %2684 = vmatmul.mubr.bf16.gmra.mrb[0].mxu0 %v672
    %v2685 = vpop.f32.mrb[0].mxu0
    %v2686 = vadd.f32 %v2646, %v2685
    %v2687 = vpop.f32.mrb[0].mxu0
    %v2688 = vpop.f32.mrb[0].mxu0
    %v2689 = vpop.f32.mrb[0].mxu0
    %2690 = vdwg.mxu0
    %2691 = vmatprep.subr.bf16.mxu0 0
    %2692 = vmatpush1.bf16.msra.mxu0 %v2067
    %2693 = vmatprep.subr.bf16.mxu0 0
    %2694 = vmatpush1.bf16.msra.mxu0 %v2068
    %2695 = vmatprep.subr.bf16.mxu0 0
    %2696 = vmatpush1.bf16.msra.mxu0 %v2069
    %2697 = vmatprep.subr.bf16.mxu0 0
    %2698 = vmatpush1.bf16.msra.mxu0 %v2070
    %2699 = vmatprep.subr.bf16.mxu0 0
    %2700 = vmatpush1.bf16.msra.mxu0 %v2071
    %2701 = vmatprep.subr.bf16.mxu0 0
    %2702 = vmatpush1.bf16.msra.mxu0 %v2072
    %2703 = vmatprep.subr.bf16.mxu0 0
    %2704 = vmatpush1.bf16.msra.mxu0 %v2073
    %2705 = vmatprep.subr.bf16.mxu0 0
    %2706 = vmatpush1.bf16.msra.mxu0 %v2074
    %2707 = vmatprep.subr.bf16.mxu0 0
    %2708 = vmatpush1.bf16.msra.mxu0 %v2075
    %2709 = vmatprep.subr.bf16.mxu0 0
    %2710 = vmatpush1.bf16.msra.mxu0 %v2076
    %2711 = vmatprep.subr.bf16.mxu0 0
    %2712 = vmatpush1.bf16.msra.mxu0 %v2077
    %2713 = vmatprep.subr.bf16.mxu0 0
    %2714 = vmatpush1.bf16.msra.mxu0 %v2078
    %2715 = vmatprep.subr.bf16.mxu0 0
    %2716 = vmatpush1.bf16.msra.mxu0 %v2079
    %2717 = vmatprep.subr.bf16.mxu0 0
    %2718 = vmatpush1.bf16.msra.mxu0 %v2080
    %2719 = vmatprep.subr.bf16.mxu0 0
    %2720 = vmatpush1.bf16.msra.mxu0 %v2081
    %2721 = vmatprep.subr.bf16.mxu0 0
    %2722 = vmatpush1.bf16.msra.mxu0 %v2082
    %2723 = vmatprep.mubr.bf16.mxu0 %v671
    %2724 = vmatmul.mubr.bf16.gmra.mrb[0].mxu0 %v657
    %v2725 = vpop.f32.mrb[0].mxu0
    %v2726 = vadd.f32 %v2686, %v2725
    %v2727 = vpop.f32.mrb[0].mxu0
    %v2728 = vpop.f32.mrb[0].mxu0
    %v2729 = vpop.f32.mrb[0].mxu0
    %2730 = vdwg.mxu0
    %2731 = vmatprep.subr.bf16.mxu0 0
    %2732 = vmatpush1.bf16.msra.mxu0 %v2083
    %2733 = vmatprep.subr.bf16.mxu0 0
    %2734 = vmatpush1.bf16.msra.mxu0 %v2084
    %2735 = vmatprep.subr.bf16.mxu0 0
    %2736 = vmatpush1.bf16.msra.mxu0 %v2085
    %2737 = vmatprep.subr.bf16.mxu0 0
    %2738 = vmatpush1.bf16.msra.mxu0 %v2086
    %2739 = vmatprep.subr.bf16.mxu0 0
    %2740 = vmatpush1.bf16.msra.mxu0 %v2087
    %2741 = vmatprep.subr.bf16.mxu0 0
    %2742 = vmatpush1.bf16.msra.mxu0 %v2088
    %2743 = vmatprep.subr.bf16.mxu0 0
    %2744 = vmatpush1.bf16.msra.mxu0 %v2089
    %2745 = vmatprep.subr.bf16.mxu0 0
    %2746 = vmatpush1.bf16.msra.mxu0 %v2090
    %2747 = vmatprep.subr.bf16.mxu0 0
    %2748 = vmatpush1.bf16.msra.mxu0 %v2091
    %2749 = vmatprep.subr.bf16.mxu0 0
    %2750 = vmatpush1.bf16.msra.mxu0 %v2092
    %2751 = vmatprep.subr.bf16.mxu0 0
    %2752 = vmatpush1.bf16.msra.mxu0 %v2093
    %2753 = vmatprep.subr.bf16.mxu0 0
    %2754 = vmatpush1.bf16.msra.mxu0 %v2094
    %2755 = vmatprep.subr.bf16.mxu0 0
    %2756 = vmatpush1.bf16.msra.mxu0 %v2095
    %2757 = vmatprep.subr.bf16.mxu0 0
    %2758 = vmatpush1.bf16.msra.mxu0 %v2096
    %2759 = vmatprep.subr.bf16.mxu0 0
    %2760 = vmatpush1.bf16.msra.mxu0 %v2097
    %2761 = vmatprep.subr.bf16.mxu0 0
    %2762 = vmatpush1.bf16.msra.mxu0 %v2098
    %2763 = vmatprep.mubr.bf16.mxu0 %v675
    %2764 = vmatmul.mubr.bf16.gmra.mrb[0].mxu0 %v673
    %v2765 = vpop.f32.mrb[0].mxu0
    %v2766 = vadd.f32 %v2726, %v2765
    %v2767 = vpop.f32.mrb[0].mxu0
    %v2768 = vpop.f32.mrb[0].mxu0
    %v2769 = vpop.f32.mrb[0].mxu0
    %2770 = vdwg.mxu0
    %2771 = vmatprep.subr.bf16.mxu0 0
    %2772 = vmatpush1.bf16.msra.mxu0 %v2099
    %2773 = vmatprep.subr.bf16.mxu0 0
    %2774 = vmatpush1.bf16.msra.mxu0 %v2100
    %2775 = vmatprep.subr.bf16.mxu0 0
    %2776 = vmatpush1.bf16.msra.mxu0 %v2101
    %2777 = vmatprep.subr.bf16.mxu0 0
    %2778 = vmatpush1.bf16.msra.mxu0 %v2102
    %2779 = vmatprep.subr.bf16.mxu0 0
    %2780 = vmatpush1.bf16.msra.mxu0 %v2103
    %2781 = vmatprep.subr.bf16.mxu0 0
    %2782 = vmatpush1.bf16.msra.mxu0 %v2104
    %2783 = vmatprep.subr.bf16.mxu0 0
    %2784 = vmatpush1.bf16.msra.mxu0 %v2105
    %2785 = vmatprep.subr.bf16.mxu0 0
    %2786 = vmatpush1.bf16.msra.mxu0 %v2106
    %2787 = vmatprep.subr.bf16.mxu0 0
    %2788 = vmatpush1.bf16.msra.mxu0 %v2107
    %2789 = vmatprep.subr.bf16.mxu0 0
    %2790 = vmatpush1.bf16.msra.mxu0 %v2108
    %2791 = vmatprep.subr.bf16.mxu0 0
    %2792 = vmatpush1.bf16.msra.mxu0 %v2109
    %2793 = vmatprep.subr.bf16.mxu0 0
    %2794 = vmatpush1.bf16.msra.mxu0 %v2110
    %2795 = vmatprep.subr.bf16.mxu0 0
    %2796 = vmatpush1.bf16.msra.mxu0 %v2111
    %2797 = vmatprep.subr.bf16.mxu0 0
    %2798 = vmatpush1.bf16.msra.mxu0 %v2112
    %2799 = vmatprep.subr.bf16.mxu0 0
    %2800 = vmatpush1.bf16.msra.mxu0 %v2113
    %2801 = vmatprep.subr.bf16.mxu0 0
    %2802 = vmatpush1.bf16.msra.mxu0 %v2114
    %2803 = vmatprep.mubr.bf16.mxu0 %v713
    %2804 = vmatmul.mubr.bf16.gmra.mrb[0].mxu0 %v699
    %v2805 = vpop.f32.mrb[0].mxu0
    %v2806 = vadd.f32 %v2766, %v2805
    %v2807 = vpop.f32.mrb[0].mxu0
    %v2808 = vpop.f32.mrb[0].mxu0
    %v2809 = vpop.f32.mrb[0].mxu0
    %2810 = vdwg.mxu0
    %2811 = vmatprep.subr.bf16.mxu0 0
    %2812 = vmatpush1.bf16.msra.mxu0 %v2115
    %2813 = vmatprep.subr.bf16.mxu0 0
    %2814 = vmatpush1.bf16.msra.mxu0 %v2116
    %2815 = vmatprep.subr.bf16.mxu0 0
    %2816 = vmatpush1.bf16.msra.mxu0 %v2117
    %2817 = vmatprep.subr.bf16.mxu0 0
    %2818 = vmatpush1.bf16.msra.mxu0 %v2118
    %2819 = vmatprep.subr.bf16.mxu0 0
    %2820 = vmatpush1.bf16.msra.mxu0 %v2119
    %2821 = vmatprep.subr.bf16.mxu0 0
    %2822 = vmatpush1.bf16.msra.mxu0 %v2120
    %2823 = vmatprep.subr.bf16.mxu0 0
    %2824 = vmatpush1.bf16.msra.mxu0 %v2121
    %2825 = vmatprep.subr.bf16.mxu0 0
    %2826 = vmatpush1.bf16.msra.mxu0 %v2122
    %2827 = vmatprep.subr.bf16.mxu0 0
    %2828 = vmatpush1.bf16.msra.mxu0 %v2123
    %2829 = vmatprep.subr.bf16.mxu0 0
    %2830 = vmatpush1.bf16.msra.mxu0 %v2124
    %2831 = vmatprep.subr.bf16.mxu0 0
    %2832 = vmatpush1.bf16.msra.mxu0 %v2125
    %2833 = vmatprep.subr.bf16.mxu0 0
    %2834 = vmatpush1.bf16.msra.mxu0 %v2126
    %2835 = vmatprep.subr.bf16.mxu0 0
    %2836 = vmatpush1.bf16.msra.mxu0 %v2127
    %2837 = vmatprep.subr.bf16.mxu0 0
    %2838 = vmatpush1.bf16.msra.mxu0 %v2128
    %2839 = vmatprep.subr.bf16.mxu0 0
    %2840 = vmatpush1.bf16.msra.mxu0 %v2129
    %2841 = vmatprep.subr.bf16.mxu0 0
    %2842 = vmatpush1.bf16.msra.mxu0 %v2130
    %2843 = vmatprep.mubr.bf16.mxu0 %v723
    %2844 = vmatmul.mubr.bf16.gmra.mrb[0].mxu0 %v721
    %v2845 = vpop.f32.mrb[0].mxu0
    %v2846 = vadd.f32 %v2806, %v2845
    %v2847 = vpop.f32.mrb[0].mxu0
    %v2848 = vpop.f32.mrb[0].mxu0
    %v2849 = vpop.f32.mrb[0].mxu0
    %2850 = vdwg.mxu0
    %2851 = vmatprep.subr.bf16.mxu0 0
    %2852 = vmatpush1.bf16.msra.mxu0 %v2131
    %2853 = vmatprep.subr.bf16.mxu0 0
    %2854 = vmatpush1.bf16.msra.mxu0 %v2132
    %2855 = vmatprep.subr.bf16.mxu0 0
    %2856 = vmatpush1.bf16.msra.mxu0 %v2133
    %2857 = vmatprep.subr.bf16.mxu0 0
    %2858 = vmatpush1.bf16.msra.mxu0 %v2134
    %2859 = vmatprep.subr.bf16.mxu0 0
    %2860 = vmatpush1.bf16.msra.mxu0 %v2135
    %2861 = vmatprep.subr.bf16.mxu0 0
    %2862 = vmatpush1.bf16.msra.mxu0 %v2136
    %2863 = vmatprep.subr.bf16.mxu0 0
    %2864 = vmatpush1.bf16.msra.mxu0 %v2137
    %2865 = vmatprep.subr.bf16.mxu0 0
    %2866 = vmatpush1.bf16.msra.mxu0 %v2138
    %2867 = vmatprep.subr.bf16.mxu0 0
    %2868 = vmatpush1.bf16.msra.mxu0 %v2139
    %2869 = vmatprep.subr.bf16.mxu0 0
    %2870 = vmatpush1.bf16.msra.mxu0 %v2140
    %2871 = vmatprep.subr.bf16.mxu0 0
    %2872 = vmatpush1.bf16.msra.mxu0 %v2141
    %2873 = vmatprep.subr.bf16.mxu0 0
    %2874 = vmatpush1.bf16.msra.mxu0 %v2142
    %2875 = vmatprep.subr.bf16.mxu0 0
    %2876 = vmatpush1.bf16.msra.mxu0 %v2143
    %2877 = vmatprep.subr.bf16.mxu0 0
    %2878 = vmatpush1.bf16.msra.mxu0 %v2144
    %2879 = vmatprep.subr.bf16.mxu0 0
    %2880 = vmatpush1.bf16.msra.mxu0 %v2145
    %2881 = vmatprep.subr.bf16.mxu0 0
    %2882 = vmatpush1.bf16.msra.mxu0 %v2146
    %2883 = vmatprep.mubr.bf16.mxu0 %v720
    %2884 = vmatmul.mubr.bf16.gmra.mrb[0].mxu0 %v706
    %v2885 = vpop.f32.mrb[0].mxu0
    %v2886 = vadd.f32 %v2846, %v2885
    %v2887 = vpop.f32.mrb[0].mxu0
    %v2888 = vpop.f32.mrb[0].mxu0
    %v2889 = vpop.f32.mrb[0].mxu0
    %2890 = vdwg.mxu0
    %2891 = vmatprep.subr.bf16.mxu0 0
    %2892 = vmatpush1.bf16.msra.mxu0 %v2147
    %2893 = vmatprep.subr.bf16.mxu0 0
    %2894 = vmatpush1.bf16.msra.mxu0 %v2148
    %2895 = vmatprep.subr.bf16.mxu0 0
    %2896 = vmatpush1.bf16.msra.mxu0 %v2149
    %2897 = vmatprep.subr.bf16.mxu0 0
    %2898 = vmatpush1.bf16.msra.mxu0 %v2150
    %2899 = vmatprep.subr.bf16.mxu0 0
    %2900 = vmatpush1.bf16.msra.mxu0 %v2151
    %2901 = vmatprep.subr.bf16.mxu0 0
    %2902 = vmatpush1.bf16.msra.mxu0 %v2152
    %2903 = vmatprep.subr.bf16.mxu0 0
    %2904 = vmatpush1.bf16.msra.mxu0 %v2153
    %2905 = vmatprep.subr.bf16.mxu0 0
    %2906 = vmatpush1.bf16.msra.mxu0 %v2154
    %2907 = vmatprep.subr.bf16.mxu0 0
    %2908 = vmatpush1.bf16.msra.mxu0 %v2155
    %2909 = vmatprep.subr.bf16.mxu0 0
    %2910 = vmatpush1.bf16.msra.mxu0 %v2156
    %2911 = vmatprep.subr.bf16.mxu0 0
    %2912 = vmatpush1.bf16.msra.mxu0 %v2157
    %2913 = vmatprep.subr.bf16.mxu0 0
    %2914 = vmatpush1.bf16.msra.mxu0 %v2158
    %2915 = vmatprep.subr.bf16.mxu0 0
    %2916 = vmatpush1.bf16.msra.mxu0 %v2159
    %2917 = vmatprep.subr.bf16.mxu0 0
    %2918 = vmatpush1.bf16.msra.mxu0 %v2160
    %2919 = vmatprep.subr.bf16.mxu0 0
    %2920 = vmatpush1.bf16.msra.mxu0 %v2161
    %2921 = vmatprep.subr.bf16.mxu0 0
    %2922 = vmatpush1.bf16.msra.mxu0 %v2162
    %2923 = vmatprep.mubr.bf16.mxu0 %v724
    %2924 = vmatmul.mubr.bf16.gmra.mrb[0].mxu0 %v722
    %v2925 = vpop.f32.mrb[0].mxu0
    %v2926 = vadd.f32 %v2886, %v2925
    %v2927 = vpop.f32.mrb[0].mxu0
    %v2928 = vpop.f32.mrb[0].mxu0
    %v2929 = vpop.f32.mrb[0].mxu0
    %2930 = vdwg.mxu0
    %2931 = vmatprep.subr.bf16.mxu0 0
    %2932 = vmatpush1.bf16.msra.mxu0 %v2163
    %2933 = vmatprep.subr.bf16.mxu0 0
    %2934 = vmatpush1.bf16.msra.mxu0 %v2164
    %2935 = vmatprep.subr.bf16.mxu0 0
    %2936 = vmatpush1.bf16.msra.mxu0 %v2165
    %2937 = vmatprep.subr.bf16.mxu0 0
    %2938 = vmatpush1.bf16.msra.mxu0 %v2166
    %2939 = vmatprep.subr.bf16.mxu0 0
    %2940 = vmatpush1.bf16.msra.mxu0 %v2167
    %2941 = vmatprep.subr.bf16.mxu0 0
    %2942 = vmatpush1.bf16.msra.mxu0 %v2168
    %2943 = vmatprep.subr.bf16.mxu0 0
    %2944 = vmatpush1.bf16.msra.mxu0 %v2169
    %2945 = vmatprep.subr.bf16.mxu0 0
    %2946 = vmatpush1.bf16.msra.mxu0 %v2170
    %2947 = vmatprep.subr.bf16.mxu0 0
    %2948 = vmatpush1.bf16.msra.mxu0 %v2171
    %2949 = vmatprep.subr.bf16.mxu0 0
    %2950 = vmatpush1.bf16.msra.mxu0 %v2172
    %2951 = vmatprep.subr.bf16.mxu0 0
    %2952 = vmatpush1.bf16.msra.mxu0 %v2173
    %2953 = vmatprep.subr.bf16.mxu0 0
    %2954 = vmatpush1.bf16.msra.mxu0 %v2174
    %2955 = vmatprep.subr.bf16.mxu0 0
    %2956 = vmatpush1.bf16.msra.mxu0 %v2175
    %2957 = vmatprep.subr.bf16.mxu0 0
    %2958 = vmatpush1.bf16.msra.mxu0 %v2176
    %2959 = vmatprep.subr.bf16.mxu0 0
    %2960 = vmatpush1.bf16.msra.mxu0 %v2177
    %2961 = vmatprep.subr.bf16.mxu0 0
    %2962 = vmatpush1.bf16.msra.mxu0 %v2178
    %2963 = vmatprep.mubr.bf16.mxu0 %v762
    %2964 = vmatmul.mubr.bf16.gmra.mrb[0].mxu0 %v748
    %v2965 = vpop.f32.mrb[0].mxu0
    %v2966 = vadd.f32 %v2926, %v2965
    %v2967 = vpop.f32.mrb[0].mxu0
    %v2968 = vpop.f32.mrb[0].mxu0
    %v2969 = vpop.f32.mrb[0].mxu0
    %2970 = vdwg.mxu0
    %2971 = vmatprep.subr.bf16.mxu0 0
    %2972 = vmatpush1.bf16.msra.mxu0 %v2179
    %2973 = vmatprep.subr.bf16.mxu0 0
    %2974 = vmatpush1.bf16.msra.mxu0 %v2180
    %2975 = vmatprep.subr.bf16.mxu0 0
    %2976 = vmatpush1.bf16.msra.mxu0 %v2181
    %2977 = vmatprep.subr.bf16.mxu0 0
    %2978 = vmatpush1.bf16.msra.mxu0 %v2182
    %2979 = vmatprep.subr.bf16.mxu0 0
    %2980 = vmatpush1.bf16.msra.mxu0 %v2183
    %2981 = vmatprep.subr.bf16.mxu0 0
    %2982 = vmatpush1.bf16.msra.mxu0 %v2184
    %2983 = vmatprep.subr.bf16.mxu0 0
    %2984 = vmatpush1.bf16.msra.mxu0 %v2185
    %2985 = vmatprep.subr.bf16.mxu0 0
    %2986 = vmatpush1.bf16.msra.mxu0 %v2186
    %2987 = vmatprep.subr.bf16.mxu0 0
    %2988 = vmatpush1.bf16.msra.mxu0 %v2187
    %2989 = vmatprep.subr.bf16.mxu0 0
    %2990 = vmatpush1.bf16.msra.mxu0 %v2188
    %2991 = vmatprep.subr.bf16.mxu0 0
    %2992 = vmatpush1.bf16.msra.mxu0 %v2189
    %2993 = vmatprep.subr.bf16.mxu0 0
    %2994 = vmatpush1.bf16.msra.mxu0 %v2190
    %2995 = vmatprep.subr.bf16.mxu0 0
    %2996 = vmatpush1.bf16.msra.mxu0 %v2191
    %2997 = vmatprep.subr.bf16.mxu0 0
    %2998 = vmatpush1.bf16.msra.mxu0 %v2192
    %2999 = vmatprep.subr.bf16.mxu0 0
    %3000 = vmatpush1.bf16.msra.mxu0 %v2193
    %3001 = vmatprep.subr.bf16.mxu0 0
    %3002 = vmatpush1.bf16.msra.mxu0 %v2194
    %3003 = vmatprep.mubr.bf16.mxu0 %v772
    %3004 = vmatmul.mubr.bf16.gmra.mrb[0].mxu0 %v770
    %v3005 = vpop.f32.mrb[0].mxu0
    %v3006 = vadd.f32 %v2966, %v3005
    %v3007 = vpop.f32.mrb[0].mxu0
    %v3008 = vpop.f32.mrb[0].mxu0
    %v3009 = vpop.f32.mrb[0].mxu0
    %3010 = vdwg.mxu0
    %3011 = vmatprep.subr.bf16.mxu0 0
    %3012 = vmatpush1.bf16.msra.mxu0 %v2195
    %3013 = vmatprep.subr.bf16.mxu0 0
    %3014 = vmatpush1.bf16.msra.mxu0 %v2196
    %3015 = vmatprep.subr.bf16.mxu0 0
    %3016 = vmatpush1.bf16.msra.mxu0 %v2197
    %3017 = vmatprep.subr.bf16.mxu0 0
    %3018 = vmatpush1.bf16.msra.mxu0 %v2198
    %3019 = vmatprep.subr.bf16.mxu0 0
    %3020 = vmatpush1.bf16.msra.mxu0 %v2199
    %3021 = vmatprep.subr.bf16.mxu0 0
    %3022 = vmatpush1.bf16.msra.mxu0 %v2200
    %3023 = vmatprep.subr.bf16.mxu0 0
    %3024 = vmatpush1.bf16.msra.mxu0 %v2201
    %3025 = vmatprep.subr.bf16.mxu0 0
    %3026 = vmatpush1.bf16.msra.mxu0 %v2202
    %3027 = vmatprep.subr.bf16.mxu0 0
    %3028 = vmatpush1.bf16.msra.mxu0 %v2203
    %3029 = vmatprep.subr.bf16.mxu0 0
    %3030 = vmatpush1.bf16.msra.mxu0 %v2204
    %3031 = vmatprep.subr.bf16.mxu0 0
    %3032 = vmatpush1.bf16.msra.mxu0 %v2205
    %3033 = vmatprep.subr.bf16.mxu0 0
    %3034 = vmatpush1.bf16.msra.mxu0 %v2206
    %3035 = vmatprep.subr.bf16.mxu0 0
    %3036 = vmatpush1.bf16.msra.mxu0 %v2207
    %3037 = vmatprep.subr.bf16.mxu0 0
    %3038 = vmatpush1.bf16.msra.mxu0 %v2208
    %3039 = vmatprep.subr.bf16.mxu0 0
    %3040 = vmatpush1.bf16.msra.mxu0 %v2209
    %3041 = vmatprep.subr.bf16.mxu0 0
    %3042 = vmatpush1.bf16.msra.mxu0 %v2210
    %3043 = vmatprep.mubr.bf16.mxu0 %v769
    %3044 = vmatmul.mubr.bf16.gmra.mrb[0].mxu0 %v755
    %v3045 = vpop.f32.mrb[0].mxu0
    %v3046 = vadd.f32 %v3006, %v3045
    %v3047 = vpop.f32.mrb[0].mxu0
    %v3048 = vpop.f32.mrb[0].mxu0
    %v3049 = vpop.f32.mrb[0].mxu0
    %3050 = vdwg.mxu0
    %3051 = vmatprep.subr.bf16.mxu0 0
    %3052 = vmatpush1.bf16.msra.mxu0 %v2211
    %3053 = vmatprep.subr.bf16.mxu0 0
    %3054 = vmatpush1.bf16.msra.mxu0 %v2212
    %3055 = vmatprep.subr.bf16.mxu0 0
    %3056 = vmatpush1.bf16.msra.mxu0 %v2213
    %3057 = vmatprep.subr.bf16.mxu0 0
    %3058 = vmatpush1.bf16.msra.mxu0 %v2214
    %3059 = vmatprep.subr.bf16.mxu0 0
    %3060 = vmatpush1.bf16.msra.mxu0 %v2215
    %3061 = vmatprep.subr.bf16.mxu0 0
    %3062 = vmatpush1.bf16.msra.mxu0 %v2216
    %3063 = vmatprep.subr.bf16.mxu0 0
    %3064 = vmatpush1.bf16.msra.mxu0 %v2217
    %3065 = vmatprep.subr.bf16.mxu0 0
    %3066 = vmatpush1.bf16.msra.mxu0 %v2218
    %3067 = vmatprep.subr.bf16.mxu0 0
    %3068 = vmatpush1.bf16.msra.mxu0 %v2219
    %3069 = vmatprep.subr.bf16.mxu0 0
    %3070 = vmatpush1.bf16.msra.mxu0 %v2220
    %3071 = vmatprep.subr.bf16.mxu0 0
    %3072 = vmatpush1.bf16.msra.mxu0 %v2221
    %3073 = vmatprep.subr.bf16.mxu0 0
    %3074 = vmatpush1.bf16.msra.mxu0 %v2222
    %3075 = vmatprep.subr.bf16.mxu0 0
    %3076 = vmatpush1.bf16.msra.mxu0 %v2223
    %3077 = vmatprep.subr.bf16.mxu0 0
    %3078 = vmatpush1.bf16.msra.mxu0 %v2224
    %3079 = vmatprep.subr.bf16.mxu0 0
    %3080 = vmatpush1.bf16.msra.mxu0 %v2225
    %3081 = vmatprep.subr.bf16.mxu0 0
    %3082 = vmatpush1.bf16.msra.mxu0 %v2226
    %3083 = vmatprep.mubr.bf16.mxu0 %v773
    %3084 = vmatmul.mubr.bf16.gmra.mrb[0].mxu0 %v771
    %v3085 = vpop.f32.mrb[0].mxu0
    %v3086 = vadd.f32 %v3046, %v3085
    %v3087 = vpop.f32.mrb[0].mxu0
    %v3088 = vpop.f32.mrb[0].mxu0
    %v3089 = vpop.f32.mrb[0].mxu0
    %3090 = vdwg.mxu0
    %3091 = vmatprep.subr.bf16.mxu0 0
    %3092 = vmatpush1.bf16.msra.mxu0 %v2227
    %3093 = vmatprep.subr.bf16.mxu0 0
    %3094 = vmatpush1.bf16.msra.mxu0 %v2228
    %3095 = vmatprep.subr.bf16.mxu0 0
    %3096 = vmatpush1.bf16.msra.mxu0 %v2229
    %3097 = vmatprep.subr.bf16.mxu0 0
    %3098 = vmatpush1.bf16.msra.mxu0 %v2230
    %3099 = vmatprep.subr.bf16.mxu0 0
    %3100 = vmatpush1.bf16.msra.mxu0 %v2231
    %3101 = vmatprep.subr.bf16.mxu0 0
    %3102 = vmatpush1.bf16.msra.mxu0 %v2232
    %3103 = vmatprep.subr.bf16.mxu0 0
    %3104 = vmatpush1.bf16.msra.mxu0 %v2233
    %3105 = vmatprep.subr.bf16.mxu0 0
    %3106 = vmatpush1.bf16.msra.mxu0 %v2234
    %3107 = vmatprep.subr.bf16.mxu0 0
    %3108 = vmatpush1.bf16.msra.mxu0 %v2235
    %3109 = vmatprep.subr.bf16.mxu0 0
    %3110 = vmatpush1.bf16.msra.mxu0 %v2236
    %3111 = vmatprep.subr.bf16.mxu0 0
    %3112 = vmatpush1.bf16.msra.mxu0 %v2237
    %3113 = vmatprep.subr.bf16.mxu0 0
    %3114 = vmatpush1.bf16.msra.mxu0 %v2238
    %3115 = vmatprep.subr.bf16.mxu0 0
    %3116 = vmatpush1.bf16.msra.mxu0 %v2239
    %3117 = vmatprep.subr.bf16.mxu0 0
    %3118 = vmatpush1.bf16.msra.mxu0 %v2240
    %3119 = vmatprep.subr.bf16.mxu0 0
    %3120 = vmatpush1.bf16.msra.mxu0 %v2241
    %3121 = vmatprep.subr.bf16.mxu0 0
    %3122 = vmatpush1.bf16.msra.mxu0 %v2242
    %3123 = vmatprep.mubr.bf16.mxu0 %v811
    %3124 = vmatmul.mubr.bf16.gmra.mrb[0].mxu0 %v797
    %v3125 = vpop.f32.mrb[0].mxu0
    %v3126 = vadd.f32 %v3086, %v3125
    %v3127 = vpop.f32.mrb[0].mxu0
    %v3128 = vpop.f32.mrb[0].mxu0
    %v3129 = vpop.f32.mrb[0].mxu0
    %3130 = vdwg.mxu0
    %3131 = vmatprep.subr.bf16.mxu0 0
    %3132 = vmatpush1.bf16.msra.mxu0 %v2243
    %3133 = vmatprep.subr.bf16.mxu0 0
    %3134 = vmatpush1.bf16.msra.mxu0 %v2244
    %3135 = vmatprep.subr.bf16.mxu0 0
    %3136 = vmatpush1.bf16.msra.mxu0 %v2245
    %3137 = vmatprep.subr.bf16.mxu0 0
    %3138 = vmatpush1.bf16.msra.mxu0 %v2246
    %3139 = vmatprep.subr.bf16.mxu0 0
    %3140 = vmatpush1.bf16.msra.mxu0 %v2247
    %3141 = vmatprep.subr.bf16.mxu0 0
    %3142 = vmatpush1.bf16.msra.mxu0 %v2248
    %3143 = vmatprep.subr.bf16.mxu0 0
    %3144 = vmatpush1.bf16.msra.mxu0 %v2249
    %3145 = vmatprep.subr.bf16.mxu0 0
    %3146 = vmatpush1.bf16.msra.mxu0 %v2250
    %3147 = vmatprep.subr.bf16.mxu0 0
    %3148 = vmatpush1.bf16.msra.mxu0 %v2251
    %3149 = vmatprep.subr.bf16.mxu0 0
    %3150 = vmatpush1.bf16.msra.mxu0 %v2252
    %3151 = vmatprep.subr.bf16.mxu0 0
    %3152 = vmatpush1.bf16.msra.mxu0 %v2253
    %3153 = vmatprep.subr.bf16.mxu0 0
    %3154 = vmatpush1.bf16.msra.mxu0 %v2254
    %3155 = vmatprep.subr.bf16.mxu0 0
    %3156 = vmatpush1.bf16.msra.mxu0 %v2255
    %3157 = vmatprep.subr.bf16.mxu0 0
    %3158 = vmatpush1.bf16.msra.mxu0 %v2256
    %3159 = vmatprep.subr.bf16.mxu0 0
    %3160 = vmatpush1.bf16.msra.mxu0 %v2257
    %3161 = vmatprep.subr.bf16.mxu0 0
    %3162 = vmatpush1.bf16.msra.mxu0 %v2258
    %3163 = vmatprep.mubr.bf16.mxu0 %v821
    %3164 = vmatmul.mubr.bf16.gmra.mrb[0].mxu0 %v819
    %v3165 = vpop.f32.mrb[0].mxu0
    %v3166 = vadd.f32 %v3126, %v3165
    %v3167 = vpop.f32.mrb[0].mxu0
    %v3168 = vpop.f32.mrb[0].mxu0
    %v3169 = vpop.f32.mrb[0].mxu0
    %3170 = vdwg.mxu0
    %3171 = vmatprep.subr.bf16.mxu0 0
    %3172 = vmatpush1.bf16.msra.mxu0 %v2259
    %3173 = vmatprep.subr.bf16.mxu0 0
    %3174 = vmatpush1.bf16.msra.mxu0 %v2260
    %3175 = vmatprep.subr.bf16.mxu0 0
    %3176 = vmatpush1.bf16.msra.mxu0 %v2261
    %3177 = vmatprep.subr.bf16.mxu0 0
    %3178 = vmatpush1.bf16.msra.mxu0 %v2262
    %3179 = vmatprep.subr.bf16.mxu0 0
    %3180 = vmatpush1.bf16.msra.mxu0 %v2263
    %3181 = vmatprep.subr.bf16.mxu0 0
    %3182 = vmatpush1.bf16.msra.mxu0 %v2264
    %3183 = vmatprep.subr.bf16.mxu0 0
    %3184 = vmatpush1.bf16.msra.mxu0 %v2265
    %3185 = vmatprep.subr.bf16.mxu0 0
    %3186 = vmatpush1.bf16.msra.mxu0 %v2266
    %3187 = vmatprep.subr.bf16.mxu0 0
    %3188 = vmatpush1.bf16.msra.mxu0 %v2267
    %3189 = vmatprep.subr.bf16.mxu0 0
    %3190 = vmatpush1.bf16.msra.mxu0 %v2268
    %3191 = vmatprep.subr.bf16.mxu0 0
    %3192 = vmatpush1.bf16.msra.mxu0 %v2269
    %3193 = vmatprep.subr.bf16.mxu0 0
    %3194 = vmatpush1.bf16.msra.mxu0 %v2270
    %3195 = vmatprep.subr.bf16.mxu0 0
    %3196 = vmatpush1.bf16.msra.mxu0 %v2271
    %3197 = vmatprep.subr.bf16.mxu0 0
    %3198 = vmatpush1.bf16.msra.mxu0 %v2272
    %3199 = vmatprep.subr.bf16.mxu0 0
    %3200 = vmatpush1.bf16.msra.mxu0 %v2273
    %3201 = vmatprep.subr.bf16.mxu0 0
    %3202 = vmatpush1.bf16.msra.mxu0 %v2274
    %3203 = vmatprep.mubr.bf16.mxu0 %v818
    %3204 = vmatmul.mubr.bf16.gmra.mrb[0].mxu0 %v804
    %v3205 = vpop.f32.mrb[0].mxu0
    %v3206 = vadd.f32 %v3166, %v3205
    %v3207 = vpop.f32.mrb[0].mxu0
    %v3208 = vpop.f32.mrb[0].mxu0
    %v3209 = vpop.f32.mrb[0].mxu0
    %3210 = vdwg.mxu0
    %3211 = vmatprep.subr.bf16.mxu0 0
    %3212 = vmatpush1.bf16.msra.mxu0 %v2275
    %3213 = vmatprep.subr.bf16.mxu0 0
    %3214 = vmatpush1.bf16.msra.mxu0 %v2276
    %3215 = vmatprep.subr.bf16.mxu0 0
    %3216 = vmatpush1.bf16.msra.mxu0 %v2277
    %3217 = vmatprep.subr.bf16.mxu0 0
    %3218 = vmatpush1.bf16.msra.mxu0 %v2278
    %3219 = vmatprep.subr.bf16.mxu0 0
    %3220 = vmatpush1.bf16.msra.mxu0 %v2279
    %3221 = vmatprep.subr.bf16.mxu0 0
    %3222 = vmatpush1.bf16.msra.mxu0 %v2280
    %3223 = vmatprep.subr.bf16.mxu0 0
    %3224 = vmatpush1.bf16.msra.mxu0 %v2281
    %3225 = vmatprep.subr.bf16.mxu0 0
    %3226 = vmatpush1.bf16.msra.mxu0 %v2282
    %3227 = vmatprep.subr.bf16.mxu0 0
    %3228 = vmatpush1.bf16.msra.mxu0 %v2283
    %3229 = vmatprep.subr.bf16.mxu0 0
    %3230 = vmatpush1.bf16.msra.mxu0 %v2284
    %3231 = vmatprep.subr.bf16.mxu0 0
    %3232 = vmatpush1.bf16.msra.mxu0 %v2285
    %3233 = vmatprep.subr.bf16.mxu0 0
    %3234 = vmatpush1.bf16.msra.mxu0 %v2286
    %3235 = vmatprep.subr.bf16.mxu0 0
    %3236 = vmatpush1.bf16.msra.mxu0 %v2287
    %3237 = vmatprep.subr.bf16.mxu0 0
    %3238 = vmatpush1.bf16.msra.mxu0 %v2288
    %3239 = vmatprep.subr.bf16.mxu0 0
    %3240 = vmatpush1.bf16.msra.mxu0 %v2289
    %3241 = vmatprep.subr.bf16.mxu0 0
    %3242 = vmatpush1.bf16.msra.mxu0 %v2290
    %3243 = vmatprep.mubr.bf16.mxu0 %v822
    %3244 = vmatmul.mubr.bf16.gmra.mrb[0].mxu0 %v820
    %v3245 = vpop.f32.mrb[0].mxu0
    %v3246 = vadd.f32 %v3206, %v3245
    %v3247 = vpop.f32.mrb[0].mxu0
    %v3248 = vpop.f32.mrb[0].mxu0
    %v3249 = vpop.f32.mrb[0].mxu0
    %3250 = vdwg.mxu0
    %3251 = vmatprep.subr.bf16.mxu0 0
    %3252 = vmatpush1.bf16.msra.mxu0 %v2291
    %3253 = vmatprep.subr.bf16.mxu0 0
    %3254 = vmatpush1.bf16.msra.mxu0 %v2292
    %3255 = vmatprep.subr.bf16.mxu0 0
    %3256 = vmatpush1.bf16.msra.mxu0 %v2293
    %3257 = vmatprep.subr.bf16.mxu0 0
    %3258 = vmatpush1.bf16.msra.mxu0 %v2294
    %3259 = vmatprep.subr.bf16.mxu0 0
    %3260 = vmatpush1.bf16.msra.mxu0 %v2295
    %3261 = vmatprep.subr.bf16.mxu0 0
    %3262 = vmatpush1.bf16.msra.mxu0 %v2296
    %3263 = vmatprep.subr.bf16.mxu0 0
    %3264 = vmatpush1.bf16.msra.mxu0 %v2297
    %3265 = vmatprep.subr.bf16.mxu0 0
    %3266 = vmatpush1.bf16.msra.mxu0 %v2298
    %3267 = vmatprep.subr.bf16.mxu0 0
    %3268 = vmatpush1.bf16.msra.mxu0 %v2299
    %3269 = vmatprep.subr.bf16.mxu0 0
    %3270 = vmatpush1.bf16.msra.mxu0 %v2300
    %3271 = vmatprep.subr.bf16.mxu0 0
    %3272 = vmatpush1.bf16.msra.mxu0 %v2301
    %3273 = vmatprep.subr.bf16.mxu0 0
    %3274 = vmatpush1.bf16.msra.mxu0 %v2302
    %3275 = vmatprep.subr.bf16.mxu0 0
    %3276 = vmatpush1.bf16.msra.mxu0 %v2303
    %3277 = vmatprep.subr.bf16.mxu0 0
    %3278 = vmatpush1.bf16.msra.mxu0 %v2304
    %3279 = vmatprep.subr.bf16.mxu0 0
    %3280 = vmatpush1.bf16.msra.mxu0 %v2305
    %3281 = vmatprep.subr.bf16.mxu0 0
    %3282 = vmatpush1.bf16.msra.mxu0 %v2306
    %3283 = vmatprep.mubr.bf16.mxu0 %v844
    %3284 = vmatmul.mubr.bf16.gmra.mrb[0].mxu0 %v837
    %v3285 = vpop.f32.mrb[0].mxu0
    %v3286 = vadd.f32 %v3246, %v3285
    %v3287 = vpop.f32.mrb[0].mxu0
    %v3288 = vpop.f32.mrb[0].mxu0
    %v3289 = vpop.f32.mrb[0].mxu0
    %3290 = vdwg.mxu0
    %3291 = vmatprep.subr.bf16.mxu0 0
    %3292 = vmatpush1.bf16.msra.mxu0 %v2307
    %3293 = vmatprep.subr.bf16.mxu0 0
    %3294 = vmatpush1.bf16.msra.mxu0 %v2308
    %3295 = vmatprep.subr.bf16.mxu0 0
    %3296 = vmatpush1.bf16.msra.mxu0 %v2309
    %3297 = vmatprep.subr.bf16.mxu0 0
    %3298 = vmatpush1.bf16.msra.mxu0 %v2310
    %3299 = vmatprep.subr.bf16.mxu0 0
    %3300 = vmatpush1.bf16.msra.mxu0 %v2311
    %3301 = vmatprep.subr.bf16.mxu0 0
    %3302 = vmatpush1.bf16.msra.mxu0 %v2312
    %3303 = vmatprep.subr.bf16.mxu0 0
    %3304 = vmatpush1.bf16.msra.mxu0 %v2313
    %3305 = vmatprep.subr.bf16.mxu0 0
    %3306 = vmatpush1.bf16.msra.mxu0 %v2314
    %3307 = vmatprep.subr.bf16.mxu0 0
    %3308 = vmatpush1.bf16.msra.mxu0 %v2315
    %3309 = vmatprep.subr.bf16.mxu0 0
    %3310 = vmatpush1.bf16.msra.mxu0 %v2316
    %3311 = vmatprep.subr.bf16.mxu0 0
    %3312 = vmatpush1.bf16.msra.mxu0 %v2317
    %3313 = vmatprep.subr.bf16.mxu0 0
    %3314 = vmatpush1.bf16.msra.mxu0 %v2318
    %3315 = vmatprep.subr.bf16.mxu0 0
    %3316 = vmatpush1.bf16.msra.mxu0 %v2319
    %3317 = vmatprep.subr.bf16.mxu0 0
    %3318 = vmatpush1.bf16.msra.mxu0 %v2320
    %3319 = vmatprep.subr.bf16.mxu0 0
    %3320 = vmatpush1.bf16.msra.mxu0 %v2321
    %3321 = vmatprep.subr.bf16.mxu0 0
    %3322 = vmatpush1.bf16.msra.mxu0 %v2322
    %3323 = vmatprep.mubr.bf16.mxu0 %v846
    %3324 = vmatmul.mubr.bf16.gmra.mrb[0].mxu0 %v845
    %v3325 = vpop.f32.mrb[0].mxu0
    %v3326 = vadd.f32 %v3286, %v3325
    %v3327 = vpop.f32.mrb[0].mxu0
    %v3328 = vpop.f32.mrb[0].mxu0
    %v3329 = vpop.f32.mrb[0].mxu0
    %3330 = vdwg.mxu0
    %v3331 = vmax.f32 %v3326, 0.0
    %v3332 = vld [vmem:[%s4] sm:$0xff]
    %v3333 = vld [vmem:[%s4 + $0x8] sm:$0xff]
    %v3334 = vld [vmem:[%s4 + $0x10] sm:$0xff]
    %v3335 = vld [vmem:[%s4 + $0x18] sm:$0xff]
    %v3336 = vld [vmem:[%s4 + $0x20] sm:$0xff]
    %v3337 = vld [vmem:[%s4 + $0x28] sm:$0xff]
    %v3338 = vld [vmem:[%s4 + $0x30] sm:$0xff]
    %v3339 = vld [vmem:[%s4 + $0x38] sm:$0xff]
    %v3340 = vld [vmem:[%s1] sm:$0x3]
    %v3341 = vld [vmem:[%s5] sm:$0x3f]
    %vm3342 = vcmask 48128
    %v3344 = vsel %vm3342, %v3340, 0
    %vm3346 = vcmask 1045504
    %v3348 = vsel %vm3346, %v3341, 0
    %3350 = vmatprep.subr.mxu0 0.0
    %3351 = vmatpush1.msra.mxu0 %v3348
    %3352 = vmatprep.subr.mxu0 0.0
    %3353 = vmatpush1.msra.mxu0 0.0
    %3354 = vmatprep.subr.mxu0 0.0
    %3355 = vmatpush1.msra.mxu0 0.0
    %3356 = vmatprep.subr.mxu0 0.0
    %3357 = vmatpush1.msra.mxu0 0.0
    %3358 = vmatprep.subr.mxu0 0.0
    %3359 = vmatpush1.msra.mxu0 0.0
    %3360 = vmatprep.subr.mxu0 0.0
    %3361 = vmatpush1.msra.mxu0 0.0
    %3362 = vmatprep.subr.mxu0 0.0
    %3363 = vmatpush1.msra.mxu0 0.0
    %3364 = vmatprep.subr.mxu0 0.0
    %3365 = vmatpush1.msra.mxu0 0.0
    %3366 = vmatprep.subr.mxu0 0.0
    %3367 = vmatpush1.msra.mxu0 0.0
    %3368 = vmatprep.subr.mxu0 0.0
    %3369 = vmatpush1.msra.mxu0 0.0
    %3370 = vmatprep.subr.mxu0 0.0
    %3371 = vmatpush1.msra.mxu0 0.0
    %3372 = vmatprep.subr.mxu0 0.0
    %3373 = vmatpush1.msra.mxu0 0.0
    %3374 = vmatprep.subr.mxu0 0.0
    %3375 = vmatpush1.msra.mxu0 0.0
    %3376 = vmatprep.subr.mxu0 0.0
    %3377 = vmatpush1.msra.mxu0 0.0
    %3378 = vmatprep.subr.mxu0 0.0
    %3379 = vmatpush1.msra.mxu0 0.0
    %3380 = vmatprep.subr.mxu0 0.0
    %3381 = vmatpush1.msra.mxu0 0.0
    %3382 = vmatprep.subr.mxu0 0.0
    %3383 = vmatpush1.msra.mxu0 0.0
    %3384 = vmatprep.subr.mxu0 0.0
    %3385 = vmatpush1.msra.mxu0 0.0
    %3386 = vmatprep.subr.mxu0 0.0
    %3387 = vmatpush1.msra.mxu0 0.0
    %3388 = vmatprep.subr.mxu0 0.0
    %3389 = vmatpush1.msra.mxu0 0.0
    %3390 = vmatprep.subr.mxu0 0.0
    %3391 = vmatpush1.msra.mxu0 0.0
    %3392 = vmatprep.subr.mxu0 0.0
    %3393 = vmatpush1.msra.mxu0 0.0
    %3394 = vmatprep.subr.mxu0 0.0
    %3395 = vmatpush1.msra.mxu0 0.0
    %3396 = vmatprep.subr.mxu0 0.0
    %3397 = vmatpush1.msra.mxu0 0.0
    %3398 = vmatprep.subr.mxu0 0.0
    %3399 = vmatpush1.msra.mxu0 0.0
    %3400 = vmatprep.subr.mxu0 0.0
    %3401 = vmatpush1.msra.mxu0 0.0
    %3402 = vmatprep.subr.mxu0 0.0
    %3403 = vmatpush1.msra.mxu0 0.0
    %3404 = vmatprep.subr.mxu0 0.0
    %3405 = vmatpush1.msra.mxu0 0.0
    %3406 = vmatprep.subr.mxu0 0.0
    %3407 = vmatpush1.msra.mxu0 0.0
    %3408 = vmatprep.subr.mxu0 0.0
    %3409 = vmatpush1.msra.mxu0 0.0
    %3410 = vmatprep.subr.mxu0 0.0
    %3411 = vmatpush1.msra.mxu0 0.0
    %3412 = vmatprep.subr.mxu0 0.0
    %3413 = vmatpush1.msra.mxu0 0.0
    %3414 = vmatprep.mubr.f32.mxu0 0.0
    %3415 = vmatmul.mubr.f32.gmra.mrb[0].mxu0 %v3344
    %v3416 = vpop.f32.mrb[0].mxu0
    %v3417 = vadd.f32 0.0, %v3416
    %v3418 = vpop.f32.mrb[0].mxu0
    %3419 = vdwg.mxu0
    %vm3420 = vcmask 523264
    %v3422 = vsel %vm3420, %v3331, 0
    %3424 = vmatprep.subr.mxu0 0.0
    %3425 = vmatpush1.msra.mxu0 %v3332
    %3426 = vmatprep.subr.mxu0 0.0
    %3427 = vmatpush1.msra.mxu0 %v3333
    %3428 = vmatprep.subr.mxu0 0.0
    %3429 = vmatpush1.msra.mxu0 %v3334
    %3430 = vmatprep.subr.mxu0 0.0
    %3431 = vmatpush1.msra.mxu0 %v3335
    %3432 = vmatprep.subr.mxu0 0.0
    %3433 = vmatpush1.msra.mxu0 %v3336
    %3434 = vmatprep.subr.mxu0 0.0
    %3435 = vmatpush1.msra.mxu0 %v3337
    %3436 = vmatprep.subr.mxu0 0.0
    %3437 = vmatpush1.msra.mxu0 %v3338
    %3438 = vmatprep.subr.mxu0 0.0
    %3439 = vmatpush1.msra.mxu0 %v3339
    %3440 = vmatprep.subr.mxu0 0.0
    %3441 = vmatpush1.msra.mxu0 0.0
    %3442 = vmatprep.subr.mxu0 0.0
    %3443 = vmatpush1.msra.mxu0 0.0
    %3444 = vmatprep.subr.mxu0 0.0
    %3445 = vmatpush1.msra.mxu0 0.0
    %3446 = vmatprep.subr.mxu0 0.0
    %3447 = vmatpush1.msra.mxu0 0.0
    %3448 = vmatprep.subr.mxu0 0.0
    %3449 = vmatpush1.msra.mxu0 0.0
    %3450 = vmatprep.subr.mxu0 0.0
    %3451 = vmatpush1.msra.mxu0 0.0
    %3452 = vmatprep.subr.mxu0 0.0
    %3453 = vmatpush1.msra.mxu0 0.0
    %3454 = vmatprep.subr.mxu0 0.0
    %3455 = vmatpush1.msra.mxu0 0.0
    %3456 = vmatprep.subr.mxu0 0.0
    %3457 = vmatpush1.msra.mxu0 0.0
    %3458 = vmatprep.subr.mxu0 0.0
    %3459 = vmatpush1.msra.mxu0 0.0
    %3460 = vmatprep.subr.mxu0 0.0
    %3461 = vmatpush1.msra.mxu0 0.0
    %3462 = vmatprep.subr.mxu0 0.0
    %3463 = vmatpush1.msra.mxu0 0.0
    %3464 = vmatprep.subr.mxu0 0.0
    %3465 = vmatpush1.msra.mxu0 0.0
    %3466 = vmatprep.subr.mxu0 0.0
    %3467 = vmatpush1.msra.mxu0 0.0
    %3468 = vmatprep.subr.mxu0 0.0
    %3469 = vmatpush1.msra.mxu0 0.0
    %3470 = vmatprep.subr.mxu0 0.0
    %3471 = vmatpush1.msra.mxu0 0.0
    %3472 = vmatprep.subr.mxu0 0.0
    %3473 = vmatpush1.msra.mxu0 0.0
    %3474 = vmatprep.subr.mxu0 0.0
    %3475 = vmatpush1.msra.mxu0 0.0
    %3476 = vmatprep.subr.mxu0 0.0
    %3477 = vmatpush1.msra.mxu0 0.0
    %3478 = vmatprep.subr.mxu0 0.0
    %3479 = vmatpush1.msra.mxu0 0.0
    %3480 = vmatprep.subr.mxu0 0.0
    %3481 = vmatpush1.msra.mxu0 0.0
    %3482 = vmatprep.subr.mxu0 0.0
    %3483 = vmatpush1.msra.mxu0 0.0
    %3484 = vmatprep.subr.mxu0 0.0
    %3485 = vmatpush1.msra.mxu0 0.0
    %3486 = vmatprep.subr.mxu0 0.0
    %3487 = vmatpush1.msra.mxu0 0.0
    %3488 = vmatprep.mubr.f32.mxu0 0.0
    %3489 = vmatmul.mubr.f32.gmra.mrb[0].mxu0 %v3422
    %v3490 = vpop.f32.mrb[0].mxu0
    %v3491 = vadd.f32 %v3417, %v3490
    %v3492 = vpop.f32.mrb[0].mxu0
    %3493 = vdwg.mxu0
    %v3494 = vld [vmem:[%s6] sm:$0x1]
    %v3496 = vlaneseq
    %v3497 = vshrl.u32 %v3496, 7
    %v3498 = vsub.s32 0, %v3497
    %v3499 = vrot.slane %v3494, %v3498
    %v3501 = vadd.f32 %v3491, %v3499
    %v3502 = vmax.f32 %v3501, 0.0
    %v3503 = vld [vmem:[%s7] sm:$0xff]
    %v3504 = vld [vmem:[%s7 + $0x8] sm:$0xff]
    %v3505 = vld [vmem:[%s7 + $0x10] sm:$0xff]
    %v3506 = vld [vmem:[%s7 + $0x18] sm:$0xff]
    %v3507 = vld [vmem:[%s7 + $0x20] sm:$0xff]
    %v3508 = vld [vmem:[%s7 + $0x28] sm:$0xff]
    %v3509 = vld [vmem:[%s7 + $0x30] sm:$0xff]
    %v3510 = vld [vmem:[%s7 + $0x38] sm:$0xff]
    %v3511 = vld [vmem:[%s8] sm:$0x1]
    %v3513 = vlaneseq
    %v3514 = vshrl.u32 %v3513, 7
    %v3515 = vsub.s32 0, %v3514
    %v3516 = vrot.slane %v3511, %v3515
    %v3519 = vsel %vm3420, %v3502, 0
    %3521 = vmatprep.subr.mxu0 0.0
    %3522 = vmatpush1.msra.mxu0 %v3503
    %3523 = vmatprep.subr.mxu0 0.0
    %3524 = vmatpush1.msra.mxu0 %v3504
    %3525 = vmatprep.subr.mxu0 0.0
    %3526 = vmatpush1.msra.mxu0 %v3505
    %3527 = vmatprep.subr.mxu0 0.0
    %3528 = vmatpush1.msra.mxu0 %v3506
    %3529 = vmatprep.subr.mxu0 0.0
    %3530 = vmatpush1.msra.mxu0 %v3507
    %3531 = vmatprep.subr.mxu0 0.0
    %3532 = vmatpush1.msra.mxu0 %v3508
    %3533 = vmatprep.subr.mxu0 0.0
    %3534 = vmatpush1.msra.mxu0 %v3509
    %3535 = vmatprep.subr.mxu0 0.0
    %3536 = vmatpush1.msra.mxu0 %v3510
    %3537 = vmatprep.subr.mxu0 0.0
    %3538 = vmatpush1.msra.mxu0 0.0
    %3539 = vmatprep.subr.mxu0 0.0
    %3540 = vmatpush1.msra.mxu0 0.0
    %3541 = vmatprep.subr.mxu0 0.0
    %3542 = vmatpush1.msra.mxu0 0.0
    %3543 = vmatprep.subr.mxu0 0.0
    %3544 = vmatpush1.msra.mxu0 0.0
    %3545 = vmatprep.subr.mxu0 0.0
    %3546 = vmatpush1.msra.mxu0 0.0
    %3547 = vmatprep.subr.mxu0 0.0
    %3548 = vmatpush1.msra.mxu0 0.0
    %3549 = vmatprep.subr.mxu0 0.0
    %3550 = vmatpush1.msra.mxu0 0.0
    %3551 = vmatprep.subr.mxu0 0.0
    %3552 = vmatpush1.msra.mxu0 0.0
    %3553 = vmatprep.subr.mxu0 0.0
    %3554 = vmatpush1.msra.mxu0 0.0
    %3555 = vmatprep.subr.mxu0 0.0
    %3556 = vmatpush1.msra.mxu0 0.0
    %3557 = vmatprep.subr.mxu0 0.0
    %3558 = vmatpush1.msra.mxu0 0.0
    %3559 = vmatprep.subr.mxu0 0.0
    %3560 = vmatpush1.msra.mxu0 0.0
    %3561 = vmatprep.subr.mxu0 0.0
    %3562 = vmatpush1.msra.mxu0 0.0
    %3563 = vmatprep.subr.mxu0 0.0
    %3564 = vmatpush1.msra.mxu0 0.0
    %3565 = vmatprep.subr.mxu0 0.0
    %3566 = vmatpush1.msra.mxu0 0.0
    %3567 = vmatprep.subr.mxu0 0.0
    %3568 = vmatpush1.msra.mxu0 0.0
    %3569 = vmatprep.subr.mxu0 0.0
    %3570 = vmatpush1.msra.mxu0 0.0
    %3571 = vmatprep.subr.mxu0 0.0
    %3572 = vmatpush1.msra.mxu0 0.0
    %3573 = vmatprep.subr.mxu0 0.0
    %3574 = vmatpush1.msra.mxu0 0.0
    %3575 = vmatprep.subr.mxu0 0.0
    %3576 = vmatpush1.msra.mxu0 0.0
    %3577 = vmatprep.subr.mxu0 0.0
    %3578 = vmatpush1.msra.mxu0 0.0
    %3579 = vmatprep.subr.mxu0 0.0
    %3580 = vmatpush1.msra.mxu0 0.0
    %3581 = vmatprep.subr.mxu0 0.0
    %3582 = vmatpush1.msra.mxu0 0.0
    %3583 = vmatprep.subr.mxu0 0.0
    %3584 = vmatpush1.msra.mxu0 0.0
    %3585 = vmatprep.mubr.f32.mxu0 0.0
    %3586 = vmatmul.mubr.f32.gmra.mrb[0].mxu0 %v3519
    %v3587 = vpop.f32.mrb[0].mxu0
    %v3588 = vadd.f32 %v3516, %v3587
    %v3589 = vpop.f32.mrb[0].mxu0
    %3590 = vdwg.mxu0
    %vm3591 = vcmask 25600
    %3592 = vst.msk [vmem:[#allocation2] sm:$0x3] %vm3591, %v3588
    // Predicated region
    $region38: #{dqn3_forward.3} parent=1 // pred_check
      _
    $region39: #{dqn3_forward.3} parent=1 // pred_check_branch
      %3594 = sbr.rel (0) target = $region41
    $region40: #{dqn3_forward.3} parent=1 // pred_region
      %s3596 = ssub.s32 32, 32
      %3597 = vsyncadd [#allocation3], %s3596
      %s3599 = sshll.u32 [#allocation2], 4
      %s3600 = int_to_ptr.vmem [resolvable:$true] %s3599
      %3602 = dma.vmem_to_hbm [thread:$0]  %s3600, 32, %s9, [#allocation3]
    $region41: #{dqn3_forward.3} parent=1 // pred_fallthru
      _
    // Predicated region
    $region42: #{dqn3_forward.3} parent=1 // pred_check
      _
    $region43: #{dqn3_forward.3} parent=1 // pred_check_branch
      %3604 = sbr.rel (0) target = $region45
    $region44: #{dqn3_forward.3} parent=1 // pred_region
      %3605 = dma.done [#allocation3], 32
    $region45: #{dqn3_forward.3} parent=1 // pred_fallthru
      _
    %3606 = vsyncpa [#allocation3], 1

</llo_original>
